<compile_context>
chip_gen: v6e
topology: v6e:2x2x1
jax: 0.10.0
libtpu: 0.0.40
codegen_flags: <defaults>
</compile_context>

<pallas_src>
import functools
import numpy as np
import jax
import jax.numpy as jnp
from jax.experimental import pallas as pl
from jax.experimental.pallas import tpu as pltpu

# ----------------------------------------------------------------- configuration
ELEM_DIM     = 4
Q_ACTION_DIM = 2
GOAL_DIM     = 3
CONFIG_DIM   = 4          # robot config (unused in 'local' frame)
HIDDEN       = 256        # hidden_sizes = [256] (head hardcodes Linear(256,128))
OUTPUT_SIZE  = 4
OUT_DIM      = 2 * OUTPUT_SIZE

D_IN_BLOCK0  = ELEM_DIM + Q_ACTION_DIM     # 6  ('local': elem_dim + q_action_dim)
D_PAD        = 16                          # zero-padded feature dim (bf16 sublane pack)
MASK_COL     = D_PAD - 1                   # the 0/1 mask rides in this padded column

H2, H3, H4 = 128, 64, 32                   # head layer widths (hardcoded in torch)

# ---- packed bf16 weight slab layout: rows in a single (W_ROWS, 256) buffer ----
W0_OFF  = 0                    # (D_PAD, 256)  block0 (rows 6..15 are zero padding)
W1H_OFF = W0_OFF + D_PAD       # (256, 256)    block1, hidden half of the concat
W2_OFF  = W1H_OFF + HIDDEN     # (256, 128)
W3_OFF  = W2_OFF + HIDDEN      # (128, 64)
W4_OFF  = W3_OFF + H2          # (64, 32)
W5_OFF  = W4_OFF + H3          # (32, 8)
W_ROWS  = W5_OFF + H4          # 752 rows total  (752 * 256 * 2B ~= 385 KB)

# ---- small fp32 slab: biases + the 3-row goal weight (one DMA, 16 KB) ----
B0_ROW, B1_ROW, B2_ROW, B3_ROW, B4_ROW, B5_ROW = 0, 1, 2, 3, 4, 5
W1G_ROW    = 8                 # rows 8..10 hold w1g (3, 256) in fp32
SMALL_ROWS = 16


def elu(x, use_bf16_exp=False):
    """F.elu(alpha=1.0) in fp32; negative-branch exp optionally in bf16 (v6e/v7x EUP)."""
    neg = jnp.minimum(x, 0.0)
    if use_bf16_exp:
        e = jnp.exp(neg.astype(jnp.bfloat16)).astype(jnp.float32)
    else:
        e = jnp.exp(neg)
    return jnp.where(x > 0, x, e - 1.0)


# ----------------------------------------------------------------- device profile
def _device_profile():
    """(tile_vmem_budget_bytes, vmem_limit_bytes, row_align, use_bf16_exp)."""
    try:
        kind = jax.devices()[0].device_kind.lower()
    except Exception:  # noqa: BLE001
        kind = ""
    if "v7" in kind:                         # 64 MiB VMEM per TC, bf16 EUP
        return 20 << 20, 48 << 20, 256, True
    if "v6" in kind or "trillium" in kind:   # 128 MiB VMEM, bf16 EUP
        return 48 << 20, 96 << 20, 256, True
    if "v5 lite" in kind or "v5e" in kind:   # 128 MiB VMEM, no bf16 VPU/EUP
        return 40 << 20, 80 << 20, 128, False
    # v5p / v4 / unknown: conservative, leave the scoped-VMEM default alone.
    return 16 << 20, None, 128, False


def _choose_tile_b(B, P_pad, vmem_budget_bytes):
    """Largest batch tile whose per-step VMEM footprint fits the budget.

    Constraints: tile_b divides B and is a multiple of 8 (or equals B) so every
    BlockSpec satisfies the (8,128) / full-dim rule, including the bf16 h0 tile.
    At production sizes the VMEM cap naturally leaves >=8 grid steps (pipelining /
    v7x core sharding); for tiny demo batches one big step is fine.
    """
    weights = W_ROWS * HIDDEN * 2 + SMALL_ROWS * HIDDEN * 4

    def est(tb):
        rows = tb * P_pad
        act_in  = 2 * rows * D_PAD * 2          # bf16 h0 tile, double-buffered
        io      = 2 * tb * 128 * 4 * 2          # goal + out tiles (lane-padded), 2 bufs
        scratch = 3 * rows * HIDDEN * 4         # fp32 block0 activations (live copies)
        head    = 6 * tb * HIDDEN * 4           # pooled + head intermediates
        return 2 * weights + act_in + io + scratch + head

    candidates = [tb for tb in range(1, B + 1)
                  if B % tb == 0 and (tb == B or tb % 8 == 0)]
    best = min(candidates)
    for tb in candidates:
        if tb * P_pad <= 8192 and est(tb) <= vmem_budget_bytes and tb > best:
            best = tb
    return best


# ----------------------------------------------------------------- Pallas kernel
def pointnet_kernel(h0_ref, goal_ref, w_ref, s_ref, out_ref, *, n_points, use_bf16_exp):
    """One batch tile.

    h0_ref   : (TB*P, D_PAD)      bf16  point features, 0/1 mask folded into col 15
    goal_ref : (TB, GOAL_DIM)     f32
    w_ref    : (W_ROWS, 256)      bf16  packed weights (VMEM-resident across grid)
    s_ref    : (SMALL_ROWS, 256)  f32   biases + w1g
    out_ref  : (TB, OUT_DIM)      f32
    """
    f32, bf16 = jnp.float32, jnp.bfloat16
    M = h0_ref.shape[0]
    TB = M // n_points

    x = h0_ref[...]                                       # (M, 16) bf16
    mask = x[:, MASK_COL:MASK_COL + 1].astype(f32)        # (M, 1) 0/1 (exact in bf16)

    # ---- block0: point-wise Linear + ELU (single (M,16)@(16,256) MXU pass) ----
    # The mask column hits an all-zero weight row, so it never leaks into the dot.
    w0 = w_ref[pl.ds(W0_OFF, D_PAD), :]                   # (16, 256) bf16
    h = jnp.dot(x, w0, preferred_element_type=f32)
    h = elu(h + s_ref[B0_ROW:B0_ROW + 1, :], use_bf16_exp)     # (M, 256) f32

    # ---- mask + max-pool over points (multiply-by-zero mask, as in torch) ----
    h = h * mask
    h = jnp.max(h.reshape(TB, n_points, HIDDEN), axis=1)       # (TB, 256)

    # ---- block1: Linear(cat(h, goal)) + ELU as split matmul + 3 VPU FMAs ----
    w1h = w_ref[pl.ds(W1H_OFF, HIDDEN), :]                     # (256, 256) bf16
    acc = jnp.dot(h.astype(bf16), w1h, preferred_element_type=f32)
    g = goal_ref[...]                                          # (TB, 3) f32
    for j in range(GOAL_DIM):                                  # K=3 -> VPU, not MXU
        acc = acc + g[:, j:j + 1] * s_ref[W1G_ROW + j:W1G_ROW + j + 1, :]
    h = elu(acc + s_ref[B1_ROW:B1_ROW + 1, :], use_bf16_exp)   # (TB, 256)

    # ---- head: 256 -> 128 -> 64 -> 32 -> 2*output_size ----
    w2 = w_ref[pl.ds(W2_OFF, HIDDEN), pl.ds(0, H2)]            # (256, 128)
    h = elu(jnp.dot(h.astype(bf16), w2, preferred_element_type=f32)
            + s_ref[B2_ROW:B2_ROW + 1, pl.ds(0, H2)], use_bf16_exp)
    w3 = w_ref[pl.ds(W3_OFF, H2), pl.ds(0, H3)]                # (128, 64)
    h = elu(jnp.dot(h.astype(bf16), w3, preferred_element_type=f32)
            + s_ref[B3_ROW:B3_ROW + 1, pl.ds(0, H3)], use_bf16_exp)
    w4 = w_ref[pl.ds(W4_OFF, H3), pl.ds(0, H4)]                # (64, 32)
    h = elu(jnp.dot(h.astype(bf16), w4, preferred_element_type=f32)
            + s_ref[B4_ROW:B4_ROW + 1, pl.ds(0, H4)], use_bf16_exp)
    w5 = w_ref[pl.ds(W5_OFF, H4), pl.ds(0, OUT_DIM)]           # (32, 8)
    out_ref[...] = (jnp.dot(h.astype(bf16), w5, preferred_element_type=f32)
                    + s_ref[B5_ROW:B5_ROW + 1, pl.ds(0, OUT_DIM)])


# ----------------------------------------------------------------- pallas_call builder
def _pointnet_pallas_call(h0_flat, goal, w_pack, s_pack, *, n_points, tile_b,
                          vmem_limit, use_bf16_exp, buffered_params):
    B = goal.shape[0]
    P = n_points
    grid = (B // tile_b,)
    kernel = functools.partial(pointnet_kernel, n_points=P, use_bf16_exp=use_bf16_exp)

    # Resident parameter blocks: constant index_map; single buffer if supported.
    resident = dict(pipeline_mode=pl.Buffered(1)) if buffered_params else {}
    in_specs = [
        pl.BlockSpec((tile_b * P, D_PAD), lambda i: (i, 0)),          # h0 tile (bf16)
        pl.BlockSpec((tile_b, GOAL_DIM), lambda i: (i, 0)),           # goal tile
        pl.BlockSpec((W_ROWS, HIDDEN), lambda i: (0, 0), **resident),     # weights
        pl.BlockSpec((SMALL_ROWS, HIDDEN), lambda i: (0, 0), **resident),  # biases/w1g
    ]

    flops = 2 * B * P * D_PAD * HIDDEN + 2 * B * (
        HIDDEN * HIDDEN + GOAL_DIM * HIDDEN + HIDDEN * H2 + H2 * H3 + H3 * H4 + H4 * OUT_DIM)
    transcendentals = B * P * HIDDEN + B * (HIDDEN + H2 + H3 + H4)
    bytes_accessed = (W_ROWS * HIDDEN * 2 + SMALL_ROWS * HIDDEN * 4
                      + B * P * D_PAD * 2 + B * GOAL_DIM * 4 + B * OUT_DIM * 4)

    return pl.pallas_call(
        kernel,
        out_shape=jax.ShapeDtypeStruct((B, OUT_DIM), jnp.float32),
        grid_spec=pltpu.PrefetchScalarGridSpec(
            num_scalar_prefetch=0,
            grid=grid,
            in_specs=in_specs,
            out_specs=pl.BlockSpec((tile_b, OUT_DIM), lambda i: (i, 0)),
        ),
        compiler_params=pltpu.CompilerParams(
            dimension_semantics=("parallel",),
            vmem_limit_bytes=vmem_limit),
        cost_estimate=pl.CostEstimate(flops=flops,
                                      transcendentals=transcendentals,
                                      bytes_accessed=bytes_accessed),
    )(h0_flat, goal, w_pack, s_pack)


# ----------------------------------------------------------------- wrapper
def pointnet_forward_pallas(h0, mask, goal, w_pack, s_pack, *, tile_b=None):
    """h0: (B, P, D_IN_BLOCK0) f32, mask: (B, P) {0,1} f32, goal: (B, GOAL_DIM) f32."""
    B, P, D = h0.shape
    assert D == D_IN_BLOCK0

    # --- wrapper-side layout plumbing (free) ---
    # Pad P to a multiple of 8 by replicating the last point row + its mask value:
    # duplicates leave the masked max-pool bit-identical to the unpadded module.
    P_pad = -(-P // 8) * 8
    if P_pad != P:
        h0 = jnp.concatenate([h0, jnp.repeat(h0[:, -1:, :], P_pad - P, axis=1)], axis=1)
        mask = jnp.concatenate([mask, jnp.repeat(mask[:, -1:], P_pad - P, axis=1)], axis=1)
    # Zero-pad features to D_PAD, fold the mask into the last padded column (whose
    # w_pack row is zero), and ship as bf16 (0/1 mask is exact in bf16).
    h0f = jnp.pad(h0, ((0, 0), (0, 0), (0, D_PAD - D)))
    h0f = h0f.at[:, :, MASK_COL].set(mask)
    h0_flat = h0f.reshape(B * P_pad, D_PAD).astype(jnp.bfloat16)

    vmem_budget, vmem_limit, _row_align, use_bf16_exp = _device_profile()
    if tile_b is None:
        tile_b = _choose_tile_b(B, P_pad, vmem_budget)
    assert B % tile_b == 0, "batch must be divisible by the batch tile"

    # Defensive fallbacks for jax-version differences: (1) single-buffered resident
    # weights, (2) bf16 exp lowering.  The most conservative build always works.
    attempts = [(True, use_bf16_exp), (False, use_bf16_exp)]
    if use_bf16_exp:
        attempts.append((False, False))
    err = None
    for buffered, bf16_exp in attempts:
        try:
            return _pointnet_pallas_call(
                h0_flat, goal, w_pack, s_pack, n_points=P_pad, tile_b=tile_b,
                vmem_limit=vmem_limit, use_bf16_exp=bf16_exp, buffered_params=buffered)
        except Exception as e:  # noqa: BLE001 -- retry with a more conservative build
            err = e
    raise err


# ----------------------------------------------------------------- JAX glue (process_input)
def process_input_jax(input_indices, elem_dim, state, action):
    batch_size = state.shape[0]
    obstacles = state[:, input_indices['obstacles']]
    n_elems = obstacles[:, -1]
    obstacles = obstacles[:, :-1].reshape(batch_size, -1, elem_dim)
    n_elems_pad = obstacles.shape[1]
    mask = (jnp.arange(n_elems_pad)[None, :] < n_elems[:, None]).astype(jnp.float32)
    action = jnp.broadcast_to(action[:, None, :],
                              (batch_size, n_elems_pad, action.shape[-1]))
    goal = state[:, input_indices['goal']]
    return obstacles, goal, action, mask


# ----------------------------------------------------------------- parameters
def init_params(key):
    def lin(key, d_in, d_out, scale=0.05):
        kw, kb = jax.random.split(key)
        w = scale * jax.random.normal(kw, (d_in, d_out), jnp.float32)
        b = scale * jax.random.normal(kb, (d_out,), jnp.float32)
        return w, b

    keys = jax.random.split(key, 6)
    w0, b0 = lin(keys[0], D_IN_BLOCK0, HIDDEN)
    w1, b1 = lin(keys[1], HIDDEN + GOAL_DIM, HIDDEN)   # block1 takes cat(h, goal)
    w2, b2 = lin(keys[2], HIDDEN, H2)
    w3, b3 = lin(keys[3], H2, H3)
    w4, b4 = lin(keys[4], H3, H4)
    w5, b5 = lin(keys[5], H4, OUT_DIM)
    return (w0, b0, w1, b1, w2, b2, w3, b3, w4, b4, w5, b5)


def pack_params(params):
    """Pack into one bf16 weight slab + one small fp32 slab (2 resident DMAs total)."""
    (w0, b0, w1, b1, w2, b2, w3, b3, w4, b4, w5, b5) = params
    # The mask rides in h0 column MASK_COL; its block0 weight row must stay zero so
    # the folded mask never leaks into the matmul (guards future D_IN changes).
    assert w0.shape[0] <= MASK_COL, "mask column would alias a real block0 weight row"

    w_pack = jnp.zeros((W_ROWS, HIDDEN), jnp.float32)
    w_pack = w_pack.at[W0_OFF:W0_OFF + w0.shape[0], :].set(w0)
    w_pack = w_pack.at[W1H_OFF:W1H_OFF + HIDDEN, :].set(w1[:HIDDEN])
    w_pack = w_pack.at[W2_OFF:W2_OFF + HIDDEN, :H2].set(w2)
    w_pack = w_pack.at[W3_OFF:W3_OFF + H2, :H3].set(w3)
    w_pack = w_pack.at[W4_OFF:W4_OFF + H3, :H4].set(w4)
    w_pack = w_pack.at[W5_OFF:W5_OFF + H4, :OUT_DIM].set(w5)
    w_pack = w_pack.astype(jnp.bfloat16)

    s_pack = jnp.zeros((SMALL_ROWS, HIDDEN), jnp.float32)
    s_pack = s_pack.at[B0_ROW, :].set(b0)
    s_pack = s_pack.at[B1_ROW, :].set(b1)
    s_pack = s_pack.at[B2_ROW, :H2].set(b2)
    s_pack = s_pack.at[B3_ROW, :H3].set(b3)
    s_pack = s_pack.at[B4_ROW, :H4].set(b4)
    s_pack = s_pack.at[B5_ROW, :OUT_DIM].set(b5)
    s_pack = s_pack.at[W1G_ROW:W1G_ROW + GOAL_DIM, :].set(w1[HIDDEN:])
    return w_pack, s_pack


# ----------------------------------------------------------------- pure-JAX reference
def pointnet_reference(h0, mask, goal, params, *, use_bf16_exp):
    """Mirrors the kernel numerics: bf16 MXU inputs, fp32 accumulation, goal as fp32
    broadcast-FMAs, ELU exp in bf16 iff the kernel uses it (documented deviation from
    the fp32 torch module)."""
    (w0, b0, w1, b1, w2, b2, w3, b3, w4, b4, w5, b5) = params
    bf16 = jnp.bfloat16

    def mm(x, w):
        return jnp.dot(x.astype(bf16), w.astype(bf16),
                       preferred_element_type=jnp.float32)

    B, P, D = h0.shape
    h = elu(mm(h0.reshape(B * P, D), w0) + b0, use_bf16_exp)
    h = h.reshape(B, P, HIDDEN) * mask[..., None]
    h = jnp.max(h, axis=1)
    w1h, w1g = w1[:HIDDEN], w1[HIDDEN:]
    gh = (goal[:, 0:1] * w1g[0][None, :]
          + goal[:, 1:2] * w1g[1][None, :]
          + goal[:, 2:3] * w1g[2][None, :])
    h = elu(mm(h, w1h) + gh + b1, use_bf16_exp)
    h = elu(mm(h, w2) + b2, use_bf16_exp)
    h = elu(mm(h, w3) + b3, use_bf16_exp)
    h = elu(mm(h, w4) + b4, use_bf16_exp)
    return mm(h, w5) + b5


# ----------------------------------------------------------------- main
if __name__ == "__main__":
    BATCH       = 16
    N_ELEMS_PAD = 6    # deliberately not a multiple of 8: exercises the edge-replication pad

    key = jax.random.PRNGKey(0)
    k_state, k_action, k_elems, k_params = jax.random.split(key, 4)

    # Flat state vector layout (like the torch module's indexed input):
    #   [obstacles_flat (P*elem_dim) | n_elems (1) | goal (GOAL_DIM) | robot (CONFIG_DIM)]
    obst_flat_dim = N_ELEMS_PAD * ELEM_DIM
    input_indices = {
        'obstacles': np.arange(0, obst_flat_dim + 1),
        'goal':      np.arange(obst_flat_dim + 1, obst_flat_dim + 1 + GOAL_DIM),
        'robot':     np.arange(obst_flat_dim + 1 + GOAL_DIM,
                               obst_flat_dim + 1 + GOAL_DIM + CONFIG_DIM),
    }
    n_state = obst_flat_dim + 1 + GOAL_DIM + CONFIG_DIM

    state = jax.random.normal(k_state, (BATCH, n_state), jnp.float32)
    n_elems = jax.random.randint(k_elems, (BATCH,), 1, N_ELEMS_PAD + 1).astype(jnp.float32)
    state = state.at[:, obst_flat_dim].set(n_elems)
    action = jax.random.normal(k_action, (BATCH, Q_ACTION_DIM), jnp.float32)

    obstacles, goal, action_exp, mask = process_input_jax(
        input_indices, ELEM_DIM, state, action)
    # 'local' frame: h = cat(obstacles, action) along feature dim
    h0 = jnp.concatenate([obstacles, action_exp], axis=2)       # (B, P, 6)

    params = init_params(k_params)
    w_pack, s_pack = pack_params(params)

    out = pointnet_forward_pallas(h0, mask, goal, w_pack, s_pack)
    out = jax.block_until_ready(out)

    use_bf16_exp = _device_profile()[3]
    ref = pointnet_reference(h0, mask, goal, params, use_bf16_exp=use_bf16_exp)
    # bf16-exp ULP differences between Mosaic and XLA lowerings need a little more
    # headroom than the pure-MXU bf16 path.
    tol = 2e-2 if use_bf16_exp else 1e-3
    np.testing.assert_allclose(np.asarray(out), np.asarray(ref), rtol=tol, atol=tol)

    assert out.shape == (BATCH, OUT_DIM)
    print("KERNEL_OK")
</pallas_src>

<mosaic_0001>
module attributes {stable_mosaic.version = 11 : i64} {
  func.func @pointnet_kernel(%arg0: i32, %arg1: memref<128x16xbf16, #tpu.memory_space<vmem>>, %arg2: memref<16x3xf32, #tpu.memory_space<vmem>>, %arg3: memref<752x256xbf16, #tpu.memory_space<vmem>>, %arg4: memref<16x256xf32, #tpu.memory_space<vmem>>, %arg5: memref<16x8xf32, #tpu.memory_space<vmem>>) attributes {dimension_semantics = [#tpu.dimension_semantics<parallel>], iteration_bounds = array<i64: 1>, scalar_prefetch = 0 : i64, scratch_operands = 0 : i64, tpu.core_type = #tpu.core_type<tc>, window_params = [{transform_indices = @transform_0, window_bounds = array<i64: 128, 16>}, {transform_indices = @transform_1, window_bounds = array<i64: 16, 3>}, {pipeline_mode = #tpu.pipeline_mode<synchronous>, transform_indices = @transform_2, window_bounds = array<i64: 752, 256>}, {pipeline_mode = #tpu.pipeline_mode<synchronous>, transform_indices = @transform_3, window_bounds = array<i64: 16, 256>}, {transform_indices = @transform_4, window_bounds = array<i64: 16, 8>}]} {
    %c0 = arith.constant 0 : index
    %c0_0 = arith.constant 0 : index
    %0 = vector.load %arg1[%c0, %c0_0] : memref<128x16xbf16, #tpu.memory_space<vmem>>, vector<128x16xbf16>
    %1 = vector.extract_strided_slice %0 {offsets = [0, 15], sizes = [128, 1], strides = [1, 1]} : vector<128x16xbf16> to vector<128x1xbf16>
    %2 = arith.extf %1 : vector<128x1xbf16> to vector<128x1xf32>
    %c0_1 = arith.constant 0 : index
    %c0_2 = arith.constant 0 : index
    %3 = vector.load %arg3[%c0_1, %c0_2] : memref<752x256xbf16, #tpu.memory_space<vmem>>, vector<16x256xbf16>
    %cst = arith.constant dense<0.000000e+00> : vector<128x256xf32>
    %4 = tpu.matmul %0, %3, %cst {dimension_numbers = #tpu.dot_dimension_numbers<[1], [0], [0], [1], [0, 0, 1, 1], [], []>} : vector<128x16xbf16>, vector<16x256xbf16>, vector<128x256xf32> -> vector<128x256xf32>
    %c0_3 = arith.constant 0 : index
    %c0_4 = arith.constant 0 : index
    %5 = vector.load %arg4[%c0_3, %c0_4] : memref<16x256xf32, #tpu.memory_space<vmem>>, vector<1x256xf32>
    %6 = vector.broadcast %5 : vector<1x256xf32> to vector<128x256xf32>
    %7 = arith.addf %4, %6 : vector<128x256xf32>
    %cst_5 = arith.constant 0.000000e+00 : f32
    %8 = vector.broadcast %cst_5 : f32 to vector<128x256xf32>
    %9 = arith.minimumf %7, %8 : vector<128x256xf32>
    %10 = math.exp %9 : vector<128x256xf32>
    %cst_6 = arith.constant 0.000000e+00 : f32
    %11 = vector.broadcast %cst_6 : f32 to vector<128x256xf32>
    %12 = arith.cmpf ogt, %7, %11 : vector<128x256xf32>
    %cst_7 = arith.constant 1.000000e+00 : f32
    %13 = vector.broadcast %cst_7 : f32 to vector<128x256xf32>
    %14 = arith.subf %10, %13 : vector<128x256xf32>
    %15 = arith.select %12, %7, %14 : vector<128x256xi1>, vector<128x256xf32>
    %16 = vector.broadcast %2 : vector<128x1xf32> to vector<128x256xf32>
    %17 = arith.mulf %15, %16 : vector<128x256xf32>
    %18 = vector.shape_cast %17 : vector<128x256xf32> to vector<16x8x256xf32>
    %cst_8 = arith.constant dense<0xFF800000> : vector<16x256xf32>
    %19 = vector.multi_reduction <maximumf>, %18, %cst_8 [1] : vector<16x8x256xf32> to vector<16x256xf32>
    %c16 = arith.constant 16 : index
    %c0_9 = arith.constant 0 : index
    %20 = vector.load %arg3[%c16, %c0_9] : memref<752x256xbf16, #tpu.memory_space<vmem>>, vector<256x256xbf16>
    %21 = arith.truncf %19 : vector<16x256xf32> to vector<16x256xbf16>
    %cst_10 = arith.constant dense<0.000000e+00> : vector<16x256xf32>
    %22 = tpu.matmul %21, %20, %cst_10 {dimension_numbers = #tpu.dot_dimension_numbers<[1], [0], [0], [1], [0, 0, 1, 1], [], []>} : vector<16x256xbf16>, vector<256x256xbf16>, vector<16x256xf32> -> vector<16x256xf32>
    %c0_11 = arith.constant 0 : index
    %c0_12 = arith.constant 0 : index
    %23 = vector.load %arg2[%c0_11, %c0_12] : memref<16x3xf32, #tpu.memory_space<vmem>>, vector<16x3xf32>
    %24 = vector.extract_strided_slice %23 {offsets = [0, 0], sizes = [16, 1], strides = [1, 1]} : vector<16x3xf32> to vector<16x1xf32>
    %c8 = arith.constant 8 : index
    %c0_13 = arith.constant 0 : index
    %25 = vector.load %arg4[%c8, %c0_13] : memref<16x256xf32, #tpu.memory_space<vmem>>, vector<1x256xf32>
    %26 = vector.broadcast %24 : vector<16x1xf32> to vector<16x256xf32>
    %27 = vector.broadcast %25 : vector<1x256xf32> to vector<16x256xf32>
    %28 = arith.mulf %26, %27 : vector<16x256xf32>
    %29 = arith.addf %22, %28 : vector<16x256xf32>
    %30 = vector.extract_strided_slice %23 {offsets = [0, 1], sizes = [16, 1], strides = [1, 1]} : vector<16x3xf32> to vector<16x1xf32>
    %c9 = arith.constant 9 : index
    %c0_14 = arith.constant 0 : index
    %31 = vector.load %arg4[%c9, %c0_14] : memref<16x256xf32, #tpu.memory_space<vmem>>, vector<1x256xf32>
    %32 = vector.broadcast %30 : vector<16x1xf32> to vector<16x256xf32>
    %33 = vector.broadcast %31 : vector<1x256xf32> to vector<16x256xf32>
    %34 = arith.mulf %32, %33 : vector<16x256xf32>
    %35 = arith.addf %29, %34 : vector<16x256xf32>
    %36 = vector.extract_strided_slice %23 {offsets = [0, 2], sizes = [16, 1], strides = [1, 1]} : vector<16x3xf32> to vector<16x1xf32>
    %c10 = arith.constant 10 : index
    %c0_15 = arith.constant 0 : index
    %37 = vector.load %arg4[%c10, %c0_15] : memref<16x256xf32, #tpu.memory_space<vmem>>, vector<1x256xf32>
    %38 = vector.broadcast %36 : vector<16x1xf32> to vector<16x256xf32>
    %39 = vector.broadcast %37 : vector<1x256xf32> to vector<16x256xf32>
    %40 = arith.mulf %38, %39 : vector<16x256xf32>
    %41 = arith.addf %35, %40 : vector<16x256xf32>
    %c1 = arith.constant 1 : index
    %c0_16 = arith.constant 0 : index
    %42 = vector.load %arg4[%c1, %c0_16] : memref<16x256xf32, #tpu.memory_space<vmem>>, vector<1x256xf32>
    %43 = vector.broadcast %42 : vector<1x256xf32> to vector<16x256xf32>
    %44 = arith.addf %41, %43 : vector<16x256xf32>
    %cst_17 = arith.constant 0.000000e+00 : f32
    %45 = vector.broadcast %cst_17 : f32 to vector<16x256xf32>
    %46 = arith.minimumf %44, %45 : vector<16x256xf32>
    %47 = math.exp %46 : vector<16x256xf32>
    %cst_18 = arith.constant 0.000000e+00 : f32
    %48 = vector.broadcast %cst_18 : f32 to vector<16x256xf32>
    %49 = arith.cmpf ogt, %44, %48 : vector<16x256xf32>
    %cst_19 = arith.constant 1.000000e+00 : f32
    %50 = vector.broadcast %cst_19 : f32 to vector<16x256xf32>
    %51 = arith.subf %47, %50 : vector<16x256xf32>
    %52 = arith.select %49, %44, %51 : vector<16x256xi1>, vector<16x256xf32>
    %c272 = arith.constant 272 : index
    %c0_20 = arith.constant 0 : index
    %53 = vector.load %arg3[%c272, %c0_20] : memref<752x256xbf16, #tpu.memory_space<vmem>>, vector<256x128xbf16>
    %54 = arith.truncf %52 : vector<16x256xf32> to vector<16x256xbf16>
    %cst_21 = arith.constant dense<0.000000e+00> : vector<16x128xf32>
    %55 = tpu.matmul %54, %53, %cst_21 {dimension_numbers = #tpu.dot_dimension_numbers<[1], [0], [0], [1], [0, 0, 1, 1], [], []>} : vector<16x256xbf16>, vector<256x128xbf16>, vector<16x128xf32> -> vector<16x128xf32>
    %c2 = arith.constant 2 : index
    %c0_22 = arith.constant 0 : index
    %56 = vector.load %arg4[%c2, %c0_22] : memref<16x256xf32, #tpu.memory_space<vmem>>, vector<1x128xf32>
    %57 = vector.broadcast %56 : vector<1x128xf32> to vector<16x128xf32>
    %58 = arith.addf %55, %57 : vector<16x128xf32>
    %cst_23 = arith.constant 0.000000e+00 : f32
    %59 = vector.broadcast %cst_23 : f32 to vector<16x128xf32>
    %60 = arith.minimumf %58, %59 : vector<16x128xf32>
    %61 = math.exp %60 : vector<16x128xf32>
    %cst_24 = arith.constant 0.000000e+00 : f32
    %62 = vector.broadcast %cst_24 : f32 to vector<16x128xf32>
    %63 = arith.cmpf ogt, %58, %62 : vector<16x128xf32>
    %cst_25 = arith.constant 1.000000e+00 : f32
    %64 = vector.broadcast %cst_25 : f32 to vector<16x128xf32>
    %65 = arith.subf %61, %64 : vector<16x128xf32>
    %66 = arith.select %63, %58, %65 : vector<16x128xi1>, vector<16x128xf32>
    %c528 = arith.constant 528 : index
    %c0_26 = arith.constant 0 : index
    %67 = vector.load %arg3[%c528, %c0_26] : memref<752x256xbf16, #tpu.memory_space<vmem>>, vector<128x64xbf16>
    %68 = arith.truncf %66 : vector<16x128xf32> to vector<16x128xbf16>
    %cst_27 = arith.constant dense<0.000000e+00> : vector<16x64xf32>
    %69 = tpu.matmul %68, %67, %cst_27 {dimension_numbers = #tpu.dot_dimension_numbers<[1], [0], [0], [1], [0, 0, 1, 1], [], []>} : vector<16x128xbf16>, vector<128x64xbf16>, vector<16x64xf32> -> vector<16x64xf32>
    %c3 = arith.constant 3 : index
    %c0_28 = arith.constant 0 : index
    %70 = vector.load %arg4[%c3, %c0_28] : memref<16x256xf32, #tpu.memory_space<vmem>>, vector<1x64xf32>
    %71 = vector.broadcast %70 : vector<1x64xf32> to vector<16x64xf32>
    %72 = arith.addf %69, %71 : vector<16x64xf32>
    %cst_29 = arith.constant 0.000000e+00 : f32
    %73 = vector.broadcast %cst_29 : f32 to vector<16x64xf32>
    %74 = arith.minimumf %72, %73 : vector<16x64xf32>
    %75 = math.exp %74 : vector<16x64xf32>
    %cst_30 = arith.constant 0.000000e+00 : f32
    %76 = vector.broadcast %cst_30 : f32 to vector<16x64xf32>
    %77 = arith.cmpf ogt, %72, %76 : vector<16x64xf32>
    %cst_31 = arith.constant 1.000000e+00 : f32
    %78 = vector.broadcast %cst_31 : f32 to vector<16x64xf32>
    %79 = arith.subf %75, %78 : vector<16x64xf32>
    %80 = arith.select %77, %72, %79 : vector<16x64xi1>, vector<16x64xf32>
    %c656 = arith.constant 656 : index
    %c0_32 = arith.constant 0 : index
    %81 = vector.load %arg3[%c656, %c0_32] : memref<752x256xbf16, #tpu.memory_space<vmem>>, vector<64x32xbf16>
    %82 = arith.truncf %80 : vector<16x64xf32> to vector<16x64xbf16>
    %cst_33 = arith.constant dense<0.000000e+00> : vector<16x32xf32>
    %83 = tpu.matmul %82, %81, %cst_33 {dimension_numbers = #tpu.dot_dimension_numbers<[1], [0], [0], [1], [0, 0, 1, 1], [], []>} : vector<16x64xbf16>, vector<64x32xbf16>, vector<16x32xf32> -> vector<16x32xf32>
    %c4 = arith.constant 4 : index
    %c0_34 = arith.constant 0 : index
    %84 = vector.load %arg4[%c4, %c0_34] : memref<16x256xf32, #tpu.memory_space<vmem>>, vector<1x32xf32>
    %85 = vector.broadcast %84 : vector<1x32xf32> to vector<16x32xf32>
    %86 = arith.addf %83, %85 : vector<16x32xf32>
    %cst_35 = arith.constant 0.000000e+00 : f32
    %87 = vector.broadcast %cst_35 : f32 to vector<16x32xf32>
    %88 = arith.minimumf %86, %87 : vector<16x32xf32>
    %89 = math.exp %88 : vector<16x32xf32>
    %cst_36 = arith.constant 0.000000e+00 : f32
    %90 = vector.broadcast %cst_36 : f32 to vector<16x32xf32>
    %91 = arith.cmpf ogt, %86, %90 : vector<16x32xf32>
    %cst_37 = arith.constant 1.000000e+00 : f32
    %92 = vector.broadcast %cst_37 : f32 to vector<16x32xf32>
    %93 = arith.subf %89, %92 : vector<16x32xf32>
    %94 = arith.select %91, %86, %93 : vector<16x32xi1>, vector<16x32xf32>
    %c720 = arith.constant 720 : index
    %c0_38 = arith.constant 0 : index
    %95 = vector.load %arg3[%c720, %c0_38] : memref<752x256xbf16, #tpu.memory_space<vmem>>, vector<32x8xbf16>
    %96 = arith.truncf %94 : vector<16x32xf32> to vector<16x32xbf16>
    %cst_39 = arith.constant dense<0.000000e+00> : vector<16x8xf32>
    %97 = tpu.matmul %96, %95, %cst_39 {dimension_numbers = #tpu.dot_dimension_numbers<[1], [0], [0], [1], [0, 0, 1, 1], [], []>} : vector<16x32xbf16>, vector<32x8xbf16>, vector<16x8xf32> -> vector<16x8xf32>
    %c5 = arith.constant 5 : index
    %c0_40 = arith.constant 0 : index
    %98 = vector.load %arg4[%c5, %c0_40] : memref<16x256xf32, #tpu.memory_space<vmem>>, vector<1x8xf32>
    %99 = vector.broadcast %98 : vector<1x8xf32> to vector<16x8xf32>
    %100 = arith.addf %97, %99 : vector<16x8xf32>
    %c0_41 = arith.constant 0 : index
    %c0_42 = arith.constant 0 : index
    %101 = vector.load %arg5[%c0_41, %c0_42] : memref<16x8xf32, #tpu.memory_space<vmem>>, vector<16x8xf32>
    tpu.vector_store %arg5[%c0_41, %c0_42], %100 {strides = array<i32>} : memref<16x8xf32, #tpu.memory_space<vmem>>, vector<16x8xf32>,
    return
  }
  func.func @transform_0(%arg0: i32) -> (i32, i32) {
    %c0_i32 = arith.constant 0 : i32
    %c0_i32_0 = arith.constant 0 : i32
    return %arg0, %c0_i32 : i32, i32
  }
  func.func @transform_1(%arg0: i32) -> (i32, i32) {
    %c0_i32 = arith.constant 0 : i32
    %c0_i32_0 = arith.constant 0 : i32
    return %arg0, %c0_i32 : i32, i32
  }
  func.func @transform_2(%arg0: i32) -> (i32, i32) {
    %c0_i32 = arith.constant 0 : i32
    %c0_i32_0 = arith.constant 0 : i32
    %c0_i32_1 = arith.constant 0 : i32
    return %c0_i32, %c0_i32_0 : i32, i32
  }
  func.func @transform_3(%arg0: i32) -> (i32, i32) {
    %c0_i32 = arith.constant 0 : i32
    %c0_i32_0 = arith.constant 0 : i32
    %c0_i32_1 = arith.constant 0 : i32
    return %c0_i32, %c0_i32_0 : i32, i32
  }
  func.func @transform_4(%arg0: i32) -> (i32, i32) {
    %c0_i32 = arith.constant 0 : i32
    %c0_i32_0 = arith.constant 0 : i32
    return %arg0, %c0_i32 : i32, i32
  }
}

module attributes {stable_mosaic.version = 11 : i64} {
  func.func @pointnet_kernel(%arg0: i32, %arg1: memref<128x16xbf16, #tpu.memory_space<vmem>>, %arg2: memref<16x3xf32, #tpu.memory_space<vmem>>, %arg3: memref<752x256xbf16, #tpu.memory_space<vmem>>, %arg4: memref<16x256xf32, #tpu.memory_space<vmem>>, %arg5: memref<16x8xf32, #tpu.memory_space<vmem>>) attributes {dimension_semantics = [#tpu.dimension_semantics<parallel>], iteration_bounds = array<i64: 1>, scalar_prefetch = 0 : i64, scratch_operands = 0 : i64, tpu.core_type = #tpu.core_type<tc>, window_params = [{transform_indices = @transform_0, window_bounds = array<i64: 128, 16>}, {transform_indices = @transform_1, window_bounds = array<i64: 16, 3>}, {pipeline_mode = #tpu.pipeline_mode<synchronous>, transform_indices = @transform_2, window_bounds = array<i64: 752, 256>}, {pipeline_mode = #tpu.pipeline_mode<synchronous>, transform_indices = @transform_3, window_bounds = array<i64: 16, 256>}, {transform_indices = @transform_4, window_bounds = array<i64: 16, 8>}]} {
    %c0 = arith.constant 0 : index
    %c0_0 = arith.constant 0 : index
    %0 = vector.load %arg1[%c0, %c0_0] : memref<128x16xbf16, #tpu.memory_space<vmem>>, vector<128x16xbf16>
    %1 = vector.extract_strided_slice %0 {offsets = [0, 15], sizes = [128, 1], strides = [1, 1]} : vector<128x16xbf16> to vector<128x1xbf16>
    %2 = arith.extf %1 : vector<128x1xbf16> to vector<128x1xf32>
    %c0_1 = arith.constant 0 : index
    %c0_2 = arith.constant 0 : index
    %3 = vector.load %arg3[%c0_1, %c0_2] : memref<752x256xbf16, #tpu.memory_space<vmem>>, vector<16x256xbf16>
    %cst = arith.constant dense<0.000000e+00> : vector<128x256xf32>
    %4 = tpu.matmul %0, %3, %cst {dimension_numbers = #tpu.dot_dimension_numbers<[1], [0], [0], [1], [0, 0, 1, 1], [], []>} : vector<128x16xbf16>, vector<16x256xbf16>, vector<128x256xf32> -> vector<128x256xf32>
    %c0_3 = arith.constant 0 : index
    %c0_4 = arith.constant 0 : index
    %5 = vector.load %arg4[%c0_3, %c0_4] : memref<16x256xf32, #tpu.memory_space<vmem>>, vector<1x256xf32>
    %6 = vector.broadcast %5 : vector<1x256xf32> to vector<128x256xf32>
    %7 = arith.addf %4, %6 : vector<128x256xf32>
    %cst_5 = arith.constant 0.000000e+00 : f32
    %8 = vector.broadcast %cst_5 : f32 to vector<128x256xf32>
    %9 = arith.minimumf %7, %8 : vector<128x256xf32>
    %10 = math.exp %9 : vector<128x256xf32>
    %cst_6 = arith.constant 0.000000e+00 : f32
    %11 = vector.broadcast %cst_6 : f32 to vector<128x256xf32>
    %12 = arith.cmpf ogt, %7, %11 : vector<128x256xf32>
    %cst_7 = arith.constant 1.000000e+00 : f32
    %13 = vector.broadcast %cst_7 : f32 to vector<128x256xf32>
    %14 = arith.subf %10, %13 : vector<128x256xf32>
    %15 = arith.select %12, %7, %14 : vector<128x256xi1>, vector<128x256xf32>
    %16 = vector.broadcast %2 : vector<128x1xf32> to vector<128x256xf32>
    %17 = arith.mulf %15, %16 : vector<128x256xf32>
    %18 = vector.shape_cast %17 : vector<128x256xf32> to vector<16x8x256xf32>
    %cst_8 = arith.constant dense<0xFF800000> : vector<16x256xf32>
    %19 = vector.multi_reduction <maximumf>, %18, %cst_8 [1] : vector<16x8x256xf32> to vector<16x256xf32>
    %c16 = arith.constant 16 : index
    %c0_9 = arith.constant 0 : index
    %20 = vector.load %arg3[%c16, %c0_9] : memref<752x256xbf16, #tpu.memory_space<vmem>>, vector<256x256xbf16>
    %21 = arith.truncf %19 : vector<16x256xf32> to vector<16x256xbf16>
    %cst_10 = arith.constant dense<0.000000e+00> : vector<16x256xf32>
    %22 = tpu.matmul %21, %20, %cst_10 {dimension_numbers = #tpu.dot_dimension_numbers<[1], [0], [0], [1], [0, 0, 1, 1], [], []>} : vector<16x256xbf16>, vector<256x256xbf16>, vector<16x256xf32> -> vector<16x256xf32>
    %c0_11 = arith.constant 0 : index
    %c0_12 = arith.constant 0 : index
    %23 = vector.load %arg2[%c0_11, %c0_12] : memref<16x3xf32, #tpu.memory_space<vmem>>, vector<16x3xf32>
    %24 = vector.extract_strided_slice %23 {offsets = [0, 0], sizes = [16, 1], strides = [1, 1]} : vector<16x3xf32> to vector<16x1xf32>
    %c8 = arith.constant 8 : index
    %c0_13 = arith.constant 0 : index
    %25 = vector.load %arg4[%c8, %c0_13] : memref<16x256xf32, #tpu.memory_space<vmem>>, vector<1x256xf32>
    %26 = vector.broadcast %24 : vector<16x1xf32> to vector<16x256xf32>
    %27 = vector.broadcast %25 : vector<1x256xf32> to vector<16x256xf32>
    %28 = arith.mulf %26, %27 : vector<16x256xf32>
    %29 = arith.addf %22, %28 : vector<16x256xf32>
    %30 = vector.extract_strided_slice %23 {offsets = [0, 1], sizes = [16, 1], strides = [1, 1]} : vector<16x3xf32> to vector<16x1xf32>
    %c9 = arith.constant 9 : index
    %c0_14 = arith.constant 0 : index
    %31 = vector.load %arg4[%c9, %c0_14] : memref<16x256xf32, #tpu.memory_space<vmem>>, vector<1x256xf32>
    %32 = vector.broadcast %30 : vector<16x1xf32> to vector<16x256xf32>
    %33 = vector.broadcast %31 : vector<1x256xf32> to vector<16x256xf32>
    %34 = arith.mulf %32, %33 : vector<16x256xf32>
    %35 = arith.addf %29, %34 : vector<16x256xf32>
    %36 = vector.extract_strided_slice %23 {offsets = [0, 2], sizes = [16, 1], strides = [1, 1]} : vector<16x3xf32> to vector<16x1xf32>
    %c10 = arith.constant 10 : index
    %c0_15 = arith.constant 0 : index
    %37 = vector.load %arg4[%c10, %c0_15] : memref<16x256xf32, #tpu.memory_space<vmem>>, vector<1x256xf32>
    %38 = vector.broadcast %36 : vector<16x1xf32> to vector<16x256xf32>
    %39 = vector.broadcast %37 : vector<1x256xf32> to vector<16x256xf32>
    %40 = arith.mulf %38, %39 : vector<16x256xf32>
    %41 = arith.addf %35, %40 : vector<16x256xf32>
    %c1 = arith.constant 1 : index
    %c0_16 = arith.constant 0 : index
    %42 = vector.load %arg4[%c1, %c0_16] : memref<16x256xf32, #tpu.memory_space<vmem>>, vector<1x256xf32>
    %43 = vector.broadcast %42 : vector<1x256xf32> to vector<16x256xf32>
    %44 = arith.addf %41, %43 : vector<16x256xf32>
    %cst_17 = arith.constant 0.000000e+00 : f32
    %45 = vector.broadcast %cst_17 : f32 to vector<16x256xf32>
    %46 = arith.minimumf %44, %45 : vector<16x256xf32>
    %47 = math.exp %46 : vector<16x256xf32>
    %cst_18 = arith.constant 0.000000e+00 : f32
    %48 = vector.broadcast %cst_18 : f32 to vector<16x256xf32>
    %49 = arith.cmpf ogt, %44, %48 : vector<16x256xf32>
    %cst_19 = arith.constant 1.000000e+00 : f32
    %50 = vector.broadcast %cst_19 : f32 to vector<16x256xf32>
    %51 = arith.subf %47, %50 : vector<16x256xf32>
    %52 = arith.select %49, %44, %51 : vector<16x256xi1>, vector<16x256xf32>
    %c272 = arith.constant 272 : index
    %c0_20 = arith.constant 0 : index
    %53 = vector.load %arg3[%c272, %c0_20] : memref<752x256xbf16, #tpu.memory_space<vmem>>, vector<256x128xbf16>
    %54 = arith.truncf %52 : vector<16x256xf32> to vector<16x256xbf16>
    %cst_21 = arith.constant dense<0.000000e+00> : vector<16x128xf32>
    %55 = tpu.matmul %54, %53, %cst_21 {dimension_numbers = #tpu.dot_dimension_numbers<[1], [0], [0], [1], [0, 0, 1, 1], [], []>} : vector<16x256xbf16>, vector<256x128xbf16>, vector<16x128xf32> -> vector<16x128xf32>
    %c2 = arith.constant 2 : index
    %c0_22 = arith.constant 0 : index
    %56 = vector.load %arg4[%c2, %c0_22] : memref<16x256xf32, #tpu.memory_space<vmem>>, vector<1x128xf32>
    %57 = vector.broadcast %56 : vector<1x128xf32> to vector<16x128xf32>
    %58 = arith.addf %55, %57 : vector<16x128xf32>
    %cst_23 = arith.constant 0.000000e+00 : f32
    %59 = vector.broadcast %cst_23 : f32 to vector<16x128xf32>
    %60 = arith.minimumf %58, %59 : vector<16x128xf32>
    %61 = math.exp %60 : vector<16x128xf32>
    %cst_24 = arith.constant 0.000000e+00 : f32
    %62 = vector.broadcast %cst_24 : f32 to vector<16x128xf32>
    %63 = arith.cmpf ogt, %58, %62 : vector<16x128xf32>
    %cst_25 = arith.constant 1.000000e+00 : f32
    %64 = vector.broadcast %cst_25 : f32 to vector<16x128xf32>
    %65 = arith.subf %61, %64 : vector<16x128xf32>
    %66 = arith.select %63, %58, %65 : vector<16x128xi1>, vector<16x128xf32>
    %c528 = arith.constant 528 : index
    %c0_26 = arith.constant 0 : index
    %67 = vector.load %arg3[%c528, %c0_26] : memref<752x256xbf16, #tpu.memory_space<vmem>>, vector<128x64xbf16>
    %68 = arith.truncf %66 : vector<16x128xf32> to vector<16x128xbf16>
    %cst_27 = arith.constant dense<0.000000e+00> : vector<16x64xf32>
    %69 = tpu.matmul %68, %67, %cst_27 {dimension_numbers = #tpu.dot_dimension_numbers<[1], [0], [0], [1], [0, 0, 1, 1], [], []>} : vector<16x128xbf16>, vector<128x64xbf16>, vector<16x64xf32> -> vector<16x64xf32>
    %c3 = arith.constant 3 : index
    %c0_28 = arith.constant 0 : index
    %70 = vector.load %arg4[%c3, %c0_28] : memref<16x256xf32, #tpu.memory_space<vmem>>, vector<1x64xf32>
    %71 = vector.broadcast %70 : vector<1x64xf32> to vector<16x64xf32>
    %72 = arith.addf %69, %71 : vector<16x64xf32>
    %cst_29 = arith.constant 0.000000e+00 : f32
    %73 = vector.broadcast %cst_29 : f32 to vector<16x64xf32>
    %74 = arith.minimumf %72, %73 : vector<16x64xf32>
    %75 = math.exp %74 : vector<16x64xf32>
    %cst_30 = arith.constant 0.000000e+00 : f32
    %76 = vector.broadcast %cst_30 : f32 to vector<16x64xf32>
    %77 = arith.cmpf ogt, %72, %76 : vector<16x64xf32>
    %cst_31 = arith.constant 1.000000e+00 : f32
    %78 = vector.broadcast %cst_31 : f32 to vector<16x64xf32>
    %79 = arith.subf %75, %78 : vector<16x64xf32>
    %80 = arith.select %77, %72, %79 : vector<16x64xi1>, vector<16x64xf32>
    %c656 = arith.constant 656 : index
    %c0_32 = arith.constant 0 : index
    %81 = vector.load %arg3[%c656, %c0_32] : memref<752x256xbf16, #tpu.memory_space<vmem>>, vector<64x32xbf16>
    %82 = arith.truncf %80 : vector<16x64xf32> to vector<16x64xbf16>
    %cst_33 = arith.constant dense<0.000000e+00> : vector<16x32xf32>
    %83 = tpu.matmul %82, %81, %cst_33 {dimension_numbers = #tpu.dot_dimension_numbers<[1], [0], [0], [1], [0, 0, 1, 1], [], []>} : vector<16x64xbf16>, vector<64x32xbf16>, vector<16x32xf32> -> vector<16x32xf32>
    %c4 = arith.constant 4 : index
    %c0_34 = arith.constant 0 : index
    %84 = vector.load %arg4[%c4, %c0_34] : memref<16x256xf32, #tpu.memory_space<vmem>>, vector<1x32xf32>
    %85 = vector.broadcast %84 : vector<1x32xf32> to vector<16x32xf32>
    %86 = arith.addf %83, %85 : vector<16x32xf32>
    %cst_35 = arith.constant 0.000000e+00 : f32
    %87 = vector.broadcast %cst_35 : f32 to vector<16x32xf32>
    %88 = arith.minimumf %86, %87 : vector<16x32xf32>
    %89 = math.exp %88 : vector<16x32xf32>
    %cst_36 = arith.constant 0.000000e+00 : f32
    %90 = vector.broadcast %cst_36 : f32 to vector<16x32xf32>
    %91 = arith.cmpf ogt, %86, %90 : vector<16x32xf32>
    %cst_37 = arith.constant 1.000000e+00 : f32
    %92 = vector.broadcast %cst_37 : f32 to vector<16x32xf32>
    %93 = arith.subf %89, %92 : vector<16x32xf32>
    %94 = arith.select %91, %86, %93 : vector<16x32xi1>, vector<16x32xf32>
    %c720 = arith.constant 720 : index
    %c0_38 = arith.constant 0 : index
    %95 = vector.load %arg3[%c720, %c0_38] : memref<752x256xbf16, #tpu.memory_space<vmem>>, vector<32x8xbf16>
    %96 = arith.truncf %94 : vector<16x32xf32> to vector<16x32xbf16>
    %cst_39 = arith.constant dense<0.000000e+00> : vector<16x8xf32>
    %97 = tpu.matmul %96, %95, %cst_39 {dimension_numbers = #tpu.dot_dimension_numbers<[1], [0], [0], [1], [0, 0, 1, 1], [], []>} : vector<16x32xbf16>, vector<32x8xbf16>, vector<16x8xf32> -> vector<16x8xf32>
    %c5 = arith.constant 5 : index
    %c0_40 = arith.constant 0 : index
    %98 = vector.load %arg4[%c5, %c0_40] : memref<16x256xf32, #tpu.memory_space<vmem>>, vector<1x8xf32>
    %99 = vector.broadcast %98 : vector<1x8xf32> to vector<16x8xf32>
    %100 = arith.addf %97, %99 : vector<16x8xf32>
    %c0_41 = arith.constant 0 : index
    %c0_42 = arith.constant 0 : index
    %101 = vector.load %arg5[%c0_41, %c0_42] : memref<16x8xf32, #tpu.memory_space<vmem>>, vector<16x8xf32>
    tpu.vector_store %arg5[%c0_41, %c0_42], %100 {strides = array<i32>} : memref<16x8xf32, #tpu.memory_space<vmem>>, vector<16x8xf32>,
    return
  }
  func.func @transform_0(%arg0: i32) -> (i32, i32) {
    %c0_i32 = arith.constant 0 : i32
    %c0_i32_0 = arith.constant 0 : i32
    return %arg0, %c0_i32 : i32, i32
  }
  func.func @transform_1(%arg0: i32) -> (i32, i32) {
    %c0_i32 = arith.constant 0 : i32
    %c0_i32_0 = arith.constant 0 : i32
    return %arg0, %c0_i32 : i32, i32
  }
  func.func @transform_2(%arg0: i32) -> (i32, i32) {
    %c0_i32 = arith.constant 0 : i32
    %c0_i32_0 = arith.constant 0 : i32
    %c0_i32_1 = arith.constant 0 : i32
    return %c0_i32, %c0_i32_0 : i32, i32
  }
  func.func @transform_3(%arg0: i32) -> (i32, i32) {
    %c0_i32 = arith.constant 0 : i32
    %c0_i32_0 = arith.constant 0 : i32
    %c0_i32_1 = arith.constant 0 : i32
    return %c0_i32, %c0_i32_0 : i32, i32
  }
  func.func @transform_4(%arg0: i32) -> (i32, i32) {
    %c0_i32 = arith.constant 0 : i32
    %c0_i32_0 = arith.constant 0 : i32
    return %arg0, %c0_i32 : i32, i32
  }
}

</mosaic_0001>

<llo_original>
// kernel: tpu_custom_call.1
$region0: #{tpu_custom_call.1}
  #allocation0 [shape = 'u32[]', space=smem, size = 0x4, offset = 0x4, fixed_abs, tag = 'smem constant byte address 0x4 - core index']
  #allocation1 [shape = 'u32[144,128]{1,0:T(1,128)}', space=vmem, size = 0x12000, scoped, tag = 'internal scratch']
  %s0 = inlined_call_operand.vmem [shape: bf16[128,16], index: 0, kind: input, shape index: {}]
  %s1 = inlined_call_operand.vmem [shape: f32[16,3], index: 1, kind: input, shape index: {}]
  %s2 = inlined_call_operand.hbm [shape: bf16[752,256], index: 2, kind: input, shape index: {}]
  %s3 = inlined_call_operand.vmem [shape: f32[16,256], index: 3, kind: input, shape index: {}]
  %s4 = inlined_call_operand.vmem [shape: f32[16,8], index: 4, kind: output, shape index: {}]
  %s5 = sld [smem:[#allocation0]]
  $region30: #{tpu_custom_call.1} parent=0
    _
  %s7 = ssub.s32 1, %s5
  %s8 = scalar_select 0, %s7, %s5
  $region1: #{tpu_custom_call.1} parent=0
    #allocation2 [shape = 'u8[385024]{0}', space=vmem, size = 0x5e000, scoped, tag = 'input window, operand 2, single buffered']
    #allocation3 [shape = 's32[1]{0}', space=sflag, size = 0x4, scoped, tag = 'scoped memory for tpu_custom_call.1']
    %9 = vsyncpa [#allocation3], 0
    // Predicated region
    $region2: #{tpu_custom_call.1} parent=1 // pred_check
      _
    $region3: #{tpu_custom_call.1} parent=1 // pred_check_branch
      %11 = sbr.rel (0) target = $region5
    $region4: #{tpu_custom_call.1} parent=1 // pred_region
      _
    $region5: #{tpu_custom_call.1} parent=1 // pred_fallthru
      _
    // Predicated region
    $region6: #{tpu_custom_call.1} parent=1 // pred_check
      _
    $region7: #{tpu_custom_call.1} parent=1 // pred_check_branch
      %13 = sbr.rel (0) target = $region9
    $region8: #{tpu_custom_call.1} parent=1 // pred_region
      _
    $region9: #{tpu_custom_call.1} parent=1 // pred_fallthru
      _
    // Predicated region
    $region10: #{tpu_custom_call.1} parent=1 // pred_check
      _
    $region11: #{tpu_custom_call.1} parent=1 // pred_check_branch
      %15 = sbr.rel (0) target = $region13
    $region12: #{tpu_custom_call.1} parent=1 // pred_region
      %s17 = ssub.s32 12032, 12032
      %18 = vsyncadd [#allocation3], %s17
      %s19 = sshll.u32 [#allocation2], 4
      %s20 = int_to_ptr.vmem [resolvable:$true] %s19
      %25 = dma.hbm_to_vmem [thread:$0]  %s2, 12032, %s20, [#allocation3], 128, 128, 8
    $region13: #{tpu_custom_call.1} parent=1 // pred_fallthru
      _
    // Predicated region
    $region14: #{tpu_custom_call.1} parent=1 // pred_check
      _
    $region15: #{tpu_custom_call.1} parent=1 // pred_check_branch
      %27 = sbr.rel (0) target = $region17
    $region16: #{tpu_custom_call.1} parent=1 // pred_region
      _
    $region17: #{tpu_custom_call.1} parent=1 // pred_fallthru
      _
    // Predicated region
    $region18: #{tpu_custom_call.1} parent=1 // pred_check
      _
    $region19: #{tpu_custom_call.1} parent=1 // pred_check_branch
      %29 = sbr.rel (0) target = $region21
    $region20: #{tpu_custom_call.1} parent=1 // pred_region
      %30 = dma.done [#allocation3], 12032
    $region21: #{tpu_custom_call.1} parent=1 // pred_fallthru
      _
    %v32 = vld [vmem:[%s0] sm:$0xf]
    %v33 = vld [vmem:[%s0 + $0x4] sm:$0xf]
    %v34 = vld [vmem:[%s0 + $0x8] sm:$0xf]
    %v35 = vld [vmem:[%s0 + $0xc] sm:$0xf]
    %v36 = vld [vmem:[%s0 + $0x10] sm:$0xf]
    %v37 = vld [vmem:[%s0 + $0x14] sm:$0xf]
    %v38 = vld [vmem:[%s0 + $0x18] sm:$0xf]
    %v39 = vld [vmem:[%s0 + $0x1c] sm:$0xf]
    %v40 = vld [vmem:[%s0 + $0x20] sm:$0xf]
    %v41 = vld [vmem:[%s0 + $0x24] sm:$0xf]
    %v42 = vld [vmem:[%s0 + $0x28] sm:$0xf]
    %v43 = vld [vmem:[%s0 + $0x2c] sm:$0xf]
    %v44 = vld [vmem:[%s0 + $0x30] sm:$0xf]
    %v45 = vld [vmem:[%s0 + $0x34] sm:$0xf]
    %v46 = vld [vmem:[%s0 + $0x38] sm:$0xf]
    %v47 = vld [vmem:[%s0 + $0x3c] sm:$0xf]
    %v48 = vunpack.c.l.bf16 %v32
    %v49 = vunpack.c.l.bf16 %v33
    %v50 = vunpack.c.l.bf16 %v34
    %v51 = vunpack.c.l.bf16 %v35
    %v52 = vunpack.c.l.bf16 %v36
    %v53 = vunpack.c.l.bf16 %v37
    %v54 = vunpack.c.l.bf16 %v38
    %v55 = vunpack.c.l.bf16 %v39
    %v56 = vunpack.c.l.bf16 %v40
    %v57 = vunpack.c.l.bf16 %v41
    %v58 = vunpack.c.l.bf16 %v42
    %v59 = vunpack.c.l.bf16 %v43
    %v60 = vunpack.c.l.bf16 %v44
    %v61 = vunpack.c.l.bf16 %v45
    %v62 = vunpack.c.l.bf16 %v46
    %v63 = vunpack.c.l.bf16 %v47
    %v64 = vld [vmem:[#allocation2] sm:$0xff]
    %v65 = vld [vmem:[#allocation2 + $0x8] sm:$0xff]
    %v66 = vld [vmem:[%s3] ss:$8 sm:$0x3]
    %v68 = vlaneseq
    %v69 = vshrl.u32 %v68, 7
    %v70 = vsub.s32 0, %v69
    %v71 = vrot.slane %v66, %v70
    %v72 = vlaneseq
    %v73 = vshrl.u32 %v72, 7
    %v74 = vsub.s32 1, %v73
    %v75 = vrot.slane %v66, %v74
    %v94 = vunpack.c.l.b16 %v32
    %v95 = vunpack.c.l.b16 %v33
    %v96 = vunpack.c.l.b16 %v34
    %v97 = vunpack.c.l.b16 %v35
    %v98 = vunpack.c.l.b16 %v36
    %v99 = vunpack.c.l.b16 %v37
    %v100 = vunpack.c.l.b16 %v38
    %v101 = vunpack.c.l.b16 %v39
    %v102 = vunpack.c.l.b16 %v40
    %v103 = vunpack.c.l.b16 %v41
    %v104 = vunpack.c.l.b16 %v42
    %v105 = vunpack.c.l.b16 %v43
    %v106 = vunpack.c.l.b16 %v44
    %v107 = vunpack.c.l.b16 %v45
    %v108 = vunpack.c.l.b16 %v46
    %v109 = vunpack.c.l.b16 %v47
    %v110 = vpack.c.b16 %v95, %v94
    %v111 = vpack.c.b16 %v97, %v96
    %v112 = vpack.c.b16 %v99, %v98
    %v113 = vpack.c.b16 %v101, %v100
    %v114 = vpack.c.b16 %v103, %v102
    %v115 = vpack.c.b16 %v105, %v104
    %v116 = vpack.c.b16 %v107, %v106
    %v117 = vpack.c.b16 %v109, %v108
    %v120 = vunpack.c.l.b16 %v64
    %v121 = vunpack.c.h.b16 %v64
    %v122 = vunpack.c.l.b16 %v65
    %v123 = vunpack.c.h.b16 %v65
    %v124 = vpack.c.b16 %v122, %v120
    %v125 = vpack.c.b16 %v123, %v121
    %vm128 = vcmask 130048
    %v130 = vsel %vm128, %v110, 0
    %v133 = vsel %vm128, %v111, 0
    %v136 = vsel %vm128, %v112, 0
    %v139 = vsel %vm128, %v113, 0
    %v142 = vsel %vm128, %v114, 0
    %v145 = vsel %vm128, %v115, 0
    %v148 = vsel %vm128, %v116, 0
    %v151 = vsel %vm128, %v117, 0
    %153 = vmatprep.subr.bf16.mxu0 0
    %154 = vmatpush1.bf16.msra.mxu0 0
    %155 = vmatprep.subr.bf16.mxu0 0
    %156 = vmatpush1.bf16.msra.mxu0 0
    %157 = vmatprep.subr.bf16.mxu0 0
    %158 = vmatpush1.bf16.msra.mxu0 0
    %159 = vmatprep.subr.bf16.mxu0 0
    %160 = vmatpush1.bf16.msra.mxu0 0
    %161 = vmatprep.subr.bf16.mxu0 0
    %162 = vmatpush1.bf16.msra.mxu0 0
    %163 = vmatprep.subr.bf16.mxu0 0
    %164 = vmatpush1.bf16.msra.mxu0 0
    %165 = vmatprep.subr.bf16.mxu0 0
    %166 = vmatpush1.bf16.msra.mxu0 0
    %167 = vmatprep.subr.bf16.mxu0 %v125
    %168 = vmatpush1.bf16.msra.mxu0 %v124
    %169 = vmatprep.subr.bf16.mxu0 0
    %170 = vmatpush2.bf16.msra.mxu0 0
    %171 = vmatprep.subr.bf16.mxu0 0
    %172 = vmatpush2.bf16.msra.mxu0 0
    %173 = vmatprep.subr.bf16.mxu0 0
    %174 = vmatpush2.bf16.msra.mxu0 0
    %175 = vmatprep.subr.bf16.mxu0 0
    %176 = vmatpush2.bf16.msra.mxu0 0
    %177 = vmatprep.subr.bf16.mxu0 0
    %178 = vmatpush2.bf16.msra.mxu0 0
    %179 = vmatprep.subr.bf16.mxu0 0
    %180 = vmatpush2.bf16.msra.mxu0 0
    %181 = vmatprep.subr.bf16.mxu0 0
    %182 = vmatpush2.bf16.msra.mxu0 0
    %183 = vmatprep.subr.bf16.mxu0 0
    %184 = vmatpush2.bf16.msra.mxu0 0
    %185 = vmatprep.mubr.bf16.mxu0 0
    %186 = vmatmul.mubr.bf16.gmra.mxu0 %v130
    %v187 = vpop.f32.mrf.mxu0
    %v188 = vadd.f32 %v71, %v187
    %v189 = vpop.f32.mrf.mxu0
    %v190 = vadd.f32 %v75, %v189
    %v191 = vpop.f32.mrf.mxu0
    %v192 = vadd.f32 %v71, %v191
    %v193 = vpop.f32.mrf.mxu0
    %v194 = vadd.f32 %v75, %v193
    %195 = vmatprep.mubr.bf16.mxu0 0
    %196 = vmatmul.mubr.bf16.gmra.mxu0 %v133
    %v197 = vpop.f32.mrf.mxu0
    %v198 = vadd.f32 %v71, %v197
    %v199 = vpop.f32.mrf.mxu0
    %v200 = vadd.f32 %v75, %v199
    %v201 = vpop.f32.mrf.mxu0
    %v202 = vadd.f32 %v71, %v201
    %v203 = vpop.f32.mrf.mxu0
    %v204 = vadd.f32 %v75, %v203
    %205 = vmatprep.mubr.bf16.mxu0 0
    %206 = vmatmul.mubr.bf16.gmra.mxu0 %v136
    %v207 = vpop.f32.mrf.mxu0
    %v208 = vadd.f32 %v71, %v207
    %v209 = vpop.f32.mrf.mxu0
    %v210 = vadd.f32 %v75, %v209
    %v211 = vpop.f32.mrf.mxu0
    %v212 = vadd.f32 %v71, %v211
    %v213 = vpop.f32.mrf.mxu0
    %v214 = vadd.f32 %v75, %v213
    %215 = vmatprep.mubr.bf16.mxu0 0
    %216 = vmatmul.mubr.bf16.gmra.mxu0 %v139
    %v217 = vpop.f32.mrf.mxu0
    %v218 = vadd.f32 %v71, %v217
    %v219 = vpop.f32.mrf.mxu0
    %v220 = vadd.f32 %v75, %v219
    %v221 = vpop.f32.mrf.mxu0
    %v222 = vadd.f32 %v71, %v221
    %v223 = vpop.f32.mrf.mxu0
    %v224 = vadd.f32 %v75, %v223
    %225 = vmatprep.mubr.bf16.mxu0 0
    %226 = vmatmul.mubr.bf16.gmra.mxu0 %v142
    %v227 = vpop.f32.mrf.mxu0
    %v228 = vadd.f32 %v71, %v227
    %v229 = vpop.f32.mrf.mxu0
    %v230 = vadd.f32 %v75, %v229
    %v231 = vpop.f32.mrf.mxu0
    %v232 = vadd.f32 %v71, %v231
    %v233 = vpop.f32.mrf.mxu0
    %v234 = vadd.f32 %v75, %v233
    %235 = vmatprep.mubr.bf16.mxu0 0
    %236 = vmatmul.mubr.bf16.gmra.mxu0 %v145
    %v237 = vpop.f32.mrf.mxu0
    %v238 = vadd.f32 %v71, %v237
    %v239 = vpop.f32.mrf.mxu0
    %v240 = vadd.f32 %v75, %v239
    %v241 = vpop.f32.mrf.mxu0
    %v242 = vadd.f32 %v71, %v241
    %v243 = vpop.f32.mrf.mxu0
    %v244 = vadd.f32 %v75, %v243
    %245 = vmatprep.mubr.bf16.mxu0 0
    %246 = vmatmul.mubr.bf16.gmra.mxu0 %v148
    %v247 = vpop.f32.mrf.mxu0
    %v248 = vadd.f32 %v71, %v247
    %v249 = vpop.f32.mrf.mxu0
    %v250 = vadd.f32 %v75, %v249
    %v251 = vpop.f32.mrf.mxu0
    %v252 = vadd.f32 %v71, %v251
    %v253 = vpop.f32.mrf.mxu0
    %v254 = vadd.f32 %v75, %v253
    %255 = vmatprep.mubr.bf16.mxu0 0
    %256 = vmatmul.mubr.bf16.gmra.mxu0 %v151
    %v257 = vpop.f32.mrf.mxu0
    %v258 = vadd.f32 %v71, %v257
    %v259 = vpop.f32.mrf.mxu0
    %v260 = vadd.f32 %v75, %v259
    %v261 = vpop.f32.mrf.mxu0
    %v262 = vadd.f32 %v71, %v261
    %v263 = vpop.f32.mrf.mxu0
    %v264 = vadd.f32 %v75, %v263
    %265 = vdwg.mxu0
    %v266 = vmin.f32 %v188, 0.0
    %v267 = vmin.f32 %v190, 0.0
    %v268 = vmin.f32 %v192, 0.0
    %v269 = vmin.f32 %v194, 0.0
    %v270 = vmin.f32 %v198, 0.0
    %v271 = vmin.f32 %v200, 0.0
    %v272 = vmin.f32 %v202, 0.0
    %v273 = vmin.f32 %v204, 0.0
    %v274 = vmin.f32 %v208, 0.0
    %v275 = vmin.f32 %v210, 0.0
    %v276 = vmin.f32 %v212, 0.0
    %v277 = vmin.f32 %v214, 0.0
    %v278 = vmin.f32 %v218, 0.0
    %v279 = vmin.f32 %v220, 0.0
    %v280 = vmin.f32 %v222, 0.0
    %v281 = vmin.f32 %v224, 0.0
    %v282 = vmin.f32 %v228, 0.0
    %v283 = vmin.f32 %v230, 0.0
    %v284 = vmin.f32 %v232, 0.0
    %v285 = vmin.f32 %v234, 0.0
    %v286 = vmin.f32 %v238, 0.0
    %v287 = vmin.f32 %v240, 0.0
    %v288 = vmin.f32 %v242, 0.0
    %v289 = vmin.f32 %v244, 0.0
    %v290 = vmin.f32 %v248, 0.0
    %v291 = vmin.f32 %v250, 0.0
    %v292 = vmin.f32 %v252, 0.0
    %v293 = vmin.f32 %v254, 0.0
    %v294 = vmin.f32 %v258, 0.0
    %v295 = vmin.f32 %v260, 0.0
    %v296 = vmin.f32 %v262, 0.0
    %v297 = vmin.f32 %v264, 0.0
    %v298 = vmul.f32 %v266, 1.442695
    %v299 = vpow.pop %v298
    %v300 = vmul.f32 %v267, 1.442695
    %v301 = vpow.pop %v300
    %v302 = vmul.f32 %v268, 1.442695
    %v303 = vpow.pop %v302
    %v304 = vmul.f32 %v269, 1.442695
    %v305 = vpow.pop %v304
    %v306 = vmul.f32 %v270, 1.442695
    %v307 = vpow.pop %v306
    %v308 = vmul.f32 %v271, 1.442695
    %v309 = vpow.pop %v308
    %v310 = vmul.f32 %v272, 1.442695
    %v311 = vpow.pop %v310
    %v312 = vmul.f32 %v273, 1.442695
    %v313 = vpow.pop %v312
    %v314 = vmul.f32 %v274, 1.442695
    %v315 = vpow.pop %v314
    %v316 = vmul.f32 %v275, 1.442695
    %v317 = vpow.pop %v316
    %v318 = vmul.f32 %v276, 1.442695
    %v319 = vpow.pop %v318
    %v320 = vmul.f32 %v277, 1.442695
    %v321 = vpow.pop %v320
    %v322 = vmul.f32 %v278, 1.442695
    %v323 = vpow.pop %v322
    %v324 = vmul.f32 %v279, 1.442695
    %v325 = vpow.pop %v324
    %v326 = vmul.f32 %v280, 1.442695
    %v327 = vpow.pop %v326
    %v328 = vmul.f32 %v281, 1.442695
    %v329 = vpow.pop %v328
    %v330 = vmul.f32 %v282, 1.442695
    %v331 = vpow.pop %v330
    %v332 = vmul.f32 %v283, 1.442695
    %v333 = vpow.pop %v332
    %v334 = vmul.f32 %v284, 1.442695
    %v335 = vpow.pop %v334
    %v336 = vmul.f32 %v285, 1.442695
    %v337 = vpow.pop %v336
    %v338 = vmul.f32 %v286, 1.442695
    %v339 = vpow.pop %v338
    %v340 = vmul.f32 %v287, 1.442695
    %v341 = vpow.pop %v340
    %v342 = vmul.f32 %v288, 1.442695
    %v343 = vpow.pop %v342
    %v344 = vmul.f32 %v289, 1.442695
    %v345 = vpow.pop %v344
    %v346 = vmul.f32 %v290, 1.442695
    %v347 = vpow.pop %v346
    %v348 = vmul.f32 %v291, 1.442695
    %v349 = vpow.pop %v348
    %v350 = vmul.f32 %v292, 1.442695
    %v351 = vpow.pop %v350
    %v352 = vmul.f32 %v293, 1.442695
    %v353 = vpow.pop %v352
    %v354 = vmul.f32 %v294, 1.442695
    %v355 = vpow.pop %v354
    %v356 = vmul.f32 %v295, 1.442695
    %v357 = vpow.pop %v356
    %v358 = vmul.f32 %v296, 1.442695
    %v359 = vpow.pop %v358
    %v360 = vmul.f32 %v297, 1.442695
    %v361 = vpow.pop %v360
    %vm362 = vcmp.gt.f32.partialorder %v188, 0.0
    %vm363 = vcmp.gt.f32.partialorder %v190, 0.0
    %vm364 = vcmp.gt.f32.partialorder %v192, 0.0
    %vm365 = vcmp.gt.f32.partialorder %v194, 0.0
    %vm366 = vcmp.gt.f32.partialorder %v198, 0.0
    %vm367 = vcmp.gt.f32.partialorder %v200, 0.0
    %vm368 = vcmp.gt.f32.partialorder %v202, 0.0
    %vm369 = vcmp.gt.f32.partialorder %v204, 0.0
    %vm370 = vcmp.gt.f32.partialorder %v208, 0.0
    %vm371 = vcmp.gt.f32.partialorder %v210, 0.0
    %vm372 = vcmp.gt.f32.partialorder %v212, 0.0
    %vm373 = vcmp.gt.f32.partialorder %v214, 0.0
    %vm374 = vcmp.gt.f32.partialorder %v218, 0.0
    %vm375 = vcmp.gt.f32.partialorder %v220, 0.0
    %vm376 = vcmp.gt.f32.partialorder %v222, 0.0
    %vm377 = vcmp.gt.f32.partialorder %v224, 0.0
    %vm378 = vcmp.gt.f32.partialorder %v228, 0.0
    %vm379 = vcmp.gt.f32.partialorder %v230, 0.0
    %vm380 = vcmp.gt.f32.partialorder %v232, 0.0
    %vm381 = vcmp.gt.f32.partialorder %v234, 0.0
    %vm382 = vcmp.gt.f32.partialorder %v238, 0.0
    %vm383 = vcmp.gt.f32.partialorder %v240, 0.0
    %vm384 = vcmp.gt.f32.partialorder %v242, 0.0
    %vm385 = vcmp.gt.f32.partialorder %v244, 0.0
    %vm386 = vcmp.gt.f32.partialorder %v248, 0.0
    %vm387 = vcmp.gt.f32.partialorder %v250, 0.0
    %vm388 = vcmp.gt.f32.partialorder %v252, 0.0
    %vm389 = vcmp.gt.f32.partialorder %v254, 0.0
    %vm390 = vcmp.gt.f32.partialorder %v258, 0.0
    %vm391 = vcmp.gt.f32.partialorder %v260, 0.0
    %vm392 = vcmp.gt.f32.partialorder %v262, 0.0
    %vm393 = vcmp.gt.f32.partialorder %v264, 0.0
    %v394 = vsub.f32 %v299, 1.0
    %v395 = vsub.f32 %v301, 1.0
    %v396 = vsub.f32 %v303, 1.0
    %v397 = vsub.f32 %v305, 1.0
    %v398 = vsub.f32 %v307, 1.0
    %v399 = vsub.f32 %v309, 1.0
    %v400 = vsub.f32 %v311, 1.0
    %v401 = vsub.f32 %v313, 1.0
    %v402 = vsub.f32 %v315, 1.0
    %v403 = vsub.f32 %v317, 1.0
    %v404 = vsub.f32 %v319, 1.0
    %v405 = vsub.f32 %v321, 1.0
    %v406 = vsub.f32 %v323, 1.0
    %v407 = vsub.f32 %v325, 1.0
    %v408 = vsub.f32 %v327, 1.0
    %v409 = vsub.f32 %v329, 1.0
    %v410 = vsub.f32 %v331, 1.0
    %v411 = vsub.f32 %v333, 1.0
    %v412 = vsub.f32 %v335, 1.0
    %v413 = vsub.f32 %v337, 1.0
    %v414 = vsub.f32 %v339, 1.0
    %v415 = vsub.f32 %v341, 1.0
    %v416 = vsub.f32 %v343, 1.0
    %v417 = vsub.f32 %v345, 1.0
    %v418 = vsub.f32 %v347, 1.0
    %v419 = vsub.f32 %v349, 1.0
    %v420 = vsub.f32 %v351, 1.0
    %v421 = vsub.f32 %v353, 1.0
    %v422 = vsub.f32 %v355, 1.0
    %v423 = vsub.f32 %v357, 1.0
    %v424 = vsub.f32 %v359, 1.0
    %v425 = vsub.f32 %v361, 1.0
    %v426 = vsel %vm362, %v188, %v394
    %v427 = vsel %vm363, %v190, %v395
    %v428 = vsel %vm364, %v192, %v396
    %v429 = vsel %vm365, %v194, %v397
    %v430 = vsel %vm366, %v198, %v398
    %v431 = vsel %vm367, %v200, %v399
    %v432 = vsel %vm368, %v202, %v400
    %v433 = vsel %vm369, %v204, %v401
    %v434 = vsel %vm370, %v208, %v402
    %v435 = vsel %vm371, %v210, %v403
    %v436 = vsel %vm372, %v212, %v404
    %v437 = vsel %vm373, %v214, %v405
    %v438 = vsel %vm374, %v218, %v406
    %v439 = vsel %vm375, %v220, %v407
    %v440 = vsel %vm376, %v222, %v408
    %v441 = vsel %vm377, %v224, %v409
    %v442 = vsel %vm378, %v228, %v410
    %v443 = vsel %vm379, %v230, %v411
    %v444 = vsel %vm380, %v232, %v412
    %v445 = vsel %vm381, %v234, %v413
    %v446 = vsel %vm382, %v238, %v414
    %v447 = vsel %vm383, %v240, %v415
    %v448 = vsel %vm384, %v242, %v416
    %v449 = vsel %vm385, %v244, %v417
    %v450 = vsel %vm386, %v248, %v418
    %v451 = vsel %vm387, %v250, %v419
    %v452 = vsel %vm388, %v252, %v420
    %v453 = vsel %vm389, %v254, %v421
    %v454 = vsel %vm390, %v258, %v422
    %v455 = vsel %vm391, %v260, %v423
    %v456 = vsel %vm392, %v262, %v424
    %v457 = vsel %vm393, %v264, %v425
    %459 = vset.pattern.permute.xlu0 15
    %460 = vperm.xlu0 %459, %v48
    %v461 = vpop.permute.xlu0 %460
    %464 = vset.pattern.permute.xlu0 15
    %465 = vperm.xlu0 %464, %v49
    %v466 = vpop.permute.xlu0 %465
    %469 = vset.pattern.permute.xlu0 15
    %470 = vperm.xlu0 %469, %v50
    %v471 = vpop.permute.xlu0 %470
    %474 = vset.pattern.permute.xlu0 15
    %475 = vperm.xlu0 %474, %v51
    %v476 = vpop.permute.xlu0 %475
    %479 = vset.pattern.permute.xlu0 15
    %480 = vperm.xlu0 %479, %v52
    %v481 = vpop.permute.xlu0 %480
    %484 = vset.pattern.permute.xlu0 15
    %485 = vperm.xlu0 %484, %v53
    %v486 = vpop.permute.xlu0 %485
    %489 = vset.pattern.permute.xlu0 15
    %490 = vperm.xlu0 %489, %v54
    %v491 = vpop.permute.xlu0 %490
    %494 = vset.pattern.permute.xlu0 15
    %495 = vperm.xlu0 %494, %v55
    %v496 = vpop.permute.xlu0 %495
    %499 = vset.pattern.permute.xlu0 15
    %500 = vperm.xlu0 %499, %v56
    %v501 = vpop.permute.xlu0 %500
    %504 = vset.pattern.permute.xlu0 15
    %505 = vperm.xlu0 %504, %v57
    %v506 = vpop.permute.xlu0 %505
    %509 = vset.pattern.permute.xlu0 15
    %510 = vperm.xlu0 %509, %v58
    %v511 = vpop.permute.xlu0 %510
    %514 = vset.pattern.permute.xlu0 15
    %515 = vperm.xlu0 %514, %v59
    %v516 = vpop.permute.xlu0 %515
    %519 = vset.pattern.permute.xlu0 15
    %520 = vperm.xlu0 %519, %v60
    %v521 = vpop.permute.xlu0 %520
    %524 = vset.pattern.permute.xlu0 15
    %525 = vperm.xlu0 %524, %v61
    %v526 = vpop.permute.xlu0 %525
    %529 = vset.pattern.permute.xlu0 15
    %530 = vperm.xlu0 %529, %v62
    %v531 = vpop.permute.xlu0 %530
    %534 = vset.pattern.permute.xlu0 15
    %535 = vperm.xlu0 %534, %v63
    %v536 = vpop.permute.xlu0 %535
    %v538 = vmul.f32 %v426, %v461
    %v539 = vmul.f32 %v427, %v461
    %v540 = vmul.f32 %v428, %v466
    %v541 = vmul.f32 %v429, %v466
    %v542 = vmul.f32 %v430, %v471
    %v543 = vmul.f32 %v431, %v471
    %v544 = vmul.f32 %v432, %v476
    %v545 = vmul.f32 %v433, %v476
    %v546 = vmul.f32 %v434, %v481
    %v547 = vmul.f32 %v435, %v481
    %v548 = vmul.f32 %v436, %v486
    %v549 = vmul.f32 %v437, %v486
    %v550 = vmul.f32 %v438, %v491
    %v551 = vmul.f32 %v439, %v491
    %v552 = vmul.f32 %v440, %v496
    %v553 = vmul.f32 %v441, %v496
    %v554 = vmul.f32 %v442, %v501
    %v555 = vmul.f32 %v443, %v501
    %v556 = vmul.f32 %v444, %v506
    %v557 = vmul.f32 %v445, %v506
    %v558 = vmul.f32 %v446, %v511
    %v559 = vmul.f32 %v447, %v511
    %v560 = vmul.f32 %v448, %v516
    %v561 = vmul.f32 %v449, %v516
    %v562 = vmul.f32 %v450, %v521
    %v563 = vmul.f32 %v451, %v521
    %v564 = vmul.f32 %v452, %v526
    %v565 = vmul.f32 %v453, %v526
    %v566 = vmul.f32 %v454, %v531
    %v567 = vmul.f32 %v455, %v531
    %v568 = vmul.f32 %v456, %v536
    %v569 = vmul.f32 %v457, %v536
    %v570 = vrot.slane %v538, 4
    %v571 = vmax.f32 %v538, %v570
    %v572 = vrot.slane %v571, 2
    %v573 = vmax.f32 %v571, %v572
    %v574 = vrot.slane %v573, 1
    %v575 = vmax.f32 %v573, %v574
    %v576 = vrot.slane %v539, 4
    %v577 = vmax.f32 %v539, %v576
    %v578 = vrot.slane %v577, 2
    %v579 = vmax.f32 %v577, %v578
    %v580 = vrot.slane %v579, 1
    %v581 = vmax.f32 %v579, %v580
    %v582 = vrot.slane %v540, 4
    %v583 = vmax.f32 %v540, %v582
    %v584 = vrot.slane %v583, 2
    %v585 = vmax.f32 %v583, %v584
    %v586 = vrot.slane %v585, 1
    %v587 = vmax.f32 %v585, %v586
    %v588 = vrot.slane %v541, 4
    %v589 = vmax.f32 %v541, %v588
    %v590 = vrot.slane %v589, 2
    %v591 = vmax.f32 %v589, %v590
    %v592 = vrot.slane %v591, 1
    %v593 = vmax.f32 %v591, %v592
    %v594 = vrot.slane %v542, 4
    %v595 = vmax.f32 %v542, %v594
    %v596 = vrot.slane %v595, 2
    %v597 = vmax.f32 %v595, %v596
    %v598 = vrot.slane %v597, 1
    %v599 = vmax.f32 %v597, %v598
    %v600 = vrot.slane %v543, 4
    %v601 = vmax.f32 %v543, %v600
    %v602 = vrot.slane %v601, 2
    %v603 = vmax.f32 %v601, %v602
    %v604 = vrot.slane %v603, 1
    %v605 = vmax.f32 %v603, %v604
    %v606 = vrot.slane %v544, 4
    %v607 = vmax.f32 %v544, %v606
    %v608 = vrot.slane %v607, 2
    %v609 = vmax.f32 %v607, %v608
    %v610 = vrot.slane %v609, 1
    %v611 = vmax.f32 %v609, %v610
    %v612 = vrot.slane %v545, 4
    %v613 = vmax.f32 %v545, %v612
    %v614 = vrot.slane %v613, 2
    %v615 = vmax.f32 %v613, %v614
    %v616 = vrot.slane %v615, 1
    %v617 = vmax.f32 %v615, %v616
    %v618 = vrot.slane %v546, 4
    %v619 = vmax.f32 %v546, %v618
    %v620 = vrot.slane %v619, 2
    %v621 = vmax.f32 %v619, %v620
    %v622 = vrot.slane %v621, 1
    %v623 = vmax.f32 %v621, %v622
    %v624 = vrot.slane %v547, 4
    %v625 = vmax.f32 %v547, %v624
    %v626 = vrot.slane %v625, 2
    %v627 = vmax.f32 %v625, %v626
    %v628 = vrot.slane %v627, 1
    %v629 = vmax.f32 %v627, %v628
    %v630 = vrot.slane %v548, 4
    %v631 = vmax.f32 %v548, %v630
    %v632 = vrot.slane %v631, 2
    %v633 = vmax.f32 %v631, %v632
    %v634 = vrot.slane %v633, 1
    %v635 = vmax.f32 %v633, %v634
    %v636 = vrot.slane %v549, 4
    %v637 = vmax.f32 %v549, %v636
    %v638 = vrot.slane %v637, 2
    %v639 = vmax.f32 %v637, %v638
    %v640 = vrot.slane %v639, 1
    %v641 = vmax.f32 %v639, %v640
    %v642 = vrot.slane %v550, 4
    %v643 = vmax.f32 %v550, %v642
    %v644 = vrot.slane %v643, 2
    %v645 = vmax.f32 %v643, %v644
    %v646 = vrot.slane %v645, 1
    %v647 = vmax.f32 %v645, %v646
    %v648 = vrot.slane %v551, 4
    %v649 = vmax.f32 %v551, %v648
    %v650 = vrot.slane %v649, 2
    %v651 = vmax.f32 %v649, %v650
    %v652 = vrot.slane %v651, 1
    %v653 = vmax.f32 %v651, %v652
    %v654 = vrot.slane %v552, 4
    %v655 = vmax.f32 %v552, %v654
    %v656 = vrot.slane %v655, 2
    %v657 = vmax.f32 %v655, %v656
    %v658 = vrot.slane %v657, 1
    %v659 = vmax.f32 %v657, %v658
    %v660 = vrot.slane %v553, 4
    %v661 = vmax.f32 %v553, %v660
    %v662 = vrot.slane %v661, 2
    %v663 = vmax.f32 %v661, %v662
    %v664 = vrot.slane %v663, 1
    %v665 = vmax.f32 %v663, %v664
    %v666 = vrot.slane %v554, 4
    %v667 = vmax.f32 %v554, %v666
    %v668 = vrot.slane %v667, 2
    %v669 = vmax.f32 %v667, %v668
    %v670 = vrot.slane %v669, 1
    %v671 = vmax.f32 %v669, %v670
    %v672 = vrot.slane %v555, 4
    %v673 = vmax.f32 %v555, %v672
    %v674 = vrot.slane %v673, 2
    %v675 = vmax.f32 %v673, %v674
    %v676 = vrot.slane %v675, 1
    %v677 = vmax.f32 %v675, %v676
    %v678 = vrot.slane %v556, 4
    %v679 = vmax.f32 %v556, %v678
    %v680 = vrot.slane %v679, 2
    %v681 = vmax.f32 %v679, %v680
    %v682 = vrot.slane %v681, 1
    %v683 = vmax.f32 %v681, %v682
    %v684 = vrot.slane %v557, 4
    %v685 = vmax.f32 %v557, %v684
    %v686 = vrot.slane %v685, 2
    %v687 = vmax.f32 %v685, %v686
    %v688 = vrot.slane %v687, 1
    %v689 = vmax.f32 %v687, %v688
    %v690 = vrot.slane %v558, 4
    %v691 = vmax.f32 %v558, %v690
    %v692 = vrot.slane %v691, 2
    %v693 = vmax.f32 %v691, %v692
    %v694 = vrot.slane %v693, 1
    %v695 = vmax.f32 %v693, %v694
    %v696 = vrot.slane %v559, 4
    %v697 = vmax.f32 %v559, %v696
    %v698 = vrot.slane %v697, 2
    %v699 = vmax.f32 %v697, %v698
    %v700 = vrot.slane %v699, 1
    %v701 = vmax.f32 %v699, %v700
    %v702 = vrot.slane %v560, 4
    %v703 = vmax.f32 %v560, %v702
    %v704 = vrot.slane %v703, 2
    %v705 = vmax.f32 %v703, %v704
    %v706 = vrot.slane %v705, 1
    %v707 = vmax.f32 %v705, %v706
    %v708 = vrot.slane %v561, 4
    %v709 = vmax.f32 %v561, %v708
    %v710 = vrot.slane %v709, 2
    %v711 = vmax.f32 %v709, %v710
    %v712 = vrot.slane %v711, 1
    %v713 = vmax.f32 %v711, %v712
    %v714 = vrot.slane %v562, 4
    %v715 = vmax.f32 %v562, %v714
    %v716 = vrot.slane %v715, 2
    %v717 = vmax.f32 %v715, %v716
    %v718 = vrot.slane %v717, 1
    %v719 = vmax.f32 %v717, %v718
    %v720 = vrot.slane %v563, 4
    %v721 = vmax.f32 %v563, %v720
    %v722 = vrot.slane %v721, 2
    %v723 = vmax.f32 %v721, %v722
    %v724 = vrot.slane %v723, 1
    %v725 = vmax.f32 %v723, %v724
    %v726 = vrot.slane %v564, 4
    %v727 = vmax.f32 %v564, %v726
    %v728 = vrot.slane %v727, 2
    %v729 = vmax.f32 %v727, %v728
    %v730 = vrot.slane %v729, 1
    %v731 = vmax.f32 %v729, %v730
    %v732 = vrot.slane %v565, 4
    %v733 = vmax.f32 %v565, %v732
    %v734 = vrot.slane %v733, 2
    %v735 = vmax.f32 %v733, %v734
    %v736 = vrot.slane %v735, 1
    %v737 = vmax.f32 %v735, %v736
    %v738 = vrot.slane %v566, 4
    %v739 = vmax.f32 %v566, %v738
    %v740 = vrot.slane %v739, 2
    %v741 = vmax.f32 %v739, %v740
    %v742 = vrot.slane %v741, 1
    %v743 = vmax.f32 %v741, %v742
    %v744 = vrot.slane %v567, 4
    %v745 = vmax.f32 %v567, %v744
    %v746 = vrot.slane %v745, 2
    %v747 = vmax.f32 %v745, %v746
    %v748 = vrot.slane %v747, 1
    %v749 = vmax.f32 %v747, %v748
    %v750 = vrot.slane %v568, 4
    %v751 = vmax.f32 %v568, %v750
    %v752 = vrot.slane %v751, 2
    %v753 = vmax.f32 %v751, %v752
    %v754 = vrot.slane %v753, 1
    %v755 = vmax.f32 %v753, %v754
    %v756 = vrot.slane %v569, 4
    %v757 = vmax.f32 %v569, %v756
    %v758 = vrot.slane %v757, 2
    %v759 = vmax.f32 %v757, %v758
    %v760 = vrot.slane %v759, 1
    %v761 = vmax.f32 %v759, %v760
    %v762 = vld [vmem:[#allocation2 + $0x10] sm:$0xff]
    %v763 = vld [vmem:[#allocation2 + $0x18] sm:$0xff]
    %v764 = vld [vmem:[#allocation2 + $0x20] sm:$0xff]
    %v765 = vld [vmem:[#allocation2 + $0x28] sm:$0xff]
    %v766 = vld [vmem:[#allocation2 + $0x30] sm:$0xff]
    %v767 = vld [vmem:[#allocation2 + $0x38] sm:$0xff]
    %v768 = vld [vmem:[#allocation2 + $0x40] sm:$0xff]
    %v769 = vld [vmem:[#allocation2 + $0x48] sm:$0xff]
    %v770 = vld [vmem:[#allocation2 + $0x50] sm:$0xff]
    %v771 = vld [vmem:[#allocation2 + $0x58] sm:$0xff]
    %v772 = vld [vmem:[#allocation2 + $0x60] sm:$0xff]
    %v773 = vld [vmem:[#allocation2 + $0x68] sm:$0xff]
    %v774 = vld [vmem:[#allocation2 + $0x70] sm:$0xff]
    %v775 = vld [vmem:[#allocation2 + $0x78] sm:$0xff]
    %v776 = vld [vmem:[#allocation2 + $0x80] sm:$0xff]
    %v777 = vld [vmem:[#allocation2 + $0x88] sm:$0xff]
    %v778 = vld [vmem:[#allocation2 + $0x90] sm:$0xff]
    %v779 = vld [vmem:[#allocation2 + $0x98] sm:$0xff]
    %v780 = vld [vmem:[#allocation2 + $0xa0] sm:$0xff]
    %v781 = vld [vmem:[#allocation2 + $0xa8] sm:$0xff]
    %v782 = vld [vmem:[#allocation2 + $0xb0] sm:$0xff]
    %v783 = vld [vmem:[#allocation2 + $0xb8] sm:$0xff]
    %v784 = vld [vmem:[#allocation2 + $0xc0] sm:$0xff]
    %v785 = vld [vmem:[#allocation2 + $0xc8] sm:$0xff]
    %v786 = vld [vmem:[#allocation2 + $0xd0] sm:$0xff]
    %v787 = vld [vmem:[#allocation2 + $0xd8] sm:$0xff]
    %v788 = vld [vmem:[#allocation2 + $0xe0] sm:$0xff]
    %v789 = vld [vmem:[#allocation2 + $0xe8] sm:$0xff]
    %v790 = vld [vmem:[#allocation2 + $0xf0] sm:$0xff]
    %v791 = vld [vmem:[#allocation2 + $0xf8] sm:$0xff]
    %v792 = vld [vmem:[#allocation2 + $0x100] sm:$0xff]
    %v793 = vld [vmem:[#allocation2 + $0x108] sm:$0xff]
    %v794 = vpack.c.bf16 %v575, %v575
    %v795 = vpack.c.bf16 %v581, %v581
    %v796 = vpack.c.bf16 %v587, %v587
    %v797 = vpack.c.bf16 %v593, %v593
    %v798 = vpack.c.bf16 %v599, %v599
    %v799 = vpack.c.bf16 %v605, %v605
    %v800 = vpack.c.bf16 %v611, %v611
    %v801 = vpack.c.bf16 %v617, %v617
    %v802 = vpack.c.bf16 %v623, %v623
    %v803 = vpack.c.bf16 %v629, %v629
    %v804 = vpack.c.bf16 %v635, %v635
    %v805 = vpack.c.bf16 %v641, %v641
    %v806 = vpack.c.bf16 %v647, %v647
    %v807 = vpack.c.bf16 %v653, %v653
    %v808 = vpack.c.bf16 %v659, %v659
    %v809 = vpack.c.bf16 %v665, %v665
    %v810 = vpack.c.bf16 %v671, %v671
    %v811 = vpack.c.bf16 %v677, %v677
    %v812 = vpack.c.bf16 %v683, %v683
    %v813 = vpack.c.bf16 %v689, %v689
    %v814 = vpack.c.bf16 %v695, %v695
    %v815 = vpack.c.bf16 %v701, %v701
    %v816 = vpack.c.bf16 %v707, %v707
    %v817 = vpack.c.bf16 %v713, %v713
    %v818 = vpack.c.bf16 %v719, %v719
    %v819 = vpack.c.bf16 %v725, %v725
    %v820 = vpack.c.bf16 %v731, %v731
    %v821 = vpack.c.bf16 %v737, %v737
    %v822 = vpack.c.bf16 %v743, %v743
    %v823 = vpack.c.bf16 %v749, %v749
    %v824 = vpack.c.bf16 %v755, %v755
    %v825 = vpack.c.bf16 %v761, %v761
    %v826 = vld [vmem:[%s1] sm:$0xff]
    %v827 = vld [vmem:[%s1 + $0x8] sm:$0xff]
    %s828 = scalar_lea.vmem %s3, 16
    %v829 = vld [vmem:[%s828] ss:$8 sm:$0x3]
    %831 = vset.pattern.permute.xlu0 0
    %832 = vperm.xlu0 %831, %v826
    %v833 = vpop.permute.xlu0 %832
    %836 = vset.pattern.permute.xlu0 0
    %837 = vperm.xlu0 %836, %v827
    %v838 = vpop.permute.xlu0 %837
    %v841 = vlaneseq
    %v842 = vshrl.u32 %v841, 7
    %v843 = vsub.s32 0, %v842
    %v844 = vrot.slane %v829, %v843
    %v845 = vlaneseq
    %v846 = vshrl.u32 %v845, 7
    %v847 = vsub.s32 1, %v846
    %v848 = vrot.slane %v829, %v847
    %v851 = vmul.f32 %v833, %v844
    %v852 = vmul.f32 %v833, %v848
    %v853 = vmul.f32 %v838, %v844
    %v854 = vmul.f32 %v838, %v848
    %v887 = vunpack.c.l.b16 %v794
    %v888 = vunpack.c.l.b16 %v795
    %v889 = vunpack.c.l.b16 %v796
    %v890 = vunpack.c.l.b16 %v797
    %v891 = vunpack.c.l.b16 %v798
    %v892 = vunpack.c.l.b16 %v799
    %v893 = vunpack.c.l.b16 %v800
    %v894 = vunpack.c.l.b16 %v801
    %v895 = vunpack.c.l.b16 %v802
    %v896 = vunpack.c.l.b16 %v803
    %v897 = vunpack.c.l.b16 %v804
    %v898 = vunpack.c.l.b16 %v805
    %v899 = vunpack.c.l.b16 %v806
    %v900 = vunpack.c.l.b16 %v807
    %v901 = vunpack.c.l.b16 %v808
    %v902 = vunpack.c.l.b16 %v809
    %v903 = vunpack.c.l.b16 %v810
    %v904 = vunpack.c.l.b16 %v811
    %v905 = vunpack.c.l.b16 %v812
    %v906 = vunpack.c.l.b16 %v813
    %v907 = vunpack.c.l.b16 %v814
    %v908 = vunpack.c.l.b16 %v815
    %v909 = vunpack.c.l.b16 %v816
    %v910 = vunpack.c.l.b16 %v817
    %v911 = vunpack.c.l.b16 %v818
    %v912 = vunpack.c.l.b16 %v819
    %v913 = vunpack.c.l.b16 %v820
    %v914 = vunpack.c.l.b16 %v821
    %v915 = vunpack.c.l.b16 %v822
    %v916 = vunpack.c.l.b16 %v823
    %v917 = vunpack.c.l.b16 %v824
    %v918 = vunpack.c.l.b16 %v825
    %vm919 = vcmask 1041409
    %v920 = vsel %vm919, %v889, %v887
    %vm921 = vcmask 1042434
    %v922 = vsel %vm921, %v891, %v920
    %vm923 = vcmask 1043459
    %v924 = vsel %vm923, %v893, %v922
    %vm925 = vcmask 1044484
    %v926 = vsel %vm925, %v895, %v924
    %vm927 = vcmask 1045509
    %v928 = vsel %vm927, %v897, %v926
    %vm929 = vcmask 1046534
    %v930 = vsel %vm929, %v899, %v928
    %vm931 = vcmask 1047559
    %v932 = vsel %vm931, %v901, %v930
    %v933 = vsel %vm919, %v890, %v888
    %v934 = vsel %vm921, %v892, %v933
    %v935 = vsel %vm923, %v894, %v934
    %v936 = vsel %vm925, %v896, %v935
    %v937 = vsel %vm927, %v898, %v936
    %v938 = vsel %vm929, %v900, %v937
    %v939 = vsel %vm931, %v902, %v938
    %v940 = vsel %vm919, %v905, %v903
    %v941 = vsel %vm921, %v907, %v940
    %v942 = vsel %vm923, %v909, %v941
    %v943 = vsel %vm925, %v911, %v942
    %v944 = vsel %vm927, %v913, %v943
    %v945 = vsel %vm929, %v915, %v944
    %v946 = vsel %vm931, %v917, %v945
    %v947 = vsel %vm919, %v906, %v904
    %v948 = vsel %vm921, %v908, %v947
    %v949 = vsel %vm923, %v910, %v948
    %v950 = vsel %vm925, %v912, %v949
    %v951 = vsel %vm927, %v914, %v950
    %v952 = vsel %vm929, %v916, %v951
    %v953 = vsel %vm931, %v918, %v952
    %v954 = vpack.c.b16 %v946, %v932
    %v955 = vpack.c.b16 %v953, %v939
    %v990 = vunpack.c.l.b16 %v762
    %v991 = vunpack.c.h.b16 %v762
    %v992 = vunpack.c.l.b16 %v763
    %v993 = vunpack.c.h.b16 %v763
    %v994 = vunpack.c.l.b16 %v764
    %v995 = vunpack.c.h.b16 %v764
    %v996 = vunpack.c.l.b16 %v765
    %v997 = vunpack.c.h.b16 %v765
    %v998 = vunpack.c.l.b16 %v766
    %v999 = vunpack.c.h.b16 %v766
    %v1000 = vunpack.c.l.b16 %v767
    %v1001 = vunpack.c.h.b16 %v767
    %v1002 = vunpack.c.l.b16 %v768
    %v1003 = vunpack.c.h.b16 %v768
    %v1004 = vunpack.c.l.b16 %v769
    %v1005 = vunpack.c.h.b16 %v769
    %v1006 = vunpack.c.l.b16 %v770
    %v1007 = vunpack.c.h.b16 %v770
    %v1008 = vunpack.c.l.b16 %v771
    %v1009 = vunpack.c.h.b16 %v771
    %v1010 = vunpack.c.l.b16 %v772
    %v1011 = vunpack.c.h.b16 %v772
    %v1012 = vunpack.c.l.b16 %v773
    %v1013 = vunpack.c.h.b16 %v773
    %v1014 = vunpack.c.l.b16 %v774
    %v1015 = vunpack.c.h.b16 %v774
    %v1016 = vunpack.c.l.b16 %v775
    %v1017 = vunpack.c.h.b16 %v775
    %v1018 = vunpack.c.l.b16 %v776
    %v1019 = vunpack.c.h.b16 %v776
    %v1020 = vunpack.c.l.b16 %v777
    %v1021 = vunpack.c.h.b16 %v777
    %v1022 = vunpack.c.l.b16 %v778
    %v1023 = vunpack.c.h.b16 %v778
    %v1024 = vunpack.c.l.b16 %v779
    %v1025 = vunpack.c.h.b16 %v779
    %v1026 = vunpack.c.l.b16 %v780
    %v1027 = vunpack.c.h.b16 %v780
    %v1028 = vunpack.c.l.b16 %v781
    %v1029 = vunpack.c.h.b16 %v781
    %v1030 = vunpack.c.l.b16 %v782
    %v1031 = vunpack.c.h.b16 %v782
    %v1032 = vunpack.c.l.b16 %v783
    %v1033 = vunpack.c.h.b16 %v783
    %v1034 = vunpack.c.l.b16 %v784
    %v1035 = vunpack.c.h.b16 %v784
    %v1036 = vunpack.c.l.b16 %v785
    %v1037 = vunpack.c.h.b16 %v785
    %v1038 = vunpack.c.l.b16 %v786
    %v1039 = vunpack.c.h.b16 %v786
    %v1040 = vunpack.c.l.b16 %v787
    %v1041 = vunpack.c.h.b16 %v787
    %v1042 = vunpack.c.l.b16 %v788
    %v1043 = vunpack.c.h.b16 %v788
    %v1044 = vunpack.c.l.b16 %v789
    %v1045 = vunpack.c.h.b16 %v789
    %v1046 = vunpack.c.l.b16 %v790
    %v1047 = vunpack.c.h.b16 %v790
    %v1048 = vunpack.c.l.b16 %v791
    %v1049 = vunpack.c.h.b16 %v791
    %v1050 = vunpack.c.l.b16 %v792
    %v1051 = vunpack.c.h.b16 %v792
    %v1052 = vunpack.c.l.b16 %v793
    %v1053 = vunpack.c.h.b16 %v793
    %v1054 = vpack.c.b16 %v992, %v990
    %v1055 = vpack.c.b16 %v993, %v991
    %v1056 = vpack.c.b16 %v996, %v994
    %v1057 = vpack.c.b16 %v997, %v995
    %v1058 = vpack.c.b16 %v1000, %v998
    %v1059 = vpack.c.b16 %v1001, %v999
    %v1060 = vpack.c.b16 %v1004, %v1002
    %v1061 = vpack.c.b16 %v1005, %v1003
    %v1062 = vpack.c.b16 %v1008, %v1006
    %v1063 = vpack.c.b16 %v1009, %v1007
    %v1064 = vpack.c.b16 %v1012, %v1010
    %v1065 = vpack.c.b16 %v1013, %v1011
    %v1066 = vpack.c.b16 %v1016, %v1014
    %v1067 = vpack.c.b16 %v1017, %v1015
    %v1068 = vpack.c.b16 %v1020, %v1018
    %v1069 = vpack.c.b16 %v1021, %v1019
    %v1070 = vpack.c.b16 %v1024, %v1022
    %v1071 = vpack.c.b16 %v1025, %v1023
    %v1072 = vpack.c.b16 %v1028, %v1026
    %v1073 = vpack.c.b16 %v1029, %v1027
    %v1074 = vpack.c.b16 %v1032, %v1030
    %v1075 = vpack.c.b16 %v1033, %v1031
    %v1076 = vpack.c.b16 %v1036, %v1034
    %v1077 = vpack.c.b16 %v1037, %v1035
    %v1078 = vpack.c.b16 %v1040, %v1038
    %v1079 = vpack.c.b16 %v1041, %v1039
    %v1080 = vpack.c.b16 %v1044, %v1042
    %v1081 = vpack.c.b16 %v1045, %v1043
    %v1082 = vpack.c.b16 %v1048, %v1046
    %v1083 = vpack.c.b16 %v1049, %v1047
    %v1084 = vpack.c.b16 %v1052, %v1050
    %v1085 = vpack.c.b16 %v1053, %v1051
    %1118 = vmatprep.subr.bf16.mxu0 %v1069
    %1119 = vmatpush1.bf16.msra.mxu0 %v1068
    %1120 = vmatprep.subr.bf16.mxu0 %v1067
    %1121 = vmatpush1.bf16.msra.mxu0 %v1066
    %1122 = vmatprep.subr.bf16.mxu0 %v1065
    %1123 = vmatpush1.bf16.msra.mxu0 %v1064
    %1124 = vmatprep.subr.bf16.mxu0 %v1063
    %1125 = vmatpush1.bf16.msra.mxu0 %v1062
    %1126 = vmatprep.subr.bf16.mxu0 %v1061
    %1127 = vmatpush1.bf16.msra.mxu0 %v1060
    %1128 = vmatprep.subr.bf16.mxu0 %v1059
    %1129 = vmatpush1.bf16.msra.mxu0 %v1058
    %1130 = vmatprep.subr.bf16.mxu0 %v1057
    %1131 = vmatpush1.bf16.msra.mxu0 %v1056
    %1132 = vmatprep.subr.bf16.mxu0 %v1055
    %1133 = vmatpush1.bf16.msra.mxu0 %v1054
    %1134 = vmatprep.subr.bf16.mxu0 %v1085
    %1135 = vmatpush2.bf16.msra.mxu0 %v1084
    %1136 = vmatprep.subr.bf16.mxu0 %v1083
    %1137 = vmatpush2.bf16.msra.mxu0 %v1082
    %1138 = vmatprep.subr.bf16.mxu0 %v1081
    %1139 = vmatpush2.bf16.msra.mxu0 %v1080
    %1140 = vmatprep.subr.bf16.mxu0 %v1079
    %1141 = vmatpush2.bf16.msra.mxu0 %v1078
    %1142 = vmatprep.subr.bf16.mxu0 %v1077
    %1143 = vmatpush2.bf16.msra.mxu0 %v1076
    %1144 = vmatprep.subr.bf16.mxu0 %v1075
    %1145 = vmatpush2.bf16.msra.mxu0 %v1074
    %1146 = vmatprep.subr.bf16.mxu0 %v1073
    %1147 = vmatpush2.bf16.msra.mxu0 %v1072
    %1148 = vmatprep.subr.bf16.mxu0 %v1071
    %1149 = vmatpush2.bf16.msra.mxu0 %v1070
    %1150 = vmatprep.mubr.bf16.mxu0 %v955
    %1151 = vmatmul.mubr.bf16.gmra.mxu0 %v954
    %v1152 = vpop.f32.mrf.mxu0
    %v1153 = vadd.f32 %v851, %v1152
    %v1154 = vpop.f32.mrf.mxu0
    %v1155 = vadd.f32 %v852, %v1154
    %v1156 = vpop.f32.mrf.mxu0
    %v1157 = vadd.f32 %v853, %v1156
    %v1158 = vpop.f32.mrf.mxu0
    %v1159 = vadd.f32 %v854, %v1158
    %1160 = vdwg.mxu0
    %s1161 = scalar_lea.vmem %s3, 17
    %v1162 = vld [vmem:[%s1161] ss:$8 sm:$0x3]
    %1163 = vset.pattern.permute.xlu0 1
    %1164 = vperm.xlu0 %1163, %v826
    %v1165 = vpop.permute.xlu0 %1164
    %1167 = vset.pattern.permute.xlu0 1
    %1168 = vperm.xlu0 %1167, %v827
    %v1169 = vpop.permute.xlu0 %1168
    %v1172 = vlaneseq
    %v1173 = vshrl.u32 %v1172, 7
    %v1174 = vsub.s32 0, %v1173
    %v1175 = vrot.slane %v1162, %v1174
    %v1176 = vlaneseq
    %v1177 = vshrl.u32 %v1176, 7
    %v1178 = vsub.s32 1, %v1177
    %v1179 = vrot.slane %v1162, %v1178
    %v1182 = vmul.f32 %v1165, %v1175
    %v1183 = vmul.f32 %v1165, %v1179
    %v1184 = vmul.f32 %v1169, %v1175
    %v1185 = vmul.f32 %v1169, %v1179
    %v1186 = vadd.f32 %v1153, %v1182
    %v1187 = vadd.f32 %v1155, %v1183
    %v1188 = vadd.f32 %v1157, %v1184
    %v1189 = vadd.f32 %v1159, %v1185
    %s1190 = scalar_lea.vmem %s3, 18
    %v1191 = vld [vmem:[%s1190] ss:$8 sm:$0x3]
    %1192 = vset.pattern.permute.xlu0 2
    %1193 = vperm.xlu0 %1192, %v826
    %v1194 = vpop.permute.xlu0 %1193
    %1196 = vset.pattern.permute.xlu0 2
    %1197 = vperm.xlu0 %1196, %v827
    %v1198 = vpop.permute.xlu0 %1197
    %v1201 = vlaneseq
    %v1202 = vshrl.u32 %v1201, 7
    %v1203 = vsub.s32 0, %v1202
    %v1204 = vrot.slane %v1191, %v1203
    %v1205 = vlaneseq
    %v1206 = vshrl.u32 %v1205, 7
    %v1207 = vsub.s32 1, %v1206
    %v1208 = vrot.slane %v1191, %v1207
    %v1211 = vmul.f32 %v1194, %v1204
    %v1212 = vmul.f32 %v1194, %v1208
    %v1213 = vmul.f32 %v1198, %v1204
    %v1214 = vmul.f32 %v1198, %v1208
    %v1215 = vadd.f32 %v1186, %v1211
    %v1216 = vadd.f32 %v1187, %v1212
    %v1217 = vadd.f32 %v1188, %v1213
    %v1218 = vadd.f32 %v1189, %v1214
    %s1219 = scalar_lea.vmem %s3, 1
    %v1220 = vld [vmem:[%s1219] ss:$8 sm:$0x3]
    %v1222 = vlaneseq
    %v1223 = vshrl.u32 %v1222, 7
    %v1224 = vsub.s32 0, %v1223
    %v1225 = vrot.slane %v1220, %v1224
    %v1226 = vlaneseq
    %v1227 = vshrl.u32 %v1226, 7
    %v1228 = vsub.s32 1, %v1227
    %v1229 = vrot.slane %v1220, %v1228
    %v1232 = vadd.f32 %v1215, %v1225
    %v1233 = vadd.f32 %v1216, %v1229
    %v1234 = vadd.f32 %v1217, %v1225
    %v1235 = vadd.f32 %v1218, %v1229
    %v1236 = vmin.f32 %v1232, 0.0
    %v1237 = vmin.f32 %v1233, 0.0
    %v1238 = vmin.f32 %v1234, 0.0
    %v1239 = vmin.f32 %v1235, 0.0
    %v1240 = vmul.f32 %v1236, 1.442695
    %v1241 = vpow.pop %v1240
    %v1242 = vmul.f32 %v1237, 1.442695
    %v1243 = vpow.pop %v1242
    %v1244 = vmul.f32 %v1238, 1.442695
    %v1245 = vpow.pop %v1244
    %v1246 = vmul.f32 %v1239, 1.442695
    %v1247 = vpow.pop %v1246
    %vm1248 = vcmp.gt.f32.partialorder %v1232, 0.0
    %vm1249 = vcmp.gt.f32.partialorder %v1233, 0.0
    %vm1250 = vcmp.gt.f32.partialorder %v1234, 0.0
    %vm1251 = vcmp.gt.f32.partialorder %v1235, 0.0
    %v1252 = vsub.f32 %v1241, 1.0
    %v1253 = vsub.f32 %v1243, 1.0
    %v1254 = vsub.f32 %v1245, 1.0
    %v1255 = vsub.f32 %v1247, 1.0
    %v1256 = vsel %vm1248, %v1232, %v1252
    %v1257 = vsel %vm1249, %v1233, %v1253
    %v1258 = vsel %vm1250, %v1234, %v1254
    %v1259 = vsel %vm1251, %v1235, %v1255
    %v1260 = vld [vmem:[#allocation2 + $0x110] sm:$0xf]
    %v1261 = vld [vmem:[#allocation2 + $0x118] sm:$0xf]
    %v1262 = vld [vmem:[#allocation2 + $0x120] sm:$0xf]
    %v1263 = vld [vmem:[#allocation2 + $0x128] sm:$0xf]
    %v1264 = vld [vmem:[#allocation2 + $0x130] sm:$0xf]
    %v1265 = vld [vmem:[#allocation2 + $0x138] sm:$0xf]
    %v1266 = vld [vmem:[#allocation2 + $0x140] sm:$0xf]
    %v1267 = vld [vmem:[#allocation2 + $0x148] sm:$0xf]
    %v1268 = vld [vmem:[#allocation2 + $0x150] sm:$0xf]
    %v1269 = vld [vmem:[#allocation2 + $0x158] sm:$0xf]
    %v1270 = vld [vmem:[#allocation2 + $0x160] sm:$0xf]
    %v1271 = vld [vmem:[#allocation2 + $0x168] sm:$0xf]
    %v1272 = vld [vmem:[#allocation2 + $0x170] sm:$0xf]
    %v1273 = vld [vmem:[#allocation2 + $0x178] sm:$0xf]
    %v1274 = vld [vmem:[#allocation2 + $0x180] sm:$0xf]
    %v1275 = vld [vmem:[#allocation2 + $0x188] sm:$0xf]
    %v1276 = vld [vmem:[#allocation2 + $0x190] sm:$0xf]
    %v1277 = vld [vmem:[#allocation2 + $0x198] sm:$0xf]
    %v1278 = vld [vmem:[#allocation2 + $0x1a0] sm:$0xf]
    %v1279 = vld [vmem:[#allocation2 + $0x1a8] sm:$0xf]
    %v1280 = vld [vmem:[#allocation2 + $0x1b0] sm:$0xf]
    %v1281 = vld [vmem:[#allocation2 + $0x1b8] sm:$0xf]
    %v1282 = vld [vmem:[#allocation2 + $0x1c0] sm:$0xf]
    %v1283 = vld [vmem:[#allocation2 + $0x1c8] sm:$0xf]
    %v1284 = vld [vmem:[#allocation2 + $0x1d0] sm:$0xf]
    %v1285 = vld [vmem:[#allocation2 + $0x1d8] sm:$0xf]
    %v1286 = vld [vmem:[#allocation2 + $0x1e0] sm:$0xf]
    %v1287 = vld [vmem:[#allocation2 + $0x1e8] sm:$0xf]
    %v1288 = vld [vmem:[#allocation2 + $0x1f0] sm:$0xf]
    %v1289 = vld [vmem:[#allocation2 + $0x1f8] sm:$0xf]
    %v1290 = vld [vmem:[#allocation2 + $0x200] sm:$0xf]
    %v1291 = vld [vmem:[#allocation2 + $0x208] sm:$0xf]
    %v1292 = vpack.c.bf16 %v1258, %v1256
    %v1293 = vpack.c.bf16 %v1259, %v1257
    %v1294 = vld [vmem:[%s3 + $0x2] ss:$0 sm:$0xff]
    %v1327 = vunpack.c.l.b16 %v1260
    %v1328 = vunpack.c.l.b16 %v1261
    %v1329 = vunpack.c.l.b16 %v1262
    %v1330 = vunpack.c.l.b16 %v1263
    %v1331 = vunpack.c.l.b16 %v1264
    %v1332 = vunpack.c.l.b16 %v1265
    %v1333 = vunpack.c.l.b16 %v1266
    %v1334 = vunpack.c.l.b16 %v1267
    %v1335 = vunpack.c.l.b16 %v1268
    %v1336 = vunpack.c.l.b16 %v1269
    %v1337 = vunpack.c.l.b16 %v1270
    %v1338 = vunpack.c.l.b16 %v1271
    %v1339 = vunpack.c.l.b16 %v1272
    %v1340 = vunpack.c.l.b16 %v1273
    %v1341 = vunpack.c.l.b16 %v1274
    %v1342 = vunpack.c.l.b16 %v1275
    %v1343 = vunpack.c.l.b16 %v1276
    %v1344 = vunpack.c.l.b16 %v1277
    %v1345 = vunpack.c.l.b16 %v1278
    %v1346 = vunpack.c.l.b16 %v1279
    %v1347 = vunpack.c.l.b16 %v1280
    %v1348 = vunpack.c.l.b16 %v1281
    %v1349 = vunpack.c.l.b16 %v1282
    %v1350 = vunpack.c.l.b16 %v1283
    %v1351 = vunpack.c.l.b16 %v1284
    %v1352 = vunpack.c.l.b16 %v1285
    %v1353 = vunpack.c.l.b16 %v1286
    %v1354 = vunpack.c.l.b16 %v1287
    %v1355 = vunpack.c.l.b16 %v1288
    %v1356 = vunpack.c.l.b16 %v1289
    %v1357 = vunpack.c.l.b16 %v1290
    %v1358 = vunpack.c.l.b16 %v1291
    %v1359 = vpack.c.b16 %v1328, %v1327
    %v1360 = vpack.c.b16 %v1330, %v1329
    %v1361 = vpack.c.b16 %v1332, %v1331
    %v1362 = vpack.c.b16 %v1334, %v1333
    %v1363 = vpack.c.b16 %v1336, %v1335
    %v1364 = vpack.c.b16 %v1338, %v1337
    %v1365 = vpack.c.b16 %v1340, %v1339
    %v1366 = vpack.c.b16 %v1342, %v1341
    %v1367 = vpack.c.b16 %v1344, %v1343
    %v1368 = vpack.c.b16 %v1346, %v1345
    %v1369 = vpack.c.b16 %v1348, %v1347
    %v1370 = vpack.c.b16 %v1350, %v1349
    %v1371 = vpack.c.b16 %v1352, %v1351
    %v1372 = vpack.c.b16 %v1354, %v1353
    %v1373 = vpack.c.b16 %v1356, %v1355
    %v1374 = vpack.c.b16 %v1358, %v1357
    %1391 = vmatprep.subr.bf16.mxu0 0
    %1392 = vmatpush1.bf16.msra.mxu0 %v1366
    %1393 = vmatprep.subr.bf16.mxu0 0
    %1394 = vmatpush1.bf16.msra.mxu0 %v1365
    %1395 = vmatprep.subr.bf16.mxu0 0
    %1396 = vmatpush1.bf16.msra.mxu0 %v1364
    %1397 = vmatprep.subr.bf16.mxu0 0
    %1398 = vmatpush1.bf16.msra.mxu0 %v1363
    %1399 = vmatprep.subr.bf16.mxu0 0
    %1400 = vmatpush1.bf16.msra.mxu0 %v1362
    %1401 = vmatprep.subr.bf16.mxu0 0
    %1402 = vmatpush1.bf16.msra.mxu0 %v1361
    %1403 = vmatprep.subr.bf16.mxu0 0
    %1404 = vmatpush1.bf16.msra.mxu0 %v1360
    %1405 = vmatprep.subr.bf16.mxu0 0
    %1406 = vmatpush1.bf16.msra.mxu0 %v1359
    %1407 = vmatprep.subr.bf16.mxu0 0
    %1408 = vmatpush2.bf16.msra.mxu0 %v1374
    %1409 = vmatprep.subr.bf16.mxu0 0
    %1410 = vmatpush2.bf16.msra.mxu0 %v1373
    %1411 = vmatprep.subr.bf16.mxu0 0
    %1412 = vmatpush2.bf16.msra.mxu0 %v1372
    %1413 = vmatprep.subr.bf16.mxu0 0
    %1414 = vmatpush2.bf16.msra.mxu0 %v1371
    %1415 = vmatprep.subr.bf16.mxu0 0
    %1416 = vmatpush2.bf16.msra.mxu0 %v1370
    %1417 = vmatprep.subr.bf16.mxu0 0
    %1418 = vmatpush2.bf16.msra.mxu0 %v1369
    %1419 = vmatprep.subr.bf16.mxu0 0
    %1420 = vmatpush2.bf16.msra.mxu0 %v1368
    %1421 = vmatprep.subr.bf16.mxu0 0
    %1422 = vmatpush2.bf16.msra.mxu0 %v1367
    %1423 = vmatprep.mubr.bf16.mxu0 %v1293
    %1424 = vmatmul.mubr.bf16.gmra.mxu0 %v1292
    %v1425 = vpop.f32.mrf.mxu0
    %v1426 = vadd.f32 %v1294, %v1425
    %v1427 = vpop.f32.mrf.mxu0
    %v1428 = vpop.f32.mrf.mxu0
    %v1429 = vadd.f32 %v1294, %v1428
    %v1430 = vpop.f32.mrf.mxu0
    %1431 = vdwg.mxu0
    %v1432 = vmin.f32 %v1426, 0.0
    %v1433 = vmin.f32 %v1429, 0.0
    %v1434 = vmul.f32 %v1432, 1.442695
    %v1435 = vpow.pop %v1434
    %v1436 = vmul.f32 %v1433, 1.442695
    %v1437 = vpow.pop %v1436
    %vm1438 = vcmp.gt.f32.partialorder %v1426, 0.0
    %vm1439 = vcmp.gt.f32.partialorder %v1429, 0.0
    %v1440 = vsub.f32 %v1435, 1.0
    %v1441 = vsub.f32 %v1437, 1.0
    %v1442 = vsel %vm1438, %v1426, %v1440
    %v1443 = vsel %vm1439, %v1429, %v1441
    %v1444 = vld [vmem:[#allocation2 + $0x210] sm:$0xf]
    %v1445 = vld [vmem:[#allocation2 + $0x218] sm:$0xf]
    %v1446 = vld [vmem:[#allocation2 + $0x220] sm:$0xf]
    %v1447 = vld [vmem:[#allocation2 + $0x228] sm:$0xf]
    %v1448 = vld [vmem:[#allocation2 + $0x230] sm:$0xf]
    %v1449 = vld [vmem:[#allocation2 + $0x238] sm:$0xf]
    %v1450 = vld [vmem:[#allocation2 + $0x240] sm:$0xf]
    %v1451 = vld [vmem:[#allocation2 + $0x248] sm:$0xf]
    %v1452 = vld [vmem:[#allocation2 + $0x250] sm:$0xf]
    %v1453 = vld [vmem:[#allocation2 + $0x258] sm:$0xf]
    %v1454 = vld [vmem:[#allocation2 + $0x260] sm:$0xf]
    %v1455 = vld [vmem:[#allocation2 + $0x268] sm:$0xf]
    %v1456 = vld [vmem:[#allocation2 + $0x270] sm:$0xf]
    %v1457 = vld [vmem:[#allocation2 + $0x278] sm:$0xf]
    %v1458 = vld [vmem:[#allocation2 + $0x280] sm:$0xf]
    %v1459 = vld [vmem:[#allocation2 + $0x288] sm:$0xf]
    %v1460 = vpack.c.bf16 %v1443, %v1442
    %v1461 = vld [vmem:[%s3 + $0x3] ss:$0 sm:$0xff]
    %v1478 = vunpack.c.l.b16 %v1444
    %v1479 = vunpack.c.l.b16 %v1445
    %v1480 = vunpack.c.l.b16 %v1446
    %v1481 = vunpack.c.l.b16 %v1447
    %v1482 = vunpack.c.l.b16 %v1448
    %v1483 = vunpack.c.l.b16 %v1449
    %v1484 = vunpack.c.l.b16 %v1450
    %v1485 = vunpack.c.l.b16 %v1451
    %v1486 = vunpack.c.l.b16 %v1452
    %v1487 = vunpack.c.l.b16 %v1453
    %v1488 = vunpack.c.l.b16 %v1454
    %v1489 = vunpack.c.l.b16 %v1455
    %v1490 = vunpack.c.l.b16 %v1456
    %v1491 = vunpack.c.l.b16 %v1457
    %v1492 = vunpack.c.l.b16 %v1458
    %v1493 = vunpack.c.l.b16 %v1459
    %v1494 = vpack.c.b16 %v1479, %v1478
    %v1495 = vpack.c.b16 %v1481, %v1480
    %v1496 = vpack.c.b16 %v1483, %v1482
    %v1497 = vpack.c.b16 %v1485, %v1484
    %v1498 = vpack.c.b16 %v1487, %v1486
    %v1499 = vpack.c.b16 %v1489, %v1488
    %v1500 = vpack.c.b16 %v1491, %v1490
    %v1501 = vpack.c.b16 %v1493, %v1492
    %1510 = vmatprep.subr.bf16.mxu0 0
    %1511 = vmatpush1.bf16.msra.mxu0 %v1501
    %1512 = vmatprep.subr.bf16.mxu0 0
    %1513 = vmatpush1.bf16.msra.mxu0 %v1500
    %1514 = vmatprep.subr.bf16.mxu0 0
    %1515 = vmatpush1.bf16.msra.mxu0 %v1499
    %1516 = vmatprep.subr.bf16.mxu0 0
    %1517 = vmatpush1.bf16.msra.mxu0 %v1498
    %1518 = vmatprep.subr.bf16.mxu0 0
    %1519 = vmatpush1.bf16.msra.mxu0 %v1497
    %1520 = vmatprep.subr.bf16.mxu0 0
    %1521 = vmatpush1.bf16.msra.mxu0 %v1496
    %1522 = vmatprep.subr.bf16.mxu0 0
    %1523 = vmatpush1.bf16.msra.mxu0 %v1495
    %1524 = vmatprep.subr.bf16.mxu0 0
    %1525 = vmatpush1.bf16.msra.mxu0 %v1494
    %1526 = vmatprep.subr.bf16.mxu0 0
    %1527 = vmatpush2.bf16.msra.mxu0 0
    %1528 = vmatprep.subr.bf16.mxu0 0
    %1529 = vmatpush2.bf16.msra.mxu0 0
    %1530 = vmatprep.subr.bf16.mxu0 0
    %1531 = vmatpush2.bf16.msra.mxu0 0
    %1532 = vmatprep.subr.bf16.mxu0 0
    %1533 = vmatpush2.bf16.msra.mxu0 0
    %1534 = vmatprep.subr.bf16.mxu0 0
    %1535 = vmatpush2.bf16.msra.mxu0 0
    %1536 = vmatprep.subr.bf16.mxu0 0
    %1537 = vmatpush2.bf16.msra.mxu0 0
    %1538 = vmatprep.subr.bf16.mxu0 0
    %1539 = vmatpush2.bf16.msra.mxu0 0
    %1540 = vmatprep.subr.bf16.mxu0 0
    %1541 = vmatpush2.bf16.msra.mxu0 0
    %1542 = vmatprep.mubr.bf16.mxu0 0
    %1543 = vmatmul.mubr.bf16.gmra.mxu0 %v1460
    %v1544 = vpop.f32.mrf.mxu0
    %v1545 = vadd.f32 %v1461, %v1544
    %v1546 = vpop.f32.mrf.mxu0
    %v1547 = vpop.f32.mrf.mxu0
    %v1548 = vadd.f32 %v1461, %v1547
    %v1549 = vpop.f32.mrf.mxu0
    %1550 = vdwg.mxu0
    %v1551 = vmin.f32 %v1545, 0.0
    %v1552 = vmin.f32 %v1548, 0.0
    %v1553 = vmul.f32 %v1551, 1.442695
    %v1554 = vpow.pop %v1553
    %v1555 = vmul.f32 %v1552, 1.442695
    %v1556 = vpow.pop %v1555
    %vm1557 = vcmp.gt.f32.partialorder %v1545, 0.0
    %vm1558 = vcmp.gt.f32.partialorder %v1548, 0.0
    %v1559 = vsub.f32 %v1554, 1.0
    %v1560 = vsub.f32 %v1556, 1.0
    %v1561 = vsel %vm1557, %v1545, %v1559
    %v1562 = vsel %vm1558, %v1548, %v1560
    %v1563 = vld [vmem:[#allocation2 + $0x290] sm:$0xf]
    %v1564 = vld [vmem:[#allocation2 + $0x298] sm:$0xf]
    %v1565 = vld [vmem:[#allocation2 + $0x2a0] sm:$0xf]
    %v1566 = vld [vmem:[#allocation2 + $0x2a8] sm:$0xf]
    %v1567 = vld [vmem:[#allocation2 + $0x2b0] sm:$0xf]
    %v1568 = vld [vmem:[#allocation2 + $0x2b8] sm:$0xf]
    %v1569 = vld [vmem:[#allocation2 + $0x2c0] sm:$0xf]
    %v1570 = vld [vmem:[#allocation2 + $0x2c8] sm:$0xf]
    %v1571 = vpack.c.bf16 %v1562, %v1561
    %v1572 = vld [vmem:[%s3 + $0x4] ss:$0 sm:$0xff]
    %v1581 = vunpack.c.l.b16 %v1563
    %v1582 = vunpack.c.l.b16 %v1564
    %v1583 = vunpack.c.l.b16 %v1565
    %v1584 = vunpack.c.l.b16 %v1566
    %v1585 = vunpack.c.l.b16 %v1567
    %v1586 = vunpack.c.l.b16 %v1568
    %v1587 = vunpack.c.l.b16 %v1569
    %v1588 = vunpack.c.l.b16 %v1570
    %v1589 = vpack.c.b16 %v1582, %v1581
    %v1590 = vpack.c.b16 %v1584, %v1583
    %v1591 = vpack.c.b16 %v1586, %v1585
    %v1592 = vpack.c.b16 %v1588, %v1587
    %vm1597 = vcmask 523264
    %v1599 = vsel %vm1597, %v1571, 0
    %1601 = vmatprep.subr.bf16.mxu0 0
    %1602 = vmatpush1.bf16.msra.mxu0 0
    %1603 = vmatprep.subr.bf16.mxu0 0
    %1604 = vmatpush1.bf16.msra.mxu0 0
    %1605 = vmatprep.subr.bf16.mxu0 0
    %1606 = vmatpush1.bf16.msra.mxu0 0
    %1607 = vmatprep.subr.bf16.mxu0 0
    %1608 = vmatpush1.bf16.msra.mxu0 0
    %1609 = vmatprep.subr.bf16.mxu0 0
    %1610 = vmatpush1.bf16.msra.mxu0 %v1592
    %1611 = vmatprep.subr.bf16.mxu0 0
    %1612 = vmatpush1.bf16.msra.mxu0 %v1591
    %1613 = vmatprep.subr.bf16.mxu0 0
    %1614 = vmatpush1.bf16.msra.mxu0 %v1590
    %1615 = vmatprep.subr.bf16.mxu0 0
    %1616 = vmatpush1.bf16.msra.mxu0 %v1589
    %1617 = vmatprep.subr.bf16.mxu0 0
    %1618 = vmatpush2.bf16.msra.mxu0 0
    %1619 = vmatprep.subr.bf16.mxu0 0
    %1620 = vmatpush2.bf16.msra.mxu0 0
    %1621 = vmatprep.subr.bf16.mxu0 0
    %1622 = vmatpush2.bf16.msra.mxu0 0
    %1623 = vmatprep.subr.bf16.mxu0 0
    %1624 = vmatpush2.bf16.msra.mxu0 0
    %1625 = vmatprep.subr.bf16.mxu0 0
    %1626 = vmatpush2.bf16.msra.mxu0 0
    %1627 = vmatprep.subr.bf16.mxu0 0
    %1628 = vmatpush2.bf16.msra.mxu0 0
    %1629 = vmatprep.subr.bf16.mxu0 0
    %1630 = vmatpush2.bf16.msra.mxu0 0
    %1631 = vmatprep.subr.bf16.mxu0 0
    %1632 = vmatpush2.bf16.msra.mxu0 0
    %1633 = vmatprep.mubr.bf16.mxu0 0
    %1634 = vmatmul.mubr.bf16.gmra.mxu0 %v1599
    %v1635 = vpop.f32.mrf.mxu0
    %v1636 = vadd.f32 %v1572, %v1635
    %v1637 = vpop.f32.mrf.mxu0
    %v1638 = vpop.f32.mrf.mxu0
    %v1639 = vadd.f32 %v1572, %v1638
    %v1640 = vpop.f32.mrf.mxu0
    %1641 = vdwg.mxu0
    %v1642 = vmin.f32 %v1636, 0.0
    %v1643 = vmin.f32 %v1639, 0.0
    %v1644 = vmul.f32 %v1642, 1.442695
    %v1645 = vpow.pop %v1644
    %v1646 = vmul.f32 %v1643, 1.442695
    %v1647 = vpow.pop %v1646
    %vm1648 = vcmp.gt.f32.partialorder %v1636, 0.0
    %vm1649 = vcmp.gt.f32.partialorder %v1639, 0.0
    %v1650 = vsub.f32 %v1645, 1.0
    %v1651 = vsub.f32 %v1647, 1.0
    %v1652 = vsel %vm1648, %v1636, %v1650
    %v1653 = vsel %vm1649, %v1639, %v1651
    %v1654 = vld [vmem:[#allocation2 + $0x2d0] sm:$0xf]
    %v1655 = vld [vmem:[#allocation2 + $0x2d8] sm:$0xf]
    %v1656 = vld [vmem:[#allocation2 + $0x2e0] sm:$0xf]
    %v1657 = vld [vmem:[#allocation2 + $0x2e8] sm:$0xf]
    %v1658 = vpack.c.bf16 %v1653, %v1652
    %v1659 = vld [vmem:[%s3 + $0x5] ss:$0 sm:$0xff]
    %v1664 = vunpack.c.l.b16 %v1654
    %v1665 = vunpack.c.l.b16 %v1655
    %v1666 = vunpack.c.l.b16 %v1656
    %v1667 = vunpack.c.l.b16 %v1657
    %v1668 = vpack.c.b16 %v1665, %v1664
    %v1669 = vpack.c.b16 %v1667, %v1666
    %vm1672 = vcmask 261120
    %v1674 = vsel %vm1672, %v1658, 0
    %1676 = vmatprep.subr.bf16.mxu0 0
    %1677 = vmatpush1.bf16.msra.mxu0 0
    %1678 = vmatprep.subr.bf16.mxu0 0
    %1679 = vmatpush1.bf16.msra.mxu0 0
    %1680 = vmatprep.subr.bf16.mxu0 0
    %1681 = vmatpush1.bf16.msra.mxu0 0
    %1682 = vmatprep.subr.bf16.mxu0 0
    %1683 = vmatpush1.bf16.msra.mxu0 0
    %1684 = vmatprep.subr.bf16.mxu0 0
    %1685 = vmatpush1.bf16.msra.mxu0 0
    %1686 = vmatprep.subr.bf16.mxu0 0
    %1687 = vmatpush1.bf16.msra.mxu0 0
    %1688 = vmatprep.subr.bf16.mxu0 0
    %1689 = vmatpush1.bf16.msra.mxu0 %v1669
    %1690 = vmatprep.subr.bf16.mxu0 0
    %1691 = vmatpush1.bf16.msra.mxu0 %v1668
    %1692 = vmatprep.subr.bf16.mxu0 0
    %1693 = vmatpush2.bf16.msra.mxu0 0
    %1694 = vmatprep.subr.bf16.mxu0 0
    %1695 = vmatpush2.bf16.msra.mxu0 0
    %1696 = vmatprep.subr.bf16.mxu0 0
    %1697 = vmatpush2.bf16.msra.mxu0 0
    %1698 = vmatprep.subr.bf16.mxu0 0
    %1699 = vmatpush2.bf16.msra.mxu0 0
    %1700 = vmatprep.subr.bf16.mxu0 0
    %1701 = vmatpush2.bf16.msra.mxu0 0
    %1702 = vmatprep.subr.bf16.mxu0 0
    %1703 = vmatpush2.bf16.msra.mxu0 0
    %1704 = vmatprep.subr.bf16.mxu0 0
    %1705 = vmatpush2.bf16.msra.mxu0 0
    %1706 = vmatprep.subr.bf16.mxu0 0
    %1707 = vmatpush2.bf16.msra.mxu0 0
    %1708 = vmatprep.mubr.bf16.mxu0 0
    %1709 = vmatmul.mubr.bf16.gmra.mxu0 %v1674
    %v1710 = vpop.f32.mrf.mxu0
    %v1711 = vadd.f32 %v1659, %v1710
    %v1712 = vpop.f32.mrf.mxu0
    %v1713 = vpop.f32.mrf.mxu0
    %v1714 = vadd.f32 %v1659, %v1713
    %v1715 = vpop.f32.mrf.mxu0
    %1716 = vdwg.mxu0
    %vm1717 = vcmask 64512
    %1718 = vst.msk [vmem:[%s4] sm:$0xff] %vm1717, %v1711
    %1719 = vst.msk [vmem:[%s4 + $0x8] sm:$0xff] %vm1717, %v1714
    // Predicated region
    $region22: #{tpu_custom_call.1} parent=1 // pred_check
      _
    $region23: #{tpu_custom_call.1} parent=1 // pred_check_branch
      %1721 = sbr.rel (0) target = $region25
    $region24: #{tpu_custom_call.1} parent=1 // pred_region
      _
    $region25: #{tpu_custom_call.1} parent=1 // pred_fallthru
      _
    // Predicated region
    $region26: #{tpu_custom_call.1} parent=1 // pred_check
      _
    $region27: #{tpu_custom_call.1} parent=1 // pred_check_branch
      %1723 = sbr.rel (0) target = $region29
    $region28: #{tpu_custom_call.1} parent=1 // pred_region
      _
    $region29: #{tpu_custom_call.1} parent=1 // pred_fallthru
      _
    %1724 = vsyncpa [#allocation3], 1

// kernel: tpu_custom_call.1
$region0: #{tpu_custom_call.1}
  #allocation0 [shape = 'u32[]', space=smem, size = 0x4, offset = 0x4, fixed_abs, tag = 'smem constant byte address 0x4 - core index']
  #allocation1 [shape = 'u32[144,128]{1,0:T(1,128)}', space=vmem, size = 0x12000, scoped, tag = 'internal scratch']
  %s0 = inlined_call_operand.vmem [shape: bf16[128,16], index: 0, kind: input, shape index: {}]
  %s1 = inlined_call_operand.vmem [shape: f32[16,3], index: 1, kind: input, shape index: {}]
  %s2 = inlined_call_operand.hbm [shape: bf16[752,256], index: 2, kind: input, shape index: {}]
  %s3 = inlined_call_operand.vmem [shape: f32[16,256], index: 3, kind: input, shape index: {}]
  %s4 = inlined_call_operand.vmem [shape: f32[16,8], index: 4, kind: output, shape index: {}]
  %s5 = sld [smem:[#allocation0]]
  $region30: #{tpu_custom_call.1} parent=0
    _
  %s7 = ssub.s32 1, %s5
  %s8 = scalar_select 0, %s7, %s5
  $region1: #{tpu_custom_call.1} parent=0
    #allocation2 [shape = 'u8[385024]{0}', space=vmem, size = 0x5e000, scoped, tag = 'input window, operand 2, single buffered']
    #allocation3 [shape = 's32[1]{0}', space=sflag, size = 0x4, scoped, tag = 'scoped memory for tpu_custom_call.1']
    %9 = vsyncpa [#allocation3], 0
    // Predicated region
    $region2: #{tpu_custom_call.1} parent=1 // pred_check
      _
    $region3: #{tpu_custom_call.1} parent=1 // pred_check_branch
      %11 = sbr.rel (0) target = $region5
    $region4: #{tpu_custom_call.1} parent=1 // pred_region
      _
    $region5: #{tpu_custom_call.1} parent=1 // pred_fallthru
      _
    // Predicated region
    $region6: #{tpu_custom_call.1} parent=1 // pred_check
      _
    $region7: #{tpu_custom_call.1} parent=1 // pred_check_branch
      %13 = sbr.rel (0) target = $region9
    $region8: #{tpu_custom_call.1} parent=1 // pred_region
      _
    $region9: #{tpu_custom_call.1} parent=1 // pred_fallthru
      _
    // Predicated region
    $region10: #{tpu_custom_call.1} parent=1 // pred_check
      _
    $region11: #{tpu_custom_call.1} parent=1 // pred_check_branch
      %15 = sbr.rel (0) target = $region13
    $region12: #{tpu_custom_call.1} parent=1 // pred_region
      %s17 = ssub.s32 12032, 12032
      %18 = vsyncadd [#allocation3], %s17
      %s19 = sshll.u32 [#allocation2], 4
      %s20 = int_to_ptr.vmem [resolvable:$true] %s19
      %25 = dma.hbm_to_vmem [thread:$0]  %s2, 12032, %s20, [#allocation3], 128, 128, 8
    $region13: #{tpu_custom_call.1} parent=1 // pred_fallthru
      _
    // Predicated region
    $region14: #{tpu_custom_call.1} parent=1 // pred_check
      _
    $region15: #{tpu_custom_call.1} parent=1 // pred_check_branch
      %27 = sbr.rel (0) target = $region17
    $region16: #{tpu_custom_call.1} parent=1 // pred_region
      _
    $region17: #{tpu_custom_call.1} parent=1 // pred_fallthru
      _
    // Predicated region
    $region18: #{tpu_custom_call.1} parent=1 // pred_check
      _
    $region19: #{tpu_custom_call.1} parent=1 // pred_check_branch
      %29 = sbr.rel (0) target = $region21
    $region20: #{tpu_custom_call.1} parent=1 // pred_region
      %30 = dma.done [#allocation3], 12032
    $region21: #{tpu_custom_call.1} parent=1 // pred_fallthru
      _
    %v32 = vld [vmem:[%s0] sm:$0xf]
    %v33 = vld [vmem:[%s0 + $0x4] sm:$0xf]
    %v34 = vld [vmem:[%s0 + $0x8] sm:$0xf]
    %v35 = vld [vmem:[%s0 + $0xc] sm:$0xf]
    %v36 = vld [vmem:[%s0 + $0x10] sm:$0xf]
    %v37 = vld [vmem:[%s0 + $0x14] sm:$0xf]
    %v38 = vld [vmem:[%s0 + $0x18] sm:$0xf]
    %v39 = vld [vmem:[%s0 + $0x1c] sm:$0xf]
    %v40 = vld [vmem:[%s0 + $0x20] sm:$0xf]
    %v41 = vld [vmem:[%s0 + $0x24] sm:$0xf]
    %v42 = vld [vmem:[%s0 + $0x28] sm:$0xf]
    %v43 = vld [vmem:[%s0 + $0x2c] sm:$0xf]
    %v44 = vld [vmem:[%s0 + $0x30] sm:$0xf]
    %v45 = vld [vmem:[%s0 + $0x34] sm:$0xf]
    %v46 = vld [vmem:[%s0 + $0x38] sm:$0xf]
    %v47 = vld [vmem:[%s0 + $0x3c] sm:$0xf]
    %v48 = vunpack.c.l.bf16 %v32
    %v49 = vunpack.c.l.bf16 %v33
    %v50 = vunpack.c.l.bf16 %v34
    %v51 = vunpack.c.l.bf16 %v35
    %v52 = vunpack.c.l.bf16 %v36
    %v53 = vunpack.c.l.bf16 %v37
    %v54 = vunpack.c.l.bf16 %v38
    %v55 = vunpack.c.l.bf16 %v39
    %v56 = vunpack.c.l.bf16 %v40
    %v57 = vunpack.c.l.bf16 %v41
    %v58 = vunpack.c.l.bf16 %v42
    %v59 = vunpack.c.l.bf16 %v43
    %v60 = vunpack.c.l.bf16 %v44
    %v61 = vunpack.c.l.bf16 %v45
    %v62 = vunpack.c.l.bf16 %v46
    %v63 = vunpack.c.l.bf16 %v47
    %v64 = vld [vmem:[#allocation2] sm:$0xff]
    %v65 = vld [vmem:[#allocation2 + $0x8] sm:$0xff]
    %v66 = vld [vmem:[%s3] ss:$8 sm:$0x3]
    %v68 = vlaneseq
    %v69 = vshrl.u32 %v68, 7
    %v70 = vsub.s32 0, %v69
    %v71 = vrot.slane %v66, %v70
    %v72 = vlaneseq
    %v73 = vshrl.u32 %v72, 7
    %v74 = vsub.s32 1, %v73
    %v75 = vrot.slane %v66, %v74
    %v94 = vunpack.c.l.b16 %v32
    %v95 = vunpack.c.l.b16 %v33
    %v96 = vunpack.c.l.b16 %v34
    %v97 = vunpack.c.l.b16 %v35
    %v98 = vunpack.c.l.b16 %v36
    %v99 = vunpack.c.l.b16 %v37
    %v100 = vunpack.c.l.b16 %v38
    %v101 = vunpack.c.l.b16 %v39
    %v102 = vunpack.c.l.b16 %v40
    %v103 = vunpack.c.l.b16 %v41
    %v104 = vunpack.c.l.b16 %v42
    %v105 = vunpack.c.l.b16 %v43
    %v106 = vunpack.c.l.b16 %v44
    %v107 = vunpack.c.l.b16 %v45
    %v108 = vunpack.c.l.b16 %v46
    %v109 = vunpack.c.l.b16 %v47
    %v110 = vpack.c.b16 %v95, %v94
    %v111 = vpack.c.b16 %v97, %v96
    %v112 = vpack.c.b16 %v99, %v98
    %v113 = vpack.c.b16 %v101, %v100
    %v114 = vpack.c.b16 %v103, %v102
    %v115 = vpack.c.b16 %v105, %v104
    %v116 = vpack.c.b16 %v107, %v106
    %v117 = vpack.c.b16 %v109, %v108
    %v120 = vunpack.c.l.b16 %v64
    %v121 = vunpack.c.h.b16 %v64
    %v122 = vunpack.c.l.b16 %v65
    %v123 = vunpack.c.h.b16 %v65
    %v124 = vpack.c.b16 %v122, %v120
    %v125 = vpack.c.b16 %v123, %v121
    %vm128 = vcmask 130048
    %v130 = vsel %vm128, %v110, 0
    %v133 = vsel %vm128, %v111, 0
    %v136 = vsel %vm128, %v112, 0
    %v139 = vsel %vm128, %v113, 0
    %v142 = vsel %vm128, %v114, 0
    %v145 = vsel %vm128, %v115, 0
    %v148 = vsel %vm128, %v116, 0
    %v151 = vsel %vm128, %v117, 0
    %153 = vmatprep.subr.bf16.mxu0 0
    %154 = vmatpush1.bf16.msra.mxu0 0
    %155 = vmatprep.subr.bf16.mxu0 0
    %156 = vmatpush1.bf16.msra.mxu0 0
    %157 = vmatprep.subr.bf16.mxu0 0
    %158 = vmatpush1.bf16.msra.mxu0 0
    %159 = vmatprep.subr.bf16.mxu0 0
    %160 = vmatpush1.bf16.msra.mxu0 0
    %161 = vmatprep.subr.bf16.mxu0 0
    %162 = vmatpush1.bf16.msra.mxu0 0
    %163 = vmatprep.subr.bf16.mxu0 0
    %164 = vmatpush1.bf16.msra.mxu0 0
    %165 = vmatprep.subr.bf16.mxu0 0
    %166 = vmatpush1.bf16.msra.mxu0 0
    %167 = vmatprep.subr.bf16.mxu0 %v125
    %168 = vmatpush1.bf16.msra.mxu0 %v124
    %169 = vmatprep.subr.bf16.mxu0 0
    %170 = vmatpush2.bf16.msra.mxu0 0
    %171 = vmatprep.subr.bf16.mxu0 0
    %172 = vmatpush2.bf16.msra.mxu0 0
    %173 = vmatprep.subr.bf16.mxu0 0
    %174 = vmatpush2.bf16.msra.mxu0 0
    %175 = vmatprep.subr.bf16.mxu0 0
    %176 = vmatpush2.bf16.msra.mxu0 0
    %177 = vmatprep.subr.bf16.mxu0 0
    %178 = vmatpush2.bf16.msra.mxu0 0
    %179 = vmatprep.subr.bf16.mxu0 0
    %180 = vmatpush2.bf16.msra.mxu0 0
    %181 = vmatprep.subr.bf16.mxu0 0
    %182 = vmatpush2.bf16.msra.mxu0 0
    %183 = vmatprep.subr.bf16.mxu0 0
    %184 = vmatpush2.bf16.msra.mxu0 0
    %185 = vmatprep.mubr.bf16.mxu0 0
    %186 = vmatmul.mubr.bf16.gmra.mxu0 %v130
    %v187 = vpop.f32.mrf.mxu0
    %v188 = vadd.f32 %v71, %v187
    %v189 = vpop.f32.mrf.mxu0
    %v190 = vadd.f32 %v75, %v189
    %v191 = vpop.f32.mrf.mxu0
    %v192 = vadd.f32 %v71, %v191
    %v193 = vpop.f32.mrf.mxu0
    %v194 = vadd.f32 %v75, %v193
    %195 = vmatprep.mubr.bf16.mxu0 0
    %196 = vmatmul.mubr.bf16.gmra.mxu0 %v133
    %v197 = vpop.f32.mrf.mxu0
    %v198 = vadd.f32 %v71, %v197
    %v199 = vpop.f32.mrf.mxu0
    %v200 = vadd.f32 %v75, %v199
    %v201 = vpop.f32.mrf.mxu0
    %v202 = vadd.f32 %v71, %v201
    %v203 = vpop.f32.mrf.mxu0
    %v204 = vadd.f32 %v75, %v203
    %205 = vmatprep.mubr.bf16.mxu0 0
    %206 = vmatmul.mubr.bf16.gmra.mxu0 %v136
    %v207 = vpop.f32.mrf.mxu0
    %v208 = vadd.f32 %v71, %v207
    %v209 = vpop.f32.mrf.mxu0
    %v210 = vadd.f32 %v75, %v209
    %v211 = vpop.f32.mrf.mxu0
    %v212 = vadd.f32 %v71, %v211
    %v213 = vpop.f32.mrf.mxu0
    %v214 = vadd.f32 %v75, %v213
    %215 = vmatprep.mubr.bf16.mxu0 0
    %216 = vmatmul.mubr.bf16.gmra.mxu0 %v139
    %v217 = vpop.f32.mrf.mxu0
    %v218 = vadd.f32 %v71, %v217
    %v219 = vpop.f32.mrf.mxu0
    %v220 = vadd.f32 %v75, %v219
    %v221 = vpop.f32.mrf.mxu0
    %v222 = vadd.f32 %v71, %v221
    %v223 = vpop.f32.mrf.mxu0
    %v224 = vadd.f32 %v75, %v223
    %225 = vmatprep.mubr.bf16.mxu0 0
    %226 = vmatmul.mubr.bf16.gmra.mxu0 %v142
    %v227 = vpop.f32.mrf.mxu0
    %v228 = vadd.f32 %v71, %v227
    %v229 = vpop.f32.mrf.mxu0
    %v230 = vadd.f32 %v75, %v229
    %v231 = vpop.f32.mrf.mxu0
    %v232 = vadd.f32 %v71, %v231
    %v233 = vpop.f32.mrf.mxu0
    %v234 = vadd.f32 %v75, %v233
    %235 = vmatprep.mubr.bf16.mxu0 0
    %236 = vmatmul.mubr.bf16.gmra.mxu0 %v145
    %v237 = vpop.f32.mrf.mxu0
    %v238 = vadd.f32 %v71, %v237
    %v239 = vpop.f32.mrf.mxu0
    %v240 = vadd.f32 %v75, %v239
    %v241 = vpop.f32.mrf.mxu0
    %v242 = vadd.f32 %v71, %v241
    %v243 = vpop.f32.mrf.mxu0
    %v244 = vadd.f32 %v75, %v243
    %245 = vmatprep.mubr.bf16.mxu0 0
    %246 = vmatmul.mubr.bf16.gmra.mxu0 %v148
    %v247 = vpop.f32.mrf.mxu0
    %v248 = vadd.f32 %v71, %v247
    %v249 = vpop.f32.mrf.mxu0
    %v250 = vadd.f32 %v75, %v249
    %v251 = vpop.f32.mrf.mxu0
    %v252 = vadd.f32 %v71, %v251
    %v253 = vpop.f32.mrf.mxu0
    %v254 = vadd.f32 %v75, %v253
    %255 = vmatprep.mubr.bf16.mxu0 0
    %256 = vmatmul.mubr.bf16.gmra.mxu0 %v151
    %v257 = vpop.f32.mrf.mxu0
    %v258 = vadd.f32 %v71, %v257
    %v259 = vpop.f32.mrf.mxu0
    %v260 = vadd.f32 %v75, %v259
    %v261 = vpop.f32.mrf.mxu0
    %v262 = vadd.f32 %v71, %v261
    %v263 = vpop.f32.mrf.mxu0
    %v264 = vadd.f32 %v75, %v263
    %265 = vdwg.mxu0
    %v266 = vmin.f32 %v188, 0.0
    %v267 = vmin.f32 %v190, 0.0
    %v268 = vmin.f32 %v192, 0.0
    %v269 = vmin.f32 %v194, 0.0
    %v270 = vmin.f32 %v198, 0.0
    %v271 = vmin.f32 %v200, 0.0
    %v272 = vmin.f32 %v202, 0.0
    %v273 = vmin.f32 %v204, 0.0
    %v274 = vmin.f32 %v208, 0.0
    %v275 = vmin.f32 %v210, 0.0
    %v276 = vmin.f32 %v212, 0.0
    %v277 = vmin.f32 %v214, 0.0
    %v278 = vmin.f32 %v218, 0.0
    %v279 = vmin.f32 %v220, 0.0
    %v280 = vmin.f32 %v222, 0.0
    %v281 = vmin.f32 %v224, 0.0
    %v282 = vmin.f32 %v228, 0.0
    %v283 = vmin.f32 %v230, 0.0
    %v284 = vmin.f32 %v232, 0.0
    %v285 = vmin.f32 %v234, 0.0
    %v286 = vmin.f32 %v238, 0.0
    %v287 = vmin.f32 %v240, 0.0
    %v288 = vmin.f32 %v242, 0.0
    %v289 = vmin.f32 %v244, 0.0
    %v290 = vmin.f32 %v248, 0.0
    %v291 = vmin.f32 %v250, 0.0
    %v292 = vmin.f32 %v252, 0.0
    %v293 = vmin.f32 %v254, 0.0
    %v294 = vmin.f32 %v258, 0.0
    %v295 = vmin.f32 %v260, 0.0
    %v296 = vmin.f32 %v262, 0.0
    %v297 = vmin.f32 %v264, 0.0
    %v298 = vmul.f32 %v266, 1.442695
    %v299 = vpow.pop %v298
    %v300 = vmul.f32 %v267, 1.442695
    %v301 = vpow.pop %v300
    %v302 = vmul.f32 %v268, 1.442695
    %v303 = vpow.pop %v302
    %v304 = vmul.f32 %v269, 1.442695
    %v305 = vpow.pop %v304
    %v306 = vmul.f32 %v270, 1.442695
    %v307 = vpow.pop %v306
    %v308 = vmul.f32 %v271, 1.442695
    %v309 = vpow.pop %v308
    %v310 = vmul.f32 %v272, 1.442695
    %v311 = vpow.pop %v310
    %v312 = vmul.f32 %v273, 1.442695
    %v313 = vpow.pop %v312
    %v314 = vmul.f32 %v274, 1.442695
    %v315 = vpow.pop %v314
    %v316 = vmul.f32 %v275, 1.442695
    %v317 = vpow.pop %v316
    %v318 = vmul.f32 %v276, 1.442695
    %v319 = vpow.pop %v318
    %v320 = vmul.f32 %v277, 1.442695
    %v321 = vpow.pop %v320
    %v322 = vmul.f32 %v278, 1.442695
    %v323 = vpow.pop %v322
    %v324 = vmul.f32 %v279, 1.442695
    %v325 = vpow.pop %v324
    %v326 = vmul.f32 %v280, 1.442695
    %v327 = vpow.pop %v326
    %v328 = vmul.f32 %v281, 1.442695
    %v329 = vpow.pop %v328
    %v330 = vmul.f32 %v282, 1.442695
    %v331 = vpow.pop %v330
    %v332 = vmul.f32 %v283, 1.442695
    %v333 = vpow.pop %v332
    %v334 = vmul.f32 %v284, 1.442695
    %v335 = vpow.pop %v334
    %v336 = vmul.f32 %v285, 1.442695
    %v337 = vpow.pop %v336
    %v338 = vmul.f32 %v286, 1.442695
    %v339 = vpow.pop %v338
    %v340 = vmul.f32 %v287, 1.442695
    %v341 = vpow.pop %v340
    %v342 = vmul.f32 %v288, 1.442695
    %v343 = vpow.pop %v342
    %v344 = vmul.f32 %v289, 1.442695
    %v345 = vpow.pop %v344
    %v346 = vmul.f32 %v290, 1.442695
    %v347 = vpow.pop %v346
    %v348 = vmul.f32 %v291, 1.442695
    %v349 = vpow.pop %v348
    %v350 = vmul.f32 %v292, 1.442695
    %v351 = vpow.pop %v350
    %v352 = vmul.f32 %v293, 1.442695
    %v353 = vpow.pop %v352
    %v354 = vmul.f32 %v294, 1.442695
    %v355 = vpow.pop %v354
    %v356 = vmul.f32 %v295, 1.442695
    %v357 = vpow.pop %v356
    %v358 = vmul.f32 %v296, 1.442695
    %v359 = vpow.pop %v358
    %v360 = vmul.f32 %v297, 1.442695
    %v361 = vpow.pop %v360
    %vm362 = vcmp.gt.f32.partialorder %v188, 0.0
    %vm363 = vcmp.gt.f32.partialorder %v190, 0.0
    %vm364 = vcmp.gt.f32.partialorder %v192, 0.0
    %vm365 = vcmp.gt.f32.partialorder %v194, 0.0
    %vm366 = vcmp.gt.f32.partialorder %v198, 0.0
    %vm367 = vcmp.gt.f32.partialorder %v200, 0.0
    %vm368 = vcmp.gt.f32.partialorder %v202, 0.0
    %vm369 = vcmp.gt.f32.partialorder %v204, 0.0
    %vm370 = vcmp.gt.f32.partialorder %v208, 0.0
    %vm371 = vcmp.gt.f32.partialorder %v210, 0.0
    %vm372 = vcmp.gt.f32.partialorder %v212, 0.0
    %vm373 = vcmp.gt.f32.partialorder %v214, 0.0
    %vm374 = vcmp.gt.f32.partialorder %v218, 0.0
    %vm375 = vcmp.gt.f32.partialorder %v220, 0.0
    %vm376 = vcmp.gt.f32.partialorder %v222, 0.0
    %vm377 = vcmp.gt.f32.partialorder %v224, 0.0
    %vm378 = vcmp.gt.f32.partialorder %v228, 0.0
    %vm379 = vcmp.gt.f32.partialorder %v230, 0.0
    %vm380 = vcmp.gt.f32.partialorder %v232, 0.0
    %vm381 = vcmp.gt.f32.partialorder %v234, 0.0
    %vm382 = vcmp.gt.f32.partialorder %v238, 0.0
    %vm383 = vcmp.gt.f32.partialorder %v240, 0.0
    %vm384 = vcmp.gt.f32.partialorder %v242, 0.0
    %vm385 = vcmp.gt.f32.partialorder %v244, 0.0
    %vm386 = vcmp.gt.f32.partialorder %v248, 0.0
    %vm387 = vcmp.gt.f32.partialorder %v250, 0.0
    %vm388 = vcmp.gt.f32.partialorder %v252, 0.0
    %vm389 = vcmp.gt.f32.partialorder %v254, 0.0
    %vm390 = vcmp.gt.f32.partialorder %v258, 0.0
    %vm391 = vcmp.gt.f32.partialorder %v260, 0.0
    %vm392 = vcmp.gt.f32.partialorder %v262, 0.0
    %vm393 = vcmp.gt.f32.partialorder %v264, 0.0
    %v394 = vsub.f32 %v299, 1.0
    %v395 = vsub.f32 %v301, 1.0
    %v396 = vsub.f32 %v303, 1.0
    %v397 = vsub.f32 %v305, 1.0
    %v398 = vsub.f32 %v307, 1.0
    %v399 = vsub.f32 %v309, 1.0
    %v400 = vsub.f32 %v311, 1.0
    %v401 = vsub.f32 %v313, 1.0
    %v402 = vsub.f32 %v315, 1.0
    %v403 = vsub.f32 %v317, 1.0
    %v404 = vsub.f32 %v319, 1.0
    %v405 = vsub.f32 %v321, 1.0
    %v406 = vsub.f32 %v323, 1.0
    %v407 = vsub.f32 %v325, 1.0
    %v408 = vsub.f32 %v327, 1.0
    %v409 = vsub.f32 %v329, 1.0
    %v410 = vsub.f32 %v331, 1.0
    %v411 = vsub.f32 %v333, 1.0
    %v412 = vsub.f32 %v335, 1.0
    %v413 = vsub.f32 %v337, 1.0
    %v414 = vsub.f32 %v339, 1.0
    %v415 = vsub.f32 %v341, 1.0
    %v416 = vsub.f32 %v343, 1.0
    %v417 = vsub.f32 %v345, 1.0
    %v418 = vsub.f32 %v347, 1.0
    %v419 = vsub.f32 %v349, 1.0
    %v420 = vsub.f32 %v351, 1.0
    %v421 = vsub.f32 %v353, 1.0
    %v422 = vsub.f32 %v355, 1.0
    %v423 = vsub.f32 %v357, 1.0
    %v424 = vsub.f32 %v359, 1.0
    %v425 = vsub.f32 %v361, 1.0
    %v426 = vsel %vm362, %v188, %v394
    %v427 = vsel %vm363, %v190, %v395
    %v428 = vsel %vm364, %v192, %v396
    %v429 = vsel %vm365, %v194, %v397
    %v430 = vsel %vm366, %v198, %v398
    %v431 = vsel %vm367, %v200, %v399
    %v432 = vsel %vm368, %v202, %v400
    %v433 = vsel %vm369, %v204, %v401
    %v434 = vsel %vm370, %v208, %v402
    %v435 = vsel %vm371, %v210, %v403
    %v436 = vsel %vm372, %v212, %v404
    %v437 = vsel %vm373, %v214, %v405
    %v438 = vsel %vm374, %v218, %v406
    %v439 = vsel %vm375, %v220, %v407
    %v440 = vsel %vm376, %v222, %v408
    %v441 = vsel %vm377, %v224, %v409
    %v442 = vsel %vm378, %v228, %v410
    %v443 = vsel %vm379, %v230, %v411
    %v444 = vsel %vm380, %v232, %v412
    %v445 = vsel %vm381, %v234, %v413
    %v446 = vsel %vm382, %v238, %v414
    %v447 = vsel %vm383, %v240, %v415
    %v448 = vsel %vm384, %v242, %v416
    %v449 = vsel %vm385, %v244, %v417
    %v450 = vsel %vm386, %v248, %v418
    %v451 = vsel %vm387, %v250, %v419
    %v452 = vsel %vm388, %v252, %v420
    %v453 = vsel %vm389, %v254, %v421
    %v454 = vsel %vm390, %v258, %v422
    %v455 = vsel %vm391, %v260, %v423
    %v456 = vsel %vm392, %v262, %v424
    %v457 = vsel %vm393, %v264, %v425
    %459 = vset.pattern.permute.xlu0 15
    %460 = vperm.xlu0 %459, %v48
    %v461 = vpop.permute.xlu0 %460
    %464 = vset.pattern.permute.xlu0 15
    %465 = vperm.xlu0 %464, %v49
    %v466 = vpop.permute.xlu0 %465
    %469 = vset.pattern.permute.xlu0 15
    %470 = vperm.xlu0 %469, %v50
    %v471 = vpop.permute.xlu0 %470
    %474 = vset.pattern.permute.xlu0 15
    %475 = vperm.xlu0 %474, %v51
    %v476 = vpop.permute.xlu0 %475
    %479 = vset.pattern.permute.xlu0 15
    %480 = vperm.xlu0 %479, %v52
    %v481 = vpop.permute.xlu0 %480
    %484 = vset.pattern.permute.xlu0 15
    %485 = vperm.xlu0 %484, %v53
    %v486 = vpop.permute.xlu0 %485
    %489 = vset.pattern.permute.xlu0 15
    %490 = vperm.xlu0 %489, %v54
    %v491 = vpop.permute.xlu0 %490
    %494 = vset.pattern.permute.xlu0 15
    %495 = vperm.xlu0 %494, %v55
    %v496 = vpop.permute.xlu0 %495
    %499 = vset.pattern.permute.xlu0 15
    %500 = vperm.xlu0 %499, %v56
    %v501 = vpop.permute.xlu0 %500
    %504 = vset.pattern.permute.xlu0 15
    %505 = vperm.xlu0 %504, %v57
    %v506 = vpop.permute.xlu0 %505
    %509 = vset.pattern.permute.xlu0 15
    %510 = vperm.xlu0 %509, %v58
    %v511 = vpop.permute.xlu0 %510
    %514 = vset.pattern.permute.xlu0 15
    %515 = vperm.xlu0 %514, %v59
    %v516 = vpop.permute.xlu0 %515
    %519 = vset.pattern.permute.xlu0 15
    %520 = vperm.xlu0 %519, %v60
    %v521 = vpop.permute.xlu0 %520
    %524 = vset.pattern.permute.xlu0 15
    %525 = vperm.xlu0 %524, %v61
    %v526 = vpop.permute.xlu0 %525
    %529 = vset.pattern.permute.xlu0 15
    %530 = vperm.xlu0 %529, %v62
    %v531 = vpop.permute.xlu0 %530
    %534 = vset.pattern.permute.xlu0 15
    %535 = vperm.xlu0 %534, %v63
    %v536 = vpop.permute.xlu0 %535
    %v538 = vmul.f32 %v426, %v461
    %v539 = vmul.f32 %v427, %v461
    %v540 = vmul.f32 %v428, %v466
    %v541 = vmul.f32 %v429, %v466
    %v542 = vmul.f32 %v430, %v471
    %v543 = vmul.f32 %v431, %v471
    %v544 = vmul.f32 %v432, %v476
    %v545 = vmul.f32 %v433, %v476
    %v546 = vmul.f32 %v434, %v481
    %v547 = vmul.f32 %v435, %v481
    %v548 = vmul.f32 %v436, %v486
    %v549 = vmul.f32 %v437, %v486
    %v550 = vmul.f32 %v438, %v491
    %v551 = vmul.f32 %v439, %v491
    %v552 = vmul.f32 %v440, %v496
    %v553 = vmul.f32 %v441, %v496
    %v554 = vmul.f32 %v442, %v501
    %v555 = vmul.f32 %v443, %v501
    %v556 = vmul.f32 %v444, %v506
    %v557 = vmul.f32 %v445, %v506
    %v558 = vmul.f32 %v446, %v511
    %v559 = vmul.f32 %v447, %v511
    %v560 = vmul.f32 %v448, %v516
    %v561 = vmul.f32 %v449, %v516
    %v562 = vmul.f32 %v450, %v521
    %v563 = vmul.f32 %v451, %v521
    %v564 = vmul.f32 %v452, %v526
    %v565 = vmul.f32 %v453, %v526
    %v566 = vmul.f32 %v454, %v531
    %v567 = vmul.f32 %v455, %v531
    %v568 = vmul.f32 %v456, %v536
    %v569 = vmul.f32 %v457, %v536
    %v570 = vrot.slane %v538, 4
    %v571 = vmax.f32 %v538, %v570
    %v572 = vrot.slane %v571, 2
    %v573 = vmax.f32 %v571, %v572
    %v574 = vrot.slane %v573, 1
    %v575 = vmax.f32 %v573, %v574
    %v576 = vrot.slane %v539, 4
    %v577 = vmax.f32 %v539, %v576
    %v578 = vrot.slane %v577, 2
    %v579 = vmax.f32 %v577, %v578
    %v580 = vrot.slane %v579, 1
    %v581 = vmax.f32 %v579, %v580
    %v582 = vrot.slane %v540, 4
    %v583 = vmax.f32 %v540, %v582
    %v584 = vrot.slane %v583, 2
    %v585 = vmax.f32 %v583, %v584
    %v586 = vrot.slane %v585, 1
    %v587 = vmax.f32 %v585, %v586
    %v588 = vrot.slane %v541, 4
    %v589 = vmax.f32 %v541, %v588
    %v590 = vrot.slane %v589, 2
    %v591 = vmax.f32 %v589, %v590
    %v592 = vrot.slane %v591, 1
    %v593 = vmax.f32 %v591, %v592
    %v594 = vrot.slane %v542, 4
    %v595 = vmax.f32 %v542, %v594
    %v596 = vrot.slane %v595, 2
    %v597 = vmax.f32 %v595, %v596
    %v598 = vrot.slane %v597, 1
    %v599 = vmax.f32 %v597, %v598
    %v600 = vrot.slane %v543, 4
    %v601 = vmax.f32 %v543, %v600
    %v602 = vrot.slane %v601, 2
    %v603 = vmax.f32 %v601, %v602
    %v604 = vrot.slane %v603, 1
    %v605 = vmax.f32 %v603, %v604
    %v606 = vrot.slane %v544, 4
    %v607 = vmax.f32 %v544, %v606
    %v608 = vrot.slane %v607, 2
    %v609 = vmax.f32 %v607, %v608
    %v610 = vrot.slane %v609, 1
    %v611 = vmax.f32 %v609, %v610
    %v612 = vrot.slane %v545, 4
    %v613 = vmax.f32 %v545, %v612
    %v614 = vrot.slane %v613, 2
    %v615 = vmax.f32 %v613, %v614
    %v616 = vrot.slane %v615, 1
    %v617 = vmax.f32 %v615, %v616
    %v618 = vrot.slane %v546, 4
    %v619 = vmax.f32 %v546, %v618
    %v620 = vrot.slane %v619, 2
    %v621 = vmax.f32 %v619, %v620
    %v622 = vrot.slane %v621, 1
    %v623 = vmax.f32 %v621, %v622
    %v624 = vrot.slane %v547, 4
    %v625 = vmax.f32 %v547, %v624
    %v626 = vrot.slane %v625, 2
    %v627 = vmax.f32 %v625, %v626
    %v628 = vrot.slane %v627, 1
    %v629 = vmax.f32 %v627, %v628
    %v630 = vrot.slane %v548, 4
    %v631 = vmax.f32 %v548, %v630
    %v632 = vrot.slane %v631, 2
    %v633 = vmax.f32 %v631, %v632
    %v634 = vrot.slane %v633, 1
    %v635 = vmax.f32 %v633, %v634
    %v636 = vrot.slane %v549, 4
    %v637 = vmax.f32 %v549, %v636
    %v638 = vrot.slane %v637, 2
    %v639 = vmax.f32 %v637, %v638
    %v640 = vrot.slane %v639, 1
    %v641 = vmax.f32 %v639, %v640
    %v642 = vrot.slane %v550, 4
    %v643 = vmax.f32 %v550, %v642
    %v644 = vrot.slane %v643, 2
    %v645 = vmax.f32 %v643, %v644
    %v646 = vrot.slane %v645, 1
    %v647 = vmax.f32 %v645, %v646
    %v648 = vrot.slane %v551, 4
    %v649 = vmax.f32 %v551, %v648
    %v650 = vrot.slane %v649, 2
    %v651 = vmax.f32 %v649, %v650
    %v652 = vrot.slane %v651, 1
    %v653 = vmax.f32 %v651, %v652
    %v654 = vrot.slane %v552, 4
    %v655 = vmax.f32 %v552, %v654
    %v656 = vrot.slane %v655, 2
    %v657 = vmax.f32 %v655, %v656
    %v658 = vrot.slane %v657, 1
    %v659 = vmax.f32 %v657, %v658
    %v660 = vrot.slane %v553, 4
    %v661 = vmax.f32 %v553, %v660
    %v662 = vrot.slane %v661, 2
    %v663 = vmax.f32 %v661, %v662
    %v664 = vrot.slane %v663, 1
    %v665 = vmax.f32 %v663, %v664
    %v666 = vrot.slane %v554, 4
    %v667 = vmax.f32 %v554, %v666
    %v668 = vrot.slane %v667, 2
    %v669 = vmax.f32 %v667, %v668
    %v670 = vrot.slane %v669, 1
    %v671 = vmax.f32 %v669, %v670
    %v672 = vrot.slane %v555, 4
    %v673 = vmax.f32 %v555, %v672
    %v674 = vrot.slane %v673, 2
    %v675 = vmax.f32 %v673, %v674
    %v676 = vrot.slane %v675, 1
    %v677 = vmax.f32 %v675, %v676
    %v678 = vrot.slane %v556, 4
    %v679 = vmax.f32 %v556, %v678
    %v680 = vrot.slane %v679, 2
    %v681 = vmax.f32 %v679, %v680
    %v682 = vrot.slane %v681, 1
    %v683 = vmax.f32 %v681, %v682
    %v684 = vrot.slane %v557, 4
    %v685 = vmax.f32 %v557, %v684
    %v686 = vrot.slane %v685, 2
    %v687 = vmax.f32 %v685, %v686
    %v688 = vrot.slane %v687, 1
    %v689 = vmax.f32 %v687, %v688
    %v690 = vrot.slane %v558, 4
    %v691 = vmax.f32 %v558, %v690
    %v692 = vrot.slane %v691, 2
    %v693 = vmax.f32 %v691, %v692
    %v694 = vrot.slane %v693, 1
    %v695 = vmax.f32 %v693, %v694
    %v696 = vrot.slane %v559, 4
    %v697 = vmax.f32 %v559, %v696
    %v698 = vrot.slane %v697, 2
    %v699 = vmax.f32 %v697, %v698
    %v700 = vrot.slane %v699, 1
    %v701 = vmax.f32 %v699, %v700
    %v702 = vrot.slane %v560, 4
    %v703 = vmax.f32 %v560, %v702
    %v704 = vrot.slane %v703, 2
    %v705 = vmax.f32 %v703, %v704
    %v706 = vrot.slane %v705, 1
    %v707 = vmax.f32 %v705, %v706
    %v708 = vrot.slane %v561, 4
    %v709 = vmax.f32 %v561, %v708
    %v710 = vrot.slane %v709, 2
    %v711 = vmax.f32 %v709, %v710
    %v712 = vrot.slane %v711, 1
    %v713 = vmax.f32 %v711, %v712
    %v714 = vrot.slane %v562, 4
    %v715 = vmax.f32 %v562, %v714
    %v716 = vrot.slane %v715, 2
    %v717 = vmax.f32 %v715, %v716
    %v718 = vrot.slane %v717, 1
    %v719 = vmax.f32 %v717, %v718
    %v720 = vrot.slane %v563, 4
    %v721 = vmax.f32 %v563, %v720
    %v722 = vrot.slane %v721, 2
    %v723 = vmax.f32 %v721, %v722
    %v724 = vrot.slane %v723, 1
    %v725 = vmax.f32 %v723, %v724
    %v726 = vrot.slane %v564, 4
    %v727 = vmax.f32 %v564, %v726
    %v728 = vrot.slane %v727, 2
    %v729 = vmax.f32 %v727, %v728
    %v730 = vrot.slane %v729, 1
    %v731 = vmax.f32 %v729, %v730
    %v732 = vrot.slane %v565, 4
    %v733 = vmax.f32 %v565, %v732
    %v734 = vrot.slane %v733, 2
    %v735 = vmax.f32 %v733, %v734
    %v736 = vrot.slane %v735, 1
    %v737 = vmax.f32 %v735, %v736
    %v738 = vrot.slane %v566, 4
    %v739 = vmax.f32 %v566, %v738
    %v740 = vrot.slane %v739, 2
    %v741 = vmax.f32 %v739, %v740
    %v742 = vrot.slane %v741, 1
    %v743 = vmax.f32 %v741, %v742
    %v744 = vrot.slane %v567, 4
    %v745 = vmax.f32 %v567, %v744
    %v746 = vrot.slane %v745, 2
    %v747 = vmax.f32 %v745, %v746
    %v748 = vrot.slane %v747, 1
    %v749 = vmax.f32 %v747, %v748
    %v750 = vrot.slane %v568, 4
    %v751 = vmax.f32 %v568, %v750
    %v752 = vrot.slane %v751, 2
    %v753 = vmax.f32 %v751, %v752
    %v754 = vrot.slane %v753, 1
    %v755 = vmax.f32 %v753, %v754
    %v756 = vrot.slane %v569, 4
    %v757 = vmax.f32 %v569, %v756
    %v758 = vrot.slane %v757, 2
    %v759 = vmax.f32 %v757, %v758
    %v760 = vrot.slane %v759, 1
    %v761 = vmax.f32 %v759, %v760
    %v762 = vld [vmem:[#allocation2 + $0x10] sm:$0xff]
    %v763 = vld [vmem:[#allocation2 + $0x18] sm:$0xff]
    %v764 = vld [vmem:[#allocation2 + $0x20] sm:$0xff]
    %v765 = vld [vmem:[#allocation2 + $0x28] sm:$0xff]
    %v766 = vld [vmem:[#allocation2 + $0x30] sm:$0xff]
    %v767 = vld [vmem:[#allocation2 + $0x38] sm:$0xff]
    %v768 = vld [vmem:[#allocation2 + $0x40] sm:$0xff]
    %v769 = vld [vmem:[#allocation2 + $0x48] sm:$0xff]
    %v770 = vld [vmem:[#allocation2 + $0x50] sm:$0xff]
    %v771 = vld [vmem:[#allocation2 + $0x58] sm:$0xff]
    %v772 = vld [vmem:[#allocation2 + $0x60] sm:$0xff]
    %v773 = vld [vmem:[#allocation2 + $0x68] sm:$0xff]
    %v774 = vld [vmem:[#allocation2 + $0x70] sm:$0xff]
    %v775 = vld [vmem:[#allocation2 + $0x78] sm:$0xff]
    %v776 = vld [vmem:[#allocation2 + $0x80] sm:$0xff]
    %v777 = vld [vmem:[#allocation2 + $0x88] sm:$0xff]
    %v778 = vld [vmem:[#allocation2 + $0x90] sm:$0xff]
    %v779 = vld [vmem:[#allocation2 + $0x98] sm:$0xff]
    %v780 = vld [vmem:[#allocation2 + $0xa0] sm:$0xff]
    %v781 = vld [vmem:[#allocation2 + $0xa8] sm:$0xff]
    %v782 = vld [vmem:[#allocation2 + $0xb0] sm:$0xff]
    %v783 = vld [vmem:[#allocation2 + $0xb8] sm:$0xff]
    %v784 = vld [vmem:[#allocation2 + $0xc0] sm:$0xff]
    %v785 = vld [vmem:[#allocation2 + $0xc8] sm:$0xff]
    %v786 = vld [vmem:[#allocation2 + $0xd0] sm:$0xff]
    %v787 = vld [vmem:[#allocation2 + $0xd8] sm:$0xff]
    %v788 = vld [vmem:[#allocation2 + $0xe0] sm:$0xff]
    %v789 = vld [vmem:[#allocation2 + $0xe8] sm:$0xff]
    %v790 = vld [vmem:[#allocation2 + $0xf0] sm:$0xff]
    %v791 = vld [vmem:[#allocation2 + $0xf8] sm:$0xff]
    %v792 = vld [vmem:[#allocation2 + $0x100] sm:$0xff]
    %v793 = vld [vmem:[#allocation2 + $0x108] sm:$0xff]
    %v794 = vpack.c.bf16 %v575, %v575
    %v795 = vpack.c.bf16 %v581, %v581
    %v796 = vpack.c.bf16 %v587, %v587
    %v797 = vpack.c.bf16 %v593, %v593
    %v798 = vpack.c.bf16 %v599, %v599
    %v799 = vpack.c.bf16 %v605, %v605
    %v800 = vpack.c.bf16 %v611, %v611
    %v801 = vpack.c.bf16 %v617, %v617
    %v802 = vpack.c.bf16 %v623, %v623
    %v803 = vpack.c.bf16 %v629, %v629
    %v804 = vpack.c.bf16 %v635, %v635
    %v805 = vpack.c.bf16 %v641, %v641
    %v806 = vpack.c.bf16 %v647, %v647
    %v807 = vpack.c.bf16 %v653, %v653
    %v808 = vpack.c.bf16 %v659, %v659
    %v809 = vpack.c.bf16 %v665, %v665
    %v810 = vpack.c.bf16 %v671, %v671
    %v811 = vpack.c.bf16 %v677, %v677
    %v812 = vpack.c.bf16 %v683, %v683
    %v813 = vpack.c.bf16 %v689, %v689
    %v814 = vpack.c.bf16 %v695, %v695
    %v815 = vpack.c.bf16 %v701, %v701
    %v816 = vpack.c.bf16 %v707, %v707
    %v817 = vpack.c.bf16 %v713, %v713
    %v818 = vpack.c.bf16 %v719, %v719
    %v819 = vpack.c.bf16 %v725, %v725
    %v820 = vpack.c.bf16 %v731, %v731
    %v821 = vpack.c.bf16 %v737, %v737
    %v822 = vpack.c.bf16 %v743, %v743
    %v823 = vpack.c.bf16 %v749, %v749
    %v824 = vpack.c.bf16 %v755, %v755
    %v825 = vpack.c.bf16 %v761, %v761
    %v826 = vld [vmem:[%s1] sm:$0xff]
    %v827 = vld [vmem:[%s1 + $0x8] sm:$0xff]
    %s828 = scalar_lea.vmem %s3, 16
    %v829 = vld [vmem:[%s828] ss:$8 sm:$0x3]
    %831 = vset.pattern.permute.xlu0 0
    %832 = vperm.xlu0 %831, %v826
    %v833 = vpop.permute.xlu0 %832
    %836 = vset.pattern.permute.xlu0 0
    %837 = vperm.xlu0 %836, %v827
    %v838 = vpop.permute.xlu0 %837
    %v841 = vlaneseq
    %v842 = vshrl.u32 %v841, 7
    %v843 = vsub.s32 0, %v842
    %v844 = vrot.slane %v829, %v843
    %v845 = vlaneseq
    %v846 = vshrl.u32 %v845, 7
    %v847 = vsub.s32 1, %v846
    %v848 = vrot.slane %v829, %v847
    %v851 = vmul.f32 %v833, %v844
    %v852 = vmul.f32 %v833, %v848
    %v853 = vmul.f32 %v838, %v844
    %v854 = vmul.f32 %v838, %v848
    %v887 = vunpack.c.l.b16 %v794
    %v888 = vunpack.c.l.b16 %v795
    %v889 = vunpack.c.l.b16 %v796
    %v890 = vunpack.c.l.b16 %v797
    %v891 = vunpack.c.l.b16 %v798
    %v892 = vunpack.c.l.b16 %v799
    %v893 = vunpack.c.l.b16 %v800
    %v894 = vunpack.c.l.b16 %v801
    %v895 = vunpack.c.l.b16 %v802
    %v896 = vunpack.c.l.b16 %v803
    %v897 = vunpack.c.l.b16 %v804
    %v898 = vunpack.c.l.b16 %v805
    %v899 = vunpack.c.l.b16 %v806
    %v900 = vunpack.c.l.b16 %v807
    %v901 = vunpack.c.l.b16 %v808
    %v902 = vunpack.c.l.b16 %v809
    %v903 = vunpack.c.l.b16 %v810
    %v904 = vunpack.c.l.b16 %v811
    %v905 = vunpack.c.l.b16 %v812
    %v906 = vunpack.c.l.b16 %v813
    %v907 = vunpack.c.l.b16 %v814
    %v908 = vunpack.c.l.b16 %v815
    %v909 = vunpack.c.l.b16 %v816
    %v910 = vunpack.c.l.b16 %v817
    %v911 = vunpack.c.l.b16 %v818
    %v912 = vunpack.c.l.b16 %v819
    %v913 = vunpack.c.l.b16 %v820
    %v914 = vunpack.c.l.b16 %v821
    %v915 = vunpack.c.l.b16 %v822
    %v916 = vunpack.c.l.b16 %v823
    %v917 = vunpack.c.l.b16 %v824
    %v918 = vunpack.c.l.b16 %v825
    %vm919 = vcmask 1041409
    %v920 = vsel %vm919, %v889, %v887
    %vm921 = vcmask 1042434
    %v922 = vsel %vm921, %v891, %v920
    %vm923 = vcmask 1043459
    %v924 = vsel %vm923, %v893, %v922
    %vm925 = vcmask 1044484
    %v926 = vsel %vm925, %v895, %v924
    %vm927 = vcmask 1045509
    %v928 = vsel %vm927, %v897, %v926
    %vm929 = vcmask 1046534
    %v930 = vsel %vm929, %v899, %v928
    %vm931 = vcmask 1047559
    %v932 = vsel %vm931, %v901, %v930
    %v933 = vsel %vm919, %v890, %v888
    %v934 = vsel %vm921, %v892, %v933
    %v935 = vsel %vm923, %v894, %v934
    %v936 = vsel %vm925, %v896, %v935
    %v937 = vsel %vm927, %v898, %v936
    %v938 = vsel %vm929, %v900, %v937
    %v939 = vsel %vm931, %v902, %v938
    %v940 = vsel %vm919, %v905, %v903
    %v941 = vsel %vm921, %v907, %v940
    %v942 = vsel %vm923, %v909, %v941
    %v943 = vsel %vm925, %v911, %v942
    %v944 = vsel %vm927, %v913, %v943
    %v945 = vsel %vm929, %v915, %v944
    %v946 = vsel %vm931, %v917, %v945
    %v947 = vsel %vm919, %v906, %v904
    %v948 = vsel %vm921, %v908, %v947
    %v949 = vsel %vm923, %v910, %v948
    %v950 = vsel %vm925, %v912, %v949
    %v951 = vsel %vm927, %v914, %v950
    %v952 = vsel %vm929, %v916, %v951
    %v953 = vsel %vm931, %v918, %v952
    %v954 = vpack.c.b16 %v946, %v932
    %v955 = vpack.c.b16 %v953, %v939
    %v990 = vunpack.c.l.b16 %v762
    %v991 = vunpack.c.h.b16 %v762
    %v992 = vunpack.c.l.b16 %v763
    %v993 = vunpack.c.h.b16 %v763
    %v994 = vunpack.c.l.b16 %v764
    %v995 = vunpack.c.h.b16 %v764
    %v996 = vunpack.c.l.b16 %v765
    %v997 = vunpack.c.h.b16 %v765
    %v998 = vunpack.c.l.b16 %v766
    %v999 = vunpack.c.h.b16 %v766
    %v1000 = vunpack.c.l.b16 %v767
    %v1001 = vunpack.c.h.b16 %v767
    %v1002 = vunpack.c.l.b16 %v768
    %v1003 = vunpack.c.h.b16 %v768
    %v1004 = vunpack.c.l.b16 %v769
    %v1005 = vunpack.c.h.b16 %v769
    %v1006 = vunpack.c.l.b16 %v770
    %v1007 = vunpack.c.h.b16 %v770
    %v1008 = vunpack.c.l.b16 %v771
    %v1009 = vunpack.c.h.b16 %v771
    %v1010 = vunpack.c.l.b16 %v772
    %v1011 = vunpack.c.h.b16 %v772
    %v1012 = vunpack.c.l.b16 %v773
    %v1013 = vunpack.c.h.b16 %v773
    %v1014 = vunpack.c.l.b16 %v774
    %v1015 = vunpack.c.h.b16 %v774
    %v1016 = vunpack.c.l.b16 %v775
    %v1017 = vunpack.c.h.b16 %v775
    %v1018 = vunpack.c.l.b16 %v776
    %v1019 = vunpack.c.h.b16 %v776
    %v1020 = vunpack.c.l.b16 %v777
    %v1021 = vunpack.c.h.b16 %v777
    %v1022 = vunpack.c.l.b16 %v778
    %v1023 = vunpack.c.h.b16 %v778
    %v1024 = vunpack.c.l.b16 %v779
    %v1025 = vunpack.c.h.b16 %v779
    %v1026 = vunpack.c.l.b16 %v780
    %v1027 = vunpack.c.h.b16 %v780
    %v1028 = vunpack.c.l.b16 %v781
    %v1029 = vunpack.c.h.b16 %v781
    %v1030 = vunpack.c.l.b16 %v782
    %v1031 = vunpack.c.h.b16 %v782
    %v1032 = vunpack.c.l.b16 %v783
    %v1033 = vunpack.c.h.b16 %v783
    %v1034 = vunpack.c.l.b16 %v784
    %v1035 = vunpack.c.h.b16 %v784
    %v1036 = vunpack.c.l.b16 %v785
    %v1037 = vunpack.c.h.b16 %v785
    %v1038 = vunpack.c.l.b16 %v786
    %v1039 = vunpack.c.h.b16 %v786
    %v1040 = vunpack.c.l.b16 %v787
    %v1041 = vunpack.c.h.b16 %v787
    %v1042 = vunpack.c.l.b16 %v788
    %v1043 = vunpack.c.h.b16 %v788
    %v1044 = vunpack.c.l.b16 %v789
    %v1045 = vunpack.c.h.b16 %v789
    %v1046 = vunpack.c.l.b16 %v790
    %v1047 = vunpack.c.h.b16 %v790
    %v1048 = vunpack.c.l.b16 %v791
    %v1049 = vunpack.c.h.b16 %v791
    %v1050 = vunpack.c.l.b16 %v792
    %v1051 = vunpack.c.h.b16 %v792
    %v1052 = vunpack.c.l.b16 %v793
    %v1053 = vunpack.c.h.b16 %v793
    %v1054 = vpack.c.b16 %v992, %v990
    %v1055 = vpack.c.b16 %v993, %v991
    %v1056 = vpack.c.b16 %v996, %v994
    %v1057 = vpack.c.b16 %v997, %v995
    %v1058 = vpack.c.b16 %v1000, %v998
    %v1059 = vpack.c.b16 %v1001, %v999
    %v1060 = vpack.c.b16 %v1004, %v1002
    %v1061 = vpack.c.b16 %v1005, %v1003
    %v1062 = vpack.c.b16 %v1008, %v1006
    %v1063 = vpack.c.b16 %v1009, %v1007
    %v1064 = vpack.c.b16 %v1012, %v1010
    %v1065 = vpack.c.b16 %v1013, %v1011
    %v1066 = vpack.c.b16 %v1016, %v1014
    %v1067 = vpack.c.b16 %v1017, %v1015
    %v1068 = vpack.c.b16 %v1020, %v1018
    %v1069 = vpack.c.b16 %v1021, %v1019
    %v1070 = vpack.c.b16 %v1024, %v1022
    %v1071 = vpack.c.b16 %v1025, %v1023
    %v1072 = vpack.c.b16 %v1028, %v1026
    %v1073 = vpack.c.b16 %v1029, %v1027
    %v1074 = vpack.c.b16 %v1032, %v1030
    %v1075 = vpack.c.b16 %v1033, %v1031
    %v1076 = vpack.c.b16 %v1036, %v1034
    %v1077 = vpack.c.b16 %v1037, %v1035
    %v1078 = vpack.c.b16 %v1040, %v1038
    %v1079 = vpack.c.b16 %v1041, %v1039
    %v1080 = vpack.c.b16 %v1044, %v1042
    %v1081 = vpack.c.b16 %v1045, %v1043
    %v1082 = vpack.c.b16 %v1048, %v1046
    %v1083 = vpack.c.b16 %v1049, %v1047
    %v1084 = vpack.c.b16 %v1052, %v1050
    %v1085 = vpack.c.b16 %v1053, %v1051
    %1118 = vmatprep.subr.bf16.mxu0 %v1069
    %1119 = vmatpush1.bf16.msra.mxu0 %v1068
    %1120 = vmatprep.subr.bf16.mxu0 %v1067
    %1121 = vmatpush1.bf16.msra.mxu0 %v1066
    %1122 = vmatprep.subr.bf16.mxu0 %v1065
    %1123 = vmatpush1.bf16.msra.mxu0 %v1064
    %1124 = vmatprep.subr.bf16.mxu0 %v1063
    %1125 = vmatpush1.bf16.msra.mxu0 %v1062
    %1126 = vmatprep.subr.bf16.mxu0 %v1061
    %1127 = vmatpush1.bf16.msra.mxu0 %v1060
    %1128 = vmatprep.subr.bf16.mxu0 %v1059
    %1129 = vmatpush1.bf16.msra.mxu0 %v1058
    %1130 = vmatprep.subr.bf16.mxu0 %v1057
    %1131 = vmatpush1.bf16.msra.mxu0 %v1056
    %1132 = vmatprep.subr.bf16.mxu0 %v1055
    %1133 = vmatpush1.bf16.msra.mxu0 %v1054
    %1134 = vmatprep.subr.bf16.mxu0 %v1085
    %1135 = vmatpush2.bf16.msra.mxu0 %v1084
    %1136 = vmatprep.subr.bf16.mxu0 %v1083
    %1137 = vmatpush2.bf16.msra.mxu0 %v1082
    %1138 = vmatprep.subr.bf16.mxu0 %v1081
    %1139 = vmatpush2.bf16.msra.mxu0 %v1080
    %1140 = vmatprep.subr.bf16.mxu0 %v1079
    %1141 = vmatpush2.bf16.msra.mxu0 %v1078
    %1142 = vmatprep.subr.bf16.mxu0 %v1077
    %1143 = vmatpush2.bf16.msra.mxu0 %v1076
    %1144 = vmatprep.subr.bf16.mxu0 %v1075
    %1145 = vmatpush2.bf16.msra.mxu0 %v1074
    %1146 = vmatprep.subr.bf16.mxu0 %v1073
    %1147 = vmatpush2.bf16.msra.mxu0 %v1072
    %1148 = vmatprep.subr.bf16.mxu0 %v1071
    %1149 = vmatpush2.bf16.msra.mxu0 %v1070
    %1150 = vmatprep.mubr.bf16.mxu0 %v955
    %1151 = vmatmul.mubr.bf16.gmra.mxu0 %v954
    %v1152 = vpop.f32.mrf.mxu0
    %v1153 = vadd.f32 %v851, %v1152
    %v1154 = vpop.f32.mrf.mxu0
    %v1155 = vadd.f32 %v852, %v1154
    %v1156 = vpop.f32.mrf.mxu0
    %v1157 = vadd.f32 %v853, %v1156
    %v1158 = vpop.f32.mrf.mxu0
    %v1159 = vadd.f32 %v854, %v1158
    %1160 = vdwg.mxu0
    %s1161 = scalar_lea.vmem %s3, 17
    %v1162 = vld [vmem:[%s1161] ss:$8 sm:$0x3]
    %1163 = vset.pattern.permute.xlu0 1
    %1164 = vperm.xlu0 %1163, %v826
    %v1165 = vpop.permute.xlu0 %1164
    %1167 = vset.pattern.permute.xlu0 1
    %1168 = vperm.xlu0 %1167, %v827
    %v1169 = vpop.permute.xlu0 %1168
    %v1172 = vlaneseq
    %v1173 = vshrl.u32 %v1172, 7
    %v1174 = vsub.s32 0, %v1173
    %v1175 = vrot.slane %v1162, %v1174
    %v1176 = vlaneseq
    %v1177 = vshrl.u32 %v1176, 7
    %v1178 = vsub.s32 1, %v1177
    %v1179 = vrot.slane %v1162, %v1178
    %v1182 = vmul.f32 %v1165, %v1175
    %v1183 = vmul.f32 %v1165, %v1179
    %v1184 = vmul.f32 %v1169, %v1175
    %v1185 = vmul.f32 %v1169, %v1179
    %v1186 = vadd.f32 %v1153, %v1182
    %v1187 = vadd.f32 %v1155, %v1183
    %v1188 = vadd.f32 %v1157, %v1184
    %v1189 = vadd.f32 %v1159, %v1185
    %s1190 = scalar_lea.vmem %s3, 18
    %v1191 = vld [vmem:[%s1190] ss:$8 sm:$0x3]
    %1192 = vset.pattern.permute.xlu0 2
    %1193 = vperm.xlu0 %1192, %v826
    %v1194 = vpop.permute.xlu0 %1193
    %1196 = vset.pattern.permute.xlu0 2
    %1197 = vperm.xlu0 %1196, %v827
    %v1198 = vpop.permute.xlu0 %1197
    %v1201 = vlaneseq
    %v1202 = vshrl.u32 %v1201, 7
    %v1203 = vsub.s32 0, %v1202
    %v1204 = vrot.slane %v1191, %v1203
    %v1205 = vlaneseq
    %v1206 = vshrl.u32 %v1205, 7
    %v1207 = vsub.s32 1, %v1206
    %v1208 = vrot.slane %v1191, %v1207
    %v1211 = vmul.f32 %v1194, %v1204
    %v1212 = vmul.f32 %v1194, %v1208
    %v1213 = vmul.f32 %v1198, %v1204
    %v1214 = vmul.f32 %v1198, %v1208
    %v1215 = vadd.f32 %v1186, %v1211
    %v1216 = vadd.f32 %v1187, %v1212
    %v1217 = vadd.f32 %v1188, %v1213
    %v1218 = vadd.f32 %v1189, %v1214
    %s1219 = scalar_lea.vmem %s3, 1
    %v1220 = vld [vmem:[%s1219] ss:$8 sm:$0x3]
    %v1222 = vlaneseq
    %v1223 = vshrl.u32 %v1222, 7
    %v1224 = vsub.s32 0, %v1223
    %v1225 = vrot.slane %v1220, %v1224
    %v1226 = vlaneseq
    %v1227 = vshrl.u32 %v1226, 7
    %v1228 = vsub.s32 1, %v1227
    %v1229 = vrot.slane %v1220, %v1228
    %v1232 = vadd.f32 %v1215, %v1225
    %v1233 = vadd.f32 %v1216, %v1229
    %v1234 = vadd.f32 %v1217, %v1225
    %v1235 = vadd.f32 %v1218, %v1229
    %v1236 = vmin.f32 %v1232, 0.0
    %v1237 = vmin.f32 %v1233, 0.0
    %v1238 = vmin.f32 %v1234, 0.0
    %v1239 = vmin.f32 %v1235, 0.0
    %v1240 = vmul.f32 %v1236, 1.442695
    %v1241 = vpow.pop %v1240
    %v1242 = vmul.f32 %v1237, 1.442695
    %v1243 = vpow.pop %v1242
    %v1244 = vmul.f32 %v1238, 1.442695
    %v1245 = vpow.pop %v1244
    %v1246 = vmul.f32 %v1239, 1.442695
    %v1247 = vpow.pop %v1246
    %vm1248 = vcmp.gt.f32.partialorder %v1232, 0.0
    %vm1249 = vcmp.gt.f32.partialorder %v1233, 0.0
    %vm1250 = vcmp.gt.f32.partialorder %v1234, 0.0
    %vm1251 = vcmp.gt.f32.partialorder %v1235, 0.0
    %v1252 = vsub.f32 %v1241, 1.0
    %v1253 = vsub.f32 %v1243, 1.0
    %v1254 = vsub.f32 %v1245, 1.0
    %v1255 = vsub.f32 %v1247, 1.0
    %v1256 = vsel %vm1248, %v1232, %v1252
    %v1257 = vsel %vm1249, %v1233, %v1253
    %v1258 = vsel %vm1250, %v1234, %v1254
    %v1259 = vsel %vm1251, %v1235, %v1255
    %v1260 = vld [vmem:[#allocation2 + $0x110] sm:$0xf]
    %v1261 = vld [vmem:[#allocation2 + $0x118] sm:$0xf]
    %v1262 = vld [vmem:[#allocation2 + $0x120] sm:$0xf]
    %v1263 = vld [vmem:[#allocation2 + $0x128] sm:$0xf]
    %v1264 = vld [vmem:[#allocation2 + $0x130] sm:$0xf]
    %v1265 = vld [vmem:[#allocation2 + $0x138] sm:$0xf]
    %v1266 = vld [vmem:[#allocation2 + $0x140] sm:$0xf]
    %v1267 = vld [vmem:[#allocation2 + $0x148] sm:$0xf]
    %v1268 = vld [vmem:[#allocation2 + $0x150] sm:$0xf]
    %v1269 = vld [vmem:[#allocation2 + $0x158] sm:$0xf]
    %v1270 = vld [vmem:[#allocation2 + $0x160] sm:$0xf]
    %v1271 = vld [vmem:[#allocation2 + $0x168] sm:$0xf]
    %v1272 = vld [vmem:[#allocation2 + $0x170] sm:$0xf]
    %v1273 = vld [vmem:[#allocation2 + $0x178] sm:$0xf]
    %v1274 = vld [vmem:[#allocation2 + $0x180] sm:$0xf]
    %v1275 = vld [vmem:[#allocation2 + $0x188] sm:$0xf]
    %v1276 = vld [vmem:[#allocation2 + $0x190] sm:$0xf]
    %v1277 = vld [vmem:[#allocation2 + $0x198] sm:$0xf]
    %v1278 = vld [vmem:[#allocation2 + $0x1a0] sm:$0xf]
    %v1279 = vld [vmem:[#allocation2 + $0x1a8] sm:$0xf]
    %v1280 = vld [vmem:[#allocation2 + $0x1b0] sm:$0xf]
    %v1281 = vld [vmem:[#allocation2 + $0x1b8] sm:$0xf]
    %v1282 = vld [vmem:[#allocation2 + $0x1c0] sm:$0xf]
    %v1283 = vld [vmem:[#allocation2 + $0x1c8] sm:$0xf]
    %v1284 = vld [vmem:[#allocation2 + $0x1d0] sm:$0xf]
    %v1285 = vld [vmem:[#allocation2 + $0x1d8] sm:$0xf]
    %v1286 = vld [vmem:[#allocation2 + $0x1e0] sm:$0xf]
    %v1287 = vld [vmem:[#allocation2 + $0x1e8] sm:$0xf]
    %v1288 = vld [vmem:[#allocation2 + $0x1f0] sm:$0xf]
    %v1289 = vld [vmem:[#allocation2 + $0x1f8] sm:$0xf]
    %v1290 = vld [vmem:[#allocation2 + $0x200] sm:$0xf]
    %v1291 = vld [vmem:[#allocation2 + $0x208] sm:$0xf]
    %v1292 = vpack.c.bf16 %v1258, %v1256
    %v1293 = vpack.c.bf16 %v1259, %v1257
    %v1294 = vld [vmem:[%s3 + $0x2] ss:$0 sm:$0xff]
    %v1327 = vunpack.c.l.b16 %v1260
    %v1328 = vunpack.c.l.b16 %v1261
    %v1329 = vunpack.c.l.b16 %v1262
    %v1330 = vunpack.c.l.b16 %v1263
    %v1331 = vunpack.c.l.b16 %v1264
    %v1332 = vunpack.c.l.b16 %v1265
    %v1333 = vunpack.c.l.b16 %v1266
    %v1334 = vunpack.c.l.b16 %v1267
    %v1335 = vunpack.c.l.b16 %v1268
    %v1336 = vunpack.c.l.b16 %v1269
    %v1337 = vunpack.c.l.b16 %v1270
    %v1338 = vunpack.c.l.b16 %v1271
    %v1339 = vunpack.c.l.b16 %v1272
    %v1340 = vunpack.c.l.b16 %v1273
    %v1341 = vunpack.c.l.b16 %v1274
    %v1342 = vunpack.c.l.b16 %v1275
    %v1343 = vunpack.c.l.b16 %v1276
    %v1344 = vunpack.c.l.b16 %v1277
    %v1345 = vunpack.c.l.b16 %v1278
    %v1346 = vunpack.c.l.b16 %v1279
    %v1347 = vunpack.c.l.b16 %v1280
    %v1348 = vunpack.c.l.b16 %v1281
    %v1349 = vunpack.c.l.b16 %v1282
    %v1350 = vunpack.c.l.b16 %v1283
    %v1351 = vunpack.c.l.b16 %v1284
    %v1352 = vunpack.c.l.b16 %v1285
    %v1353 = vunpack.c.l.b16 %v1286
    %v1354 = vunpack.c.l.b16 %v1287
    %v1355 = vunpack.c.l.b16 %v1288
    %v1356 = vunpack.c.l.b16 %v1289
    %v1357 = vunpack.c.l.b16 %v1290
    %v1358 = vunpack.c.l.b16 %v1291
    %v1359 = vpack.c.b16 %v1328, %v1327
    %v1360 = vpack.c.b16 %v1330, %v1329
    %v1361 = vpack.c.b16 %v1332, %v1331
    %v1362 = vpack.c.b16 %v1334, %v1333
    %v1363 = vpack.c.b16 %v1336, %v1335
    %v1364 = vpack.c.b16 %v1338, %v1337
    %v1365 = vpack.c.b16 %v1340, %v1339
    %v1366 = vpack.c.b16 %v1342, %v1341
    %v1367 = vpack.c.b16 %v1344, %v1343
    %v1368 = vpack.c.b16 %v1346, %v1345
    %v1369 = vpack.c.b16 %v1348, %v1347
    %v1370 = vpack.c.b16 %v1350, %v1349
    %v1371 = vpack.c.b16 %v1352, %v1351
    %v1372 = vpack.c.b16 %v1354, %v1353
    %v1373 = vpack.c.b16 %v1356, %v1355
    %v1374 = vpack.c.b16 %v1358, %v1357
    %1391 = vmatprep.subr.bf16.mxu0 0
    %1392 = vmatpush1.bf16.msra.mxu0 %v1366
    %1393 = vmatprep.subr.bf16.mxu0 0
    %1394 = vmatpush1.bf16.msra.mxu0 %v1365
    %1395 = vmatprep.subr.bf16.mxu0 0
    %1396 = vmatpush1.bf16.msra.mxu0 %v1364
    %1397 = vmatprep.subr.bf16.mxu0 0
    %1398 = vmatpush1.bf16.msra.mxu0 %v1363
    %1399 = vmatprep.subr.bf16.mxu0 0
    %1400 = vmatpush1.bf16.msra.mxu0 %v1362
    %1401 = vmatprep.subr.bf16.mxu0 0
    %1402 = vmatpush1.bf16.msra.mxu0 %v1361
    %1403 = vmatprep.subr.bf16.mxu0 0
    %1404 = vmatpush1.bf16.msra.mxu0 %v1360
    %1405 = vmatprep.subr.bf16.mxu0 0
    %1406 = vmatpush1.bf16.msra.mxu0 %v1359
    %1407 = vmatprep.subr.bf16.mxu0 0
    %1408 = vmatpush2.bf16.msra.mxu0 %v1374
    %1409 = vmatprep.subr.bf16.mxu0 0
    %1410 = vmatpush2.bf16.msra.mxu0 %v1373
    %1411 = vmatprep.subr.bf16.mxu0 0
    %1412 = vmatpush2.bf16.msra.mxu0 %v1372
    %1413 = vmatprep.subr.bf16.mxu0 0
    %1414 = vmatpush2.bf16.msra.mxu0 %v1371
    %1415 = vmatprep.subr.bf16.mxu0 0
    %1416 = vmatpush2.bf16.msra.mxu0 %v1370
    %1417 = vmatprep.subr.bf16.mxu0 0
    %1418 = vmatpush2.bf16.msra.mxu0 %v1369
    %1419 = vmatprep.subr.bf16.mxu0 0
    %1420 = vmatpush2.bf16.msra.mxu0 %v1368
    %1421 = vmatprep.subr.bf16.mxu0 0
    %1422 = vmatpush2.bf16.msra.mxu0 %v1367
    %1423 = vmatprep.mubr.bf16.mxu0 %v1293
    %1424 = vmatmul.mubr.bf16.gmra.mxu0 %v1292
    %v1425 = vpop.f32.mrf.mxu0
    %v1426 = vadd.f32 %v1294, %v1425
    %v1427 = vpop.f32.mrf.mxu0
    %v1428 = vpop.f32.mrf.mxu0
    %v1429 = vadd.f32 %v1294, %v1428
    %v1430 = vpop.f32.mrf.mxu0
    %1431 = vdwg.mxu0
    %v1432 = vmin.f32 %v1426, 0.0
    %v1433 = vmin.f32 %v1429, 0.0
    %v1434 = vmul.f32 %v1432, 1.442695
    %v1435 = vpow.pop %v1434
    %v1436 = vmul.f32 %v1433, 1.442695
    %v1437 = vpow.pop %v1436
    %vm1438 = vcmp.gt.f32.partialorder %v1426, 0.0
    %vm1439 = vcmp.gt.f32.partialorder %v1429, 0.0
    %v1440 = vsub.f32 %v1435, 1.0
    %v1441 = vsub.f32 %v1437, 1.0
    %v1442 = vsel %vm1438, %v1426, %v1440
    %v1443 = vsel %vm1439, %v1429, %v1441
    %v1444 = vld [vmem:[#allocation2 + $0x210] sm:$0xf]
    %v1445 = vld [vmem:[#allocation2 + $0x218] sm:$0xf]
    %v1446 = vld [vmem:[#allocation2 + $0x220] sm:$0xf]
    %v1447 = vld [vmem:[#allocation2 + $0x228] sm:$0xf]
    %v1448 = vld [vmem:[#allocation2 + $0x230] sm:$0xf]
    %v1449 = vld [vmem:[#allocation2 + $0x238] sm:$0xf]
    %v1450 = vld [vmem:[#allocation2 + $0x240] sm:$0xf]
    %v1451 = vld [vmem:[#allocation2 + $0x248] sm:$0xf]
    %v1452 = vld [vmem:[#allocation2 + $0x250] sm:$0xf]
    %v1453 = vld [vmem:[#allocation2 + $0x258] sm:$0xf]
    %v1454 = vld [vmem:[#allocation2 + $0x260] sm:$0xf]
    %v1455 = vld [vmem:[#allocation2 + $0x268] sm:$0xf]
    %v1456 = vld [vmem:[#allocation2 + $0x270] sm:$0xf]
    %v1457 = vld [vmem:[#allocation2 + $0x278] sm:$0xf]
    %v1458 = vld [vmem:[#allocation2 + $0x280] sm:$0xf]
    %v1459 = vld [vmem:[#allocation2 + $0x288] sm:$0xf]
    %v1460 = vpack.c.bf16 %v1443, %v1442
    %v1461 = vld [vmem:[%s3 + $0x3] ss:$0 sm:$0xff]
    %v1478 = vunpack.c.l.b16 %v1444
    %v1479 = vunpack.c.l.b16 %v1445
    %v1480 = vunpack.c.l.b16 %v1446
    %v1481 = vunpack.c.l.b16 %v1447
    %v1482 = vunpack.c.l.b16 %v1448
    %v1483 = vunpack.c.l.b16 %v1449
    %v1484 = vunpack.c.l.b16 %v1450
    %v1485 = vunpack.c.l.b16 %v1451
    %v1486 = vunpack.c.l.b16 %v1452
    %v1487 = vunpack.c.l.b16 %v1453
    %v1488 = vunpack.c.l.b16 %v1454
    %v1489 = vunpack.c.l.b16 %v1455
    %v1490 = vunpack.c.l.b16 %v1456
    %v1491 = vunpack.c.l.b16 %v1457
    %v1492 = vunpack.c.l.b16 %v1458
    %v1493 = vunpack.c.l.b16 %v1459
    %v1494 = vpack.c.b16 %v1479, %v1478
    %v1495 = vpack.c.b16 %v1481, %v1480
    %v1496 = vpack.c.b16 %v1483, %v1482
    %v1497 = vpack.c.b16 %v1485, %v1484
    %v1498 = vpack.c.b16 %v1487, %v1486
    %v1499 = vpack.c.b16 %v1489, %v1488
    %v1500 = vpack.c.b16 %v1491, %v1490
    %v1501 = vpack.c.b16 %v1493, %v1492
    %1510 = vmatprep.subr.bf16.mxu0 0
    %1511 = vmatpush1.bf16.msra.mxu0 %v1501
    %1512 = vmatprep.subr.bf16.mxu0 0
    %1513 = vmatpush1.bf16.msra.mxu0 %v1500
    %1514 = vmatprep.subr.bf16.mxu0 0
    %1515 = vmatpush1.bf16.msra.mxu0 %v1499
    %1516 = vmatprep.subr.bf16.mxu0 0
    %1517 = vmatpush1.bf16.msra.mxu0 %v1498
    %1518 = vmatprep.subr.bf16.mxu0 0
    %1519 = vmatpush1.bf16.msra.mxu0 %v1497
    %1520 = vmatprep.subr.bf16.mxu0 0
    %1521 = vmatpush1.bf16.msra.mxu0 %v1496
    %1522 = vmatprep.subr.bf16.mxu0 0
    %1523 = vmatpush1.bf16.msra.mxu0 %v1495
    %1524 = vmatprep.subr.bf16.mxu0 0
    %1525 = vmatpush1.bf16.msra.mxu0 %v1494
    %1526 = vmatprep.subr.bf16.mxu0 0
    %1527 = vmatpush2.bf16.msra.mxu0 0
    %1528 = vmatprep.subr.bf16.mxu0 0
    %1529 = vmatpush2.bf16.msra.mxu0 0
    %1530 = vmatprep.subr.bf16.mxu0 0
    %1531 = vmatpush2.bf16.msra.mxu0 0
    %1532 = vmatprep.subr.bf16.mxu0 0
    %1533 = vmatpush2.bf16.msra.mxu0 0
    %1534 = vmatprep.subr.bf16.mxu0 0
    %1535 = vmatpush2.bf16.msra.mxu0 0
    %1536 = vmatprep.subr.bf16.mxu0 0
    %1537 = vmatpush2.bf16.msra.mxu0 0
    %1538 = vmatprep.subr.bf16.mxu0 0
    %1539 = vmatpush2.bf16.msra.mxu0 0
    %1540 = vmatprep.subr.bf16.mxu0 0
    %1541 = vmatpush2.bf16.msra.mxu0 0
    %1542 = vmatprep.mubr.bf16.mxu0 0
    %1543 = vmatmul.mubr.bf16.gmra.mxu0 %v1460
    %v1544 = vpop.f32.mrf.mxu0
    %v1545 = vadd.f32 %v1461, %v1544
    %v1546 = vpop.f32.mrf.mxu0
    %v1547 = vpop.f32.mrf.mxu0
    %v1548 = vadd.f32 %v1461, %v1547
    %v1549 = vpop.f32.mrf.mxu0
    %1550 = vdwg.mxu0
    %v1551 = vmin.f32 %v1545, 0.0
    %v1552 = vmin.f32 %v1548, 0.0
    %v1553 = vmul.f32 %v1551, 1.442695
    %v1554 = vpow.pop %v1553
    %v1555 = vmul.f32 %v1552, 1.442695
    %v1556 = vpow.pop %v1555
    %vm1557 = vcmp.gt.f32.partialorder %v1545, 0.0
    %vm1558 = vcmp.gt.f32.partialorder %v1548, 0.0
    %v1559 = vsub.f32 %v1554, 1.0
    %v1560 = vsub.f32 %v1556, 1.0
    %v1561 = vsel %vm1557, %v1545, %v1559
    %v1562 = vsel %vm1558, %v1548, %v1560
    %v1563 = vld [vmem:[#allocation2 + $0x290] sm:$0xf]
    %v1564 = vld [vmem:[#allocation2 + $0x298] sm:$0xf]
    %v1565 = vld [vmem:[#allocation2 + $0x2a0] sm:$0xf]
    %v1566 = vld [vmem:[#allocation2 + $0x2a8] sm:$0xf]
    %v1567 = vld [vmem:[#allocation2 + $0x2b0] sm:$0xf]
    %v1568 = vld [vmem:[#allocation2 + $0x2b8] sm:$0xf]
    %v1569 = vld [vmem:[#allocation2 + $0x2c0] sm:$0xf]
    %v1570 = vld [vmem:[#allocation2 + $0x2c8] sm:$0xf]
    %v1571 = vpack.c.bf16 %v1562, %v1561
    %v1572 = vld [vmem:[%s3 + $0x4] ss:$0 sm:$0xff]
    %v1581 = vunpack.c.l.b16 %v1563
    %v1582 = vunpack.c.l.b16 %v1564
    %v1583 = vunpack.c.l.b16 %v1565
    %v1584 = vunpack.c.l.b16 %v1566
    %v1585 = vunpack.c.l.b16 %v1567
    %v1586 = vunpack.c.l.b16 %v1568
    %v1587 = vunpack.c.l.b16 %v1569
    %v1588 = vunpack.c.l.b16 %v1570
    %v1589 = vpack.c.b16 %v1582, %v1581
    %v1590 = vpack.c.b16 %v1584, %v1583
    %v1591 = vpack.c.b16 %v1586, %v1585
    %v1592 = vpack.c.b16 %v1588, %v1587
    %vm1597 = vcmask 523264
    %v1599 = vsel %vm1597, %v1571, 0
    %1601 = vmatprep.subr.bf16.mxu0 0
    %1602 = vmatpush1.bf16.msra.mxu0 0
    %1603 = vmatprep.subr.bf16.mxu0 0
    %1604 = vmatpush1.bf16.msra.mxu0 0
    %1605 = vmatprep.subr.bf16.mxu0 0
    %1606 = vmatpush1.bf16.msra.mxu0 0
    %1607 = vmatprep.subr.bf16.mxu0 0
    %1608 = vmatpush1.bf16.msra.mxu0 0
    %1609 = vmatprep.subr.bf16.mxu0 0
    %1610 = vmatpush1.bf16.msra.mxu0 %v1592
    %1611 = vmatprep.subr.bf16.mxu0 0
    %1612 = vmatpush1.bf16.msra.mxu0 %v1591
    %1613 = vmatprep.subr.bf16.mxu0 0
    %1614 = vmatpush1.bf16.msra.mxu0 %v1590
    %1615 = vmatprep.subr.bf16.mxu0 0
    %1616 = vmatpush1.bf16.msra.mxu0 %v1589
    %1617 = vmatprep.subr.bf16.mxu0 0
    %1618 = vmatpush2.bf16.msra.mxu0 0
    %1619 = vmatprep.subr.bf16.mxu0 0
    %1620 = vmatpush2.bf16.msra.mxu0 0
    %1621 = vmatprep.subr.bf16.mxu0 0
    %1622 = vmatpush2.bf16.msra.mxu0 0
    %1623 = vmatprep.subr.bf16.mxu0 0
    %1624 = vmatpush2.bf16.msra.mxu0 0
    %1625 = vmatprep.subr.bf16.mxu0 0
    %1626 = vmatpush2.bf16.msra.mxu0 0
    %1627 = vmatprep.subr.bf16.mxu0 0
    %1628 = vmatpush2.bf16.msra.mxu0 0
    %1629 = vmatprep.subr.bf16.mxu0 0
    %1630 = vmatpush2.bf16.msra.mxu0 0
    %1631 = vmatprep.subr.bf16.mxu0 0
    %1632 = vmatpush2.bf16.msra.mxu0 0
    %1633 = vmatprep.mubr.bf16.mxu0 0
    %1634 = vmatmul.mubr.bf16.gmra.mxu0 %v1599
    %v1635 = vpop.f32.mrf.mxu0
    %v1636 = vadd.f32 %v1572, %v1635
    %v1637 = vpop.f32.mrf.mxu0
    %v1638 = vpop.f32.mrf.mxu0
    %v1639 = vadd.f32 %v1572, %v1638
    %v1640 = vpop.f32.mrf.mxu0
    %1641 = vdwg.mxu0
    %v1642 = vmin.f32 %v1636, 0.0
    %v1643 = vmin.f32 %v1639, 0.0
    %v1644 = vmul.f32 %v1642, 1.442695
    %v1645 = vpow.pop %v1644
    %v1646 = vmul.f32 %v1643, 1.442695
    %v1647 = vpow.pop %v1646
    %vm1648 = vcmp.gt.f32.partialorder %v1636, 0.0
    %vm1649 = vcmp.gt.f32.partialorder %v1639, 0.0
    %v1650 = vsub.f32 %v1645, 1.0
    %v1651 = vsub.f32 %v1647, 1.0
    %v1652 = vsel %vm1648, %v1636, %v1650
    %v1653 = vsel %vm1649, %v1639, %v1651
    %v1654 = vld [vmem:[#allocation2 + $0x2d0] sm:$0xf]
    %v1655 = vld [vmem:[#allocation2 + $0x2d8] sm:$0xf]
    %v1656 = vld [vmem:[#allocation2 + $0x2e0] sm:$0xf]
    %v1657 = vld [vmem:[#allocation2 + $0x2e8] sm:$0xf]
    %v1658 = vpack.c.bf16 %v1653, %v1652
    %v1659 = vld [vmem:[%s3 + $0x5] ss:$0 sm:$0xff]
    %v1664 = vunpack.c.l.b16 %v1654
    %v1665 = vunpack.c.l.b16 %v1655
    %v1666 = vunpack.c.l.b16 %v1656
    %v1667 = vunpack.c.l.b16 %v1657
    %v1668 = vpack.c.b16 %v1665, %v1664
    %v1669 = vpack.c.b16 %v1667, %v1666
    %vm1672 = vcmask 261120
    %v1674 = vsel %vm1672, %v1658, 0
    %1676 = vmatprep.subr.bf16.mxu0 0
    %1677 = vmatpush1.bf16.msra.mxu0 0
    %1678 = vmatprep.subr.bf16.mxu0 0
    %1679 = vmatpush1.bf16.msra.mxu0 0
    %1680 = vmatprep.subr.bf16.mxu0 0
    %1681 = vmatpush1.bf16.msra.mxu0 0
    %1682 = vmatprep.subr.bf16.mxu0 0
    %1683 = vmatpush1.bf16.msra.mxu0 0
    %1684 = vmatprep.subr.bf16.mxu0 0
    %1685 = vmatpush1.bf16.msra.mxu0 0
    %1686 = vmatprep.subr.bf16.mxu0 0
    %1687 = vmatpush1.bf16.msra.mxu0 0
    %1688 = vmatprep.subr.bf16.mxu0 0
    %1689 = vmatpush1.bf16.msra.mxu0 %v1669
    %1690 = vmatprep.subr.bf16.mxu0 0
    %1691 = vmatpush1.bf16.msra.mxu0 %v1668
    %1692 = vmatprep.subr.bf16.mxu0 0
    %1693 = vmatpush2.bf16.msra.mxu0 0
    %1694 = vmatprep.subr.bf16.mxu0 0
    %1695 = vmatpush2.bf16.msra.mxu0 0
    %1696 = vmatprep.subr.bf16.mxu0 0
    %1697 = vmatpush2.bf16.msra.mxu0 0
    %1698 = vmatprep.subr.bf16.mxu0 0
    %1699 = vmatpush2.bf16.msra.mxu0 0
    %1700 = vmatprep.subr.bf16.mxu0 0
    %1701 = vmatpush2.bf16.msra.mxu0 0
    %1702 = vmatprep.subr.bf16.mxu0 0
    %1703 = vmatpush2.bf16.msra.mxu0 0
    %1704 = vmatprep.subr.bf16.mxu0 0
    %1705 = vmatpush2.bf16.msra.mxu0 0
    %1706 = vmatprep.subr.bf16.mxu0 0
    %1707 = vmatpush2.bf16.msra.mxu0 0
    %1708 = vmatprep.mubr.bf16.mxu0 0
    %1709 = vmatmul.mubr.bf16.gmra.mxu0 %v1674
    %v1710 = vpop.f32.mrf.mxu0
    %v1711 = vadd.f32 %v1659, %v1710
    %v1712 = vpop.f32.mrf.mxu0
    %v1713 = vpop.f32.mrf.mxu0
    %v1714 = vadd.f32 %v1659, %v1713
    %v1715 = vpop.f32.mrf.mxu0
    %1716 = vdwg.mxu0
    %vm1717 = vcmask 64512
    %1718 = vst.msk [vmem:[%s4] sm:$0xff] %vm1717, %v1711
    %1719 = vst.msk [vmem:[%s4 + $0x8] sm:$0xff] %vm1717, %v1714
    // Predicated region
    $region22: #{tpu_custom_call.1} parent=1 // pred_check
      _
    $region23: #{tpu_custom_call.1} parent=1 // pred_check_branch
      %1721 = sbr.rel (0) target = $region25
    $region24: #{tpu_custom_call.1} parent=1 // pred_region
      _
    $region25: #{tpu_custom_call.1} parent=1 // pred_fallthru
      _
    // Predicated region
    $region26: #{tpu_custom_call.1} parent=1 // pred_check
      _
    $region27: #{tpu_custom_call.1} parent=1 // pred_check_branch
      %1723 = sbr.rel (0) target = $region29
    $region28: #{tpu_custom_call.1} parent=1 // pred_region
      _
    $region29: #{tpu_custom_call.1} parent=1 // pred_fallthru
      _
    %1724 = vsyncpa [#allocation3], 1

</llo_original>
